<compile_context>
chip_gen: v7x
topology: tpu7x:2x2x1
jax: 0.10.0
libtpu: 0.0.40
codegen_flags: <defaults>
</compile_context>

<pallas_src>
import functools
import math

import jax
import jax.numpy as jnp
from jax.experimental import pallas as pl
from jax.experimental.pallas import tpu as pltpu

D_MODEL = 32
N_LAYERS = 2
N_HEADS = 1            # single head -> head_dim == D_MODEL
FFN_DIM = 2048         # nn.TransformerEncoderLayer default dim_feedforward
N_CLASSES = 7          # args.task == 'crysystem'
LN_EPS = 1e-5


# --------------------------- fused Pallas kernel -----------------------------

def _layernorm(z, gamma, beta):
    mu = jnp.mean(z, axis=-1, keepdims=True)
    zc = z - mu
    var = jnp.mean(zc * zc, axis=-1, keepdims=True)
    return zc * jax.lax.rsqrt(var + LN_EPS) * gamma + beta


def fused_forward_kernel(
    x_ref,                     # (R, 1)   flattened (batch*seq, 1) input
    we_ref, be_ref,            # (1, E), (1, E)              embedding
    wqkv_ref, bqkv_ref,        # (L, E, 3E), (L, 1, 3E)      fused q/k/v proj
    wo_ref, bo_ref,            # (L, E, E), (L, 1, E)        attn out projection
    w1_ref, b1_ref,            # (L, E, F), (L, 1, F)        FFN up
    w2_ref, b2_ref,            # (L, F, E), (L, 1, E)        FFN down
    g1_ref, bb1_ref,           # (L, 1, E) x2                LayerNorm 1
    g2_ref, bb2_ref,           # (L, 1, E) x2                LayerNorm 2
    wf_ref, bf_ref,            # (E, C), (1, C)              classifier head
    out_ref,                   # (batch, C)
    *, batch, seq,
):
    R = batch * seq
    E = D_MODEL
    scale = 1.0 / math.sqrt(E)

    # ---- embedding: (R,1)*(1,E)+(1,E)  (K=1 contraction -> VPU broadcast) ----
    h = x_ref[...] * we_ref[...] + be_ref[...]                        # (R, E)

    # Attention group mask: rows i = b_i*seq + s_i attend to rows j with
    # s_j == s_i (torch seq-major semantics for a (batch, seq, E) input).
    # Built once, reused by both layers.
    rid = jax.lax.broadcasted_iota(jnp.int32, (R, R), 0)
    cid = jax.lax.broadcasted_iota(jnp.int32, (R, R), 1)
    same_group = (rid % seq) == (cid % seq)

    for l in range(N_LAYERS):                                         # unrolled
        # ---------------- self-attention block (nhead=1, post-LN) ------------
        # One fused (E, 3E) projection, then static lane slices for q/k/v.
        qkv = (jnp.dot(h, wqkv_ref[l], preferred_element_type=jnp.float32)
               + bqkv_ref[l])                                         # (R, 3E)
        q = qkv[:, 0 * E:1 * E] * scale               # pre-scale q, not scores
        k = qkv[:, 1 * E:2 * E]
        v = qkv[:, 2 * E:3 * E]

        s = jnp.einsum("qd,kd->qk", q, k,
                       preferred_element_type=jnp.float32)            # (R, R)
        s = jnp.where(same_group, s, jnp.float32(-1e30))
        m = jnp.max(s, axis=-1, keepdims=True)
        p = jnp.exp(s - m)
        p = p * pl.reciprocal(jnp.sum(p, axis=-1, keepdims=True), approx=True)
        attn = jnp.dot(p, v, preferred_element_type=jnp.float32)      # (R, E)
        attn = (jnp.dot(attn, wo_ref[l], preferred_element_type=jnp.float32)
                + bo_ref[l])
        # dropout(p=0.1) is identity in eval mode.
        h = _layernorm(h + attn, g1_ref[l], bb1_ref[l])

        # ---------------- feed-forward block (hidden never leaves VMEM) ------
        ff = jnp.dot(h, w1_ref[l], preferred_element_type=jnp.float32) + b1_ref[l]
        ff = jnp.maximum(ff, 0.0)                                      # (R, F)
        ff = jnp.dot(ff, w2_ref[l], preferred_element_type=jnp.float32) + b2_ref[l]
        h = _layernorm(h + ff, g2_ref[l], bb2_ref[l])

    # ---- out[:, -1, :] : select rows b*seq + (seq-1) via one-hot matmul -----
    srow = jax.lax.broadcasted_iota(jnp.int32, (batch, R), 0)
    scol = jax.lax.broadcasted_iota(jnp.int32, (batch, R), 1)
    sel = (scol == srow * seq + (seq - 1)).astype(jnp.float32)         # (batch, R)
    last = jnp.dot(sel, h, preferred_element_type=jnp.float32)         # (batch, E)
    out_ref[...] = (jnp.dot(last, wf_ref[...],
                            preferred_element_type=jnp.float32) + bf_ref[...])


# --------------------------- parameters --------------------------------------

def init_params(key):
    keys = iter(jax.random.split(key, 48))

    def lin_w(fan_in, fan_out):
        bound = 1.0 / math.sqrt(fan_in)
        return jax.random.uniform(next(keys), (fan_in, fan_out), jnp.float32,
                                  -bound, bound)

    def lin_b(fan_in, fan_out):
        bound = 1.0 / math.sqrt(fan_in)
        return jax.random.uniform(next(keys), (1, fan_out), jnp.float32,
                                  -bound, bound)

    we = lin_w(1, D_MODEL)
    be = lin_b(1, D_MODEL)
    # fused q/k/v: concat along the output dim -> (L, E, 3E) / (L, 1, 3E)
    wqkv = jnp.stack([
        jnp.concatenate([lin_w(D_MODEL, D_MODEL) for _ in range(3)], axis=1)
        for _ in range(N_LAYERS)])                                  # (L, E, 3E)
    bqkv = jnp.stack([
        jnp.concatenate([lin_b(D_MODEL, D_MODEL) for _ in range(3)], axis=1)
        for _ in range(N_LAYERS)])                                  # (L, 1, 3E)
    wo = jnp.stack([lin_w(D_MODEL, D_MODEL) for _ in range(N_LAYERS)])
    bo = jnp.stack([lin_b(D_MODEL, D_MODEL) for _ in range(N_LAYERS)])
    w1 = jnp.stack([lin_w(D_MODEL, FFN_DIM) for _ in range(N_LAYERS)])
    b1 = jnp.stack([lin_b(D_MODEL, FFN_DIM) for _ in range(N_LAYERS)])
    w2 = jnp.stack([lin_w(FFN_DIM, D_MODEL) for _ in range(N_LAYERS)])
    b2 = jnp.stack([lin_b(FFN_DIM, D_MODEL) for _ in range(N_LAYERS)])
    wf = lin_w(D_MODEL, N_CLASSES)
    bf = lin_b(D_MODEL, N_CLASSES)
    ones = jnp.ones((N_LAYERS, 1, D_MODEL), jnp.float32)
    zeros = jnp.zeros((N_LAYERS, 1, D_MODEL), jnp.float32)
    return dict(we=we, be=be, wqkv=wqkv, bqkv=bqkv, wo=wo, bo=bo,
                w1=w1, b1=b1, w2=w2, b2=b2,
                g1=ones, bb1=zeros, g2=ones, bb2=zeros, wf=wf, bf=bf)


# --------------------------- forward pass (one pallas_call) -------------------

@jax.jit
def model_forward(params, x):
    # x: (batch, 1, seq) -> squeeze(1).unsqueeze(-1) -> flattened (batch*seq, 1)
    batch, _, seq = x.shape
    rows = batch * seq
    x2d = x.reshape(rows, 1).astype(jnp.float32)

    kernel = functools.partial(fused_forward_kernel, batch=batch, seq=seq)
    vmem = pl.BlockSpec(memory_space=pltpu.MemorySpace.VMEM)

    flops = (
        2 * rows * D_MODEL
        + N_LAYERS * (
            2 * rows * D_MODEL * (3 * D_MODEL)      # fused q/k/v projection
            + 2 * rows * rows * D_MODEL             # scores
            + 2 * rows * rows * D_MODEL             # attn @ v
            + 2 * rows * D_MODEL * D_MODEL          # out projection
            + 2 * rows * D_MODEL * FFN_DIM          # FFN up
            + 2 * rows * FFN_DIM * D_MODEL)         # FFN down
        + 2 * batch * rows * D_MODEL                # last-row select
        + 2 * batch * D_MODEL * N_CLASSES)          # head
    transcendentals = N_LAYERS * (rows * rows + 3 * rows)
    bytes_accessed = 4 * (x2d.size + sum(v.size for v in params.values())
                          + batch * N_CLASSES)

    operands = (x2d, params["we"], params["be"], params["wqkv"], params["bqkv"],
                params["wo"], params["bo"], params["w1"], params["b1"],
                params["w2"], params["b2"], params["g1"], params["bb1"],
                params["g2"], params["bb2"], params["wf"], params["bf"])

    return pl.pallas_call(
        kernel,
        out_shape=jax.ShapeDtypeStruct((batch, N_CLASSES), jnp.float32),
        in_specs=[vmem] * len(operands),
        out_specs=vmem,
        cost_estimate=pl.CostEstimate(flops=flops,
                                      transcendentals=transcendentals,
                                      bytes_accessed=bytes_accessed),
        compiler_params=pltpu.CompilerParams(vmem_limit_bytes=16 << 20),
    )(*operands)


# --------------------------- pure-JAX reference -------------------------------

def reference_forward(params, x):
    batch, _, seq = x.shape
    E = D_MODEL
    h = x.reshape(batch, seq, 1).astype(jnp.float32)
    h = h @ params["we"] + params["be"]                        # (B, S, E)

    def ln(z, g, b):
        mu = jnp.mean(z, -1, keepdims=True)
        var = jnp.mean((z - mu) ** 2, -1, keepdims=True)
        return (z - mu) / jnp.sqrt(var + LN_EPS) * g + b

    out = h                                                    # torch: (S=B, N=S, E)
    for l in range(N_LAYERS):
        wqkv, bqkv = params["wqkv"][l], params["bqkv"][l]
        q = out @ wqkv[:, 0 * E:1 * E] + bqkv[:, 0 * E:1 * E]
        k = out @ wqkv[:, 1 * E:2 * E] + bqkv[:, 1 * E:2 * E]
        v = out @ wqkv[:, 2 * E:3 * E] + bqkv[:, 2 * E:3 * E]
        scores = jnp.einsum("snd,tnd->nst", q, k) / math.sqrt(D_MODEL)
        pa = jax.nn.softmax(scores, axis=-1)
        a = jnp.einsum("nst,tnd->snd", pa, v)
        a = a @ params["wo"][l] + params["bo"][l]
        out = ln(out + a, params["g1"][l], params["bb1"][l])
        ff = jnp.maximum(out @ params["w1"][l] + params["b1"][l], 0.0)
        ff = ff @ params["w2"][l] + params["b2"][l]
        out = ln(out + ff, params["g2"][l], params["bb2"][l])
    last = out[:, -1, :]
    return last @ params["wf"] + params["bf"]


# ------------------------------- main -----------------------------------------

if __name__ == "__main__":
    key = jax.random.PRNGKey(0)
    k_param, k_x = jax.random.split(key)

    params = init_params(k_param)
    # input matches the torch forward signature: (batch, 1, seq)
    x = jax.random.normal(k_x, (2, 1, 8), dtype=jnp.float32)

    out = jax.block_until_ready(model_forward(params, x))
    ref = jax.block_until_ready(reference_forward(params, x))

    max_diff = float(jnp.max(jnp.abs(out - ref)))
    assert out.shape == (2, N_CLASSES), out.shape
    assert max_diff < 1e-2, f"mismatch vs reference: {max_diff}"

    print("KERNEL_OK")
</pallas_src>

<mosaic_0001>
module attributes {stable_mosaic.version = 11 : i64} {
  func.func @fused_forward_kernel(%arg0: memref<16x1xf32, #tpu.memory_space<vmem>>, %arg1: memref<1x32xf32, #tpu.memory_space<vmem>>, %arg2: memref<1x32xf32, #tpu.memory_space<vmem>>, %arg3: memref<2x32x96xf32, #tpu.memory_space<vmem>>, %arg4: memref<2x1x96xf32, #tpu.memory_space<vmem>>, %arg5: memref<2x32x32xf32, #tpu.memory_space<vmem>>, %arg6: memref<2x1x32xf32, #tpu.memory_space<vmem>>, %arg7: memref<2x32x2048xf32, #tpu.memory_space<vmem>>, %arg8: memref<2x1x2048xf32, #tpu.memory_space<vmem>>, %arg9: memref<2x2048x32xf32, #tpu.memory_space<vmem>>, %arg10: memref<2x1x32xf32, #tpu.memory_space<vmem>>, %arg11: memref<2x1x32xf32, #tpu.memory_space<vmem>>, %arg12: memref<2x1x32xf32, #tpu.memory_space<vmem>>, %arg13: memref<2x1x32xf32, #tpu.memory_space<vmem>>, %arg14: memref<2x1x32xf32, #tpu.memory_space<vmem>>, %arg15: memref<32x7xf32, #tpu.memory_space<vmem>>, %arg16: memref<1x7xf32, #tpu.memory_space<vmem>>, %arg17: memref<2x7xf32, #tpu.memory_space<vmem>>) attributes {dimension_semantics = [], scalar_prefetch = 0 : i64, scratch_operands = 0 : i64, tpu.core_type = #tpu.core_type<tc>} {
    %c0 = arith.constant 0 : index
    %c0_0 = arith.constant 0 : index
    %0 = vector.load %arg0[%c0, %c0_0] : memref<16x1xf32, #tpu.memory_space<vmem>>, vector<16x1xf32>
    %c0_1 = arith.constant 0 : index
    %c0_2 = arith.constant 0 : index
    %1 = vector.load %arg1[%c0_1, %c0_2] : memref<1x32xf32, #tpu.memory_space<vmem>>, vector<1x32xf32>
    %2 = vector.broadcast %0 : vector<16x1xf32> to vector<16x32xf32>
    %3 = vector.broadcast %1 : vector<1x32xf32> to vector<16x32xf32>
    %4 = arith.mulf %2, %3 : vector<16x32xf32>
    %c0_3 = arith.constant 0 : index
    %c0_4 = arith.constant 0 : index
    %5 = vector.load %arg2[%c0_3, %c0_4] : memref<1x32xf32, #tpu.memory_space<vmem>>, vector<1x32xf32>
    %6 = vector.broadcast %5 : vector<1x32xf32> to vector<16x32xf32>
    %7 = arith.addf %4, %6 : vector<16x32xf32>
    %8 = tpu.iota {dimensions = array<i32: 0>} : vector<16x16xi32>
    %9 = tpu.iota {dimensions = array<i32: 1>} : vector<16x16xi32>
    %c8_i32 = arith.constant 8 : i32
    %c0_i32 = arith.constant 0 : i32
    %10 = arith.cmpi eq, %c8_i32, %c0_i32 : i32
    %c1_i32 = arith.constant 1 : i32
    %11 = arith.select %10, %c1_i32, %c8_i32 : i32
    %12 = vector.broadcast %11 : i32 to vector<16x16xi32>
    %13 = arith.remsi %8, %12 : vector<16x16xi32>
    %c0_i32_5 = arith.constant 0 : i32
    %14 = vector.broadcast %c0_i32_5 : i32 to vector<16x16xi32>
    %15 = arith.cmpi ne, %13, %14 : vector<16x16xi32>
    %c0_i32_6 = arith.constant 0 : i32
    %16 = vector.broadcast %c0_i32_6 : i32 to vector<16x16xi32>
    %17 = arith.cmpi slt, %13, %16 : vector<16x16xi32>
    %c0_i32_7 = arith.constant 0 : i32
    %18 = arith.cmpi slt, %11, %c0_i32_7 : i32
    %19 = vector.broadcast %18 : i1 to vector<16x16xi1>
    %20 = vector.broadcast %19 : vector<16x16xi1> to vector<16x16xi1>
    %21 = arith.xori %17, %20 : vector<16x16xi1>
    %22 = arith.andi %21, %15 : vector<16x16xi1>
    %23 = vector.broadcast %11 : i32 to vector<16x16xi32>
    %24 = arith.addi %13, %23 : vector<16x16xi32>
    %25 = arith.select %22, %24, %13 : vector<16x16xi1>, vector<16x16xi32>
    %c8_i32_8 = arith.constant 8 : i32
    %c0_i32_9 = arith.constant 0 : i32
    %26 = arith.cmpi eq, %c8_i32_8, %c0_i32_9 : i32
    %c1_i32_10 = arith.constant 1 : i32
    %27 = arith.select %26, %c1_i32_10, %c8_i32_8 : i32
    %28 = vector.broadcast %27 : i32 to vector<16x16xi32>
    %29 = arith.remsi %9, %28 : vector<16x16xi32>
    %c0_i32_11 = arith.constant 0 : i32
    %30 = vector.broadcast %c0_i32_11 : i32 to vector<16x16xi32>
    %31 = arith.cmpi ne, %29, %30 : vector<16x16xi32>
    %c0_i32_12 = arith.constant 0 : i32
    %32 = vector.broadcast %c0_i32_12 : i32 to vector<16x16xi32>
    %33 = arith.cmpi slt, %29, %32 : vector<16x16xi32>
    %c0_i32_13 = arith.constant 0 : i32
    %34 = arith.cmpi slt, %27, %c0_i32_13 : i32
    %35 = vector.broadcast %34 : i1 to vector<16x16xi1>
    %36 = vector.broadcast %35 : vector<16x16xi1> to vector<16x16xi1>
    %37 = arith.xori %33, %36 : vector<16x16xi1>
    %38 = arith.andi %37, %31 : vector<16x16xi1>
    %39 = vector.broadcast %27 : i32 to vector<16x16xi32>
    %40 = arith.addi %29, %39 : vector<16x16xi32>
    %41 = arith.select %38, %40, %29 : vector<16x16xi1>, vector<16x16xi32>
    %42 = arith.cmpi eq, %25, %41 : vector<16x16xi32>
    %c0_14 = arith.constant 0 : index
    %c0_15 = arith.constant 0 : index
    %c0_16 = arith.constant 0 : index
    %43 = vector.load %arg3[%c0_14, %c0_15, %c0_16] : memref<2x32x96xf32, #tpu.memory_space<vmem>>, vector<1x32x96xf32>
    %44 = vector.shape_cast %43 : vector<1x32x96xf32> to vector<32x96xf32>
    %cst = arith.constant dense<0.000000e+00> : vector<16x96xf32>
    %45 = tpu.matmul %7, %44, %cst {dimension_numbers = #tpu.dot_dimension_numbers<[1], [0], [0], [1], [0, 0, 1, 1], [], []>} : vector<16x32xf32>, vector<32x96xf32>, vector<16x96xf32> -> vector<16x96xf32>
    %c0_17 = arith.constant 0 : index
    %c0_18 = arith.constant 0 : index
    %c0_19 = arith.constant 0 : index
    %46 = vector.load %arg4[%c0_17, %c0_18, %c0_19] : memref<2x1x96xf32, #tpu.memory_space<vmem>>, vector<1x1x96xf32>
    %47 = vector.shape_cast %46 : vector<1x1x96xf32> to vector<1x96xf32>
    %48 = vector.broadcast %47 : vector<1x96xf32> to vector<16x96xf32>
    %49 = arith.addf %45, %48 : vector<16x96xf32>
    %50 = vector.extract_strided_slice %49 {offsets = [0, 0], sizes = [16, 32], strides = [1, 1]} : vector<16x96xf32> to vector<16x32xf32>
    %cst_20 = arith.constant 0.176776692 : f32
    %51 = vector.broadcast %cst_20 : f32 to vector<16x32xf32>
    %52 = arith.mulf %50, %51 : vector<16x32xf32>
    %53 = vector.extract_strided_slice %49 {offsets = [0, 32], sizes = [16, 32], strides = [1, 1]} : vector<16x96xf32> to vector<16x32xf32>
    %54 = vector.extract_strided_slice %49 {offsets = [0, 64], sizes = [16, 32], strides = [1, 1]} : vector<16x96xf32> to vector<16x32xf32>
    "tpu.trace_start"() <{level = 10 : i32, message = "qd,kd->qk"}> : () -> ()
    %cst_21 = arith.constant dense<0.000000e+00> : vector<16x16xf32>
    %55 = tpu.matmul %52, %53, %cst_21 {dimension_numbers = #tpu.dot_dimension_numbers<[1], [1], [0], [0], [0, 0, 1, 0], [], []>} : vector<16x32xf32>, vector<16x32xf32>, vector<16x16xf32> -> vector<16x16xf32>
    %cst_22 = arith.constant -1.000000e+30 : f32
    "tpu.trace_stop"() : () -> ()
    %56 = vector.broadcast %cst_22 : f32 to vector<16x16xf32>
    %57 = arith.select %42, %55, %56 : vector<16x16xi1>, vector<16x16xf32>
    %cst_23 = arith.constant dense<0xFF800000> : vector<16xf32>
    %58 = vector.multi_reduction <maximumf>, %57, %cst_23 [1] : vector<16x16xf32> to vector<16xf32>
    %59 = vector.shape_cast %58 : vector<16xf32> to vector<16x1xf32>
    %60 = vector.broadcast %59 : vector<16x1xf32> to vector<16x16xf32>
    %61 = arith.subf %57, %60 : vector<16x16xf32>
    %62 = math.exp %61 : vector<16x16xf32>
    %cst_24 = arith.constant dense<0.000000e+00> : vector<16xf32>
    %63 = vector.multi_reduction <add>, %62, %cst_24 [1] : vector<16x16xf32> to vector<16xf32>
    %64 = vector.shape_cast %63 : vector<16xf32> to vector<16x1xf32>
    %65 = tpu.reciprocal %64 {approx = true} : vector<16x1xf32> -> vector<16x1xf32>
    %66 = vector.broadcast %65 : vector<16x1xf32> to vector<16x16xf32>
    %67 = arith.mulf %62, %66 : vector<16x16xf32>
    %cst_25 = arith.constant dense<0.000000e+00> : vector<16x32xf32>
    %68 = tpu.matmul %67, %54, %cst_25 {dimension_numbers = #tpu.dot_dimension_numbers<[1], [0], [0], [1], [0, 0, 1, 1], [], []>} : vector<16x16xf32>, vector<16x32xf32>, vector<16x32xf32> -> vector<16x32xf32>
    %c0_26 = arith.constant 0 : index
    %c0_27 = arith.constant 0 : index
    %c0_28 = arith.constant 0 : index
    %69 = vector.load %arg5[%c0_26, %c0_27, %c0_28] : memref<2x32x32xf32, #tpu.memory_space<vmem>>, vector<1x32x32xf32>
    %70 = vector.shape_cast %69 : vector<1x32x32xf32> to vector<32x32xf32>
    %cst_29 = arith.constant dense<0.000000e+00> : vector<16x32xf32>
    %71 = tpu.matmul %68, %70, %cst_29 {dimension_numbers = #tpu.dot_dimension_numbers<[1], [0], [0], [1], [0, 0, 1, 1], [], []>} : vector<16x32xf32>, vector<32x32xf32>, vector<16x32xf32> -> vector<16x32xf32>
    %c0_30 = arith.constant 0 : index
    %c0_31 = arith.constant 0 : index
    %c0_32 = arith.constant 0 : index
    %72 = vector.load %arg6[%c0_30, %c0_31, %c0_32] : memref<2x1x32xf32, #tpu.memory_space<vmem>>, vector<1x1x32xf32>
    %73 = vector.shape_cast %72 : vector<1x1x32xf32> to vector<1x32xf32>
    %74 = vector.broadcast %73 : vector<1x32xf32> to vector<16x32xf32>
    %75 = arith.addf %71, %74 : vector<16x32xf32>
    %76 = arith.addf %7, %75 : vector<16x32xf32>
    %c0_33 = arith.constant 0 : index
    %c0_34 = arith.constant 0 : index
    %c0_35 = arith.constant 0 : index
    %77 = vector.load %arg11[%c0_33, %c0_34, %c0_35] : memref<2x1x32xf32, #tpu.memory_space<vmem>>, vector<1x1x32xf32>
    %78 = vector.shape_cast %77 : vector<1x1x32xf32> to vector<1x32xf32>
    %c0_36 = arith.constant 0 : index
    %c0_37 = arith.constant 0 : index
    %c0_38 = arith.constant 0 : index
    %79 = vector.load %arg12[%c0_36, %c0_37, %c0_38] : memref<2x1x32xf32, #tpu.memory_space<vmem>>, vector<1x1x32xf32>
    %80 = vector.shape_cast %79 : vector<1x1x32xf32> to vector<1x32xf32>
    %cst_39 = arith.constant dense<0.000000e+00> : vector<16xf32>
    %81 = vector.multi_reduction <add>, %76, %cst_39 [1] : vector<16x32xf32> to vector<16xf32>
    %82 = vector.shape_cast %81 : vector<16xf32> to vector<16x1xf32>
    %cst_40 = arith.constant 3.200000e+01 : f32
    %83 = vector.broadcast %cst_40 : f32 to vector<16x1xf32>
    %84 = arith.divf %82, %83 : vector<16x1xf32>
    %85 = vector.broadcast %84 : vector<16x1xf32> to vector<16x32xf32>
    %86 = arith.subf %76, %85 : vector<16x32xf32>
    %87 = arith.mulf %86, %86 : vector<16x32xf32>
    %cst_41 = arith.constant dense<0.000000e+00> : vector<16xf32>
    %88 = vector.multi_reduction <add>, %87, %cst_41 [1] : vector<16x32xf32> to vector<16xf32>
    %89 = vector.shape_cast %88 : vector<16xf32> to vector<16x1xf32>
    %cst_42 = arith.constant 3.200000e+01 : f32
    %90 = vector.broadcast %cst_42 : f32 to vector<16x1xf32>
    %91 = arith.divf %89, %90 : vector<16x1xf32>
    %cst_43 = arith.constant 9.99999974E-6 : f32
    %92 = vector.broadcast %cst_43 : f32 to vector<16x1xf32>
    %93 = arith.addf %91, %92 : vector<16x1xf32>
    %94 = math.rsqrt %93 : vector<16x1xf32>
    %95 = vector.broadcast %94 : vector<16x1xf32> to vector<16x32xf32>
    %96 = arith.mulf %86, %95 : vector<16x32xf32>
    %97 = vector.broadcast %78 : vector<1x32xf32> to vector<16x32xf32>
    %98 = arith.mulf %96, %97 : vector<16x32xf32>
    %99 = vector.broadcast %80 : vector<1x32xf32> to vector<16x32xf32>
    %100 = arith.addf %98, %99 : vector<16x32xf32>
    %c0_44 = arith.constant 0 : index
    %c0_45 = arith.constant 0 : index
    %c0_46 = arith.constant 0 : index
    %101 = vector.load %arg7[%c0_44, %c0_45, %c0_46] : memref<2x32x2048xf32, #tpu.memory_space<vmem>>, vector<1x32x2048xf32>
    %102 = vector.shape_cast %101 : vector<1x32x2048xf32> to vector<32x2048xf32>
    %cst_47 = arith.constant dense<0.000000e+00> : vector<16x2048xf32>
    %103 = tpu.matmul %100, %102, %cst_47 {dimension_numbers = #tpu.dot_dimension_numbers<[1], [0], [0], [1], [0, 0, 1, 1], [], []>} : vector<16x32xf32>, vector<32x2048xf32>, vector<16x2048xf32> -> vector<16x2048xf32>
    %c0_48 = arith.constant 0 : index
    %c0_49 = arith.constant 0 : index
    %c0_50 = arith.constant 0 : index
    %104 = vector.load %arg8[%c0_48, %c0_49, %c0_50] : memref<2x1x2048xf32, #tpu.memory_space<vmem>>, vector<1x1x2048xf32>
    %105 = vector.shape_cast %104 : vector<1x1x2048xf32> to vector<1x2048xf32>
    %106 = vector.broadcast %105 : vector<1x2048xf32> to vector<16x2048xf32>
    %107 = arith.addf %103, %106 : vector<16x2048xf32>
    %cst_51 = arith.constant 0.000000e+00 : f32
    %108 = vector.broadcast %cst_51 : f32 to vector<16x2048xf32>
    %109 = arith.maximumf %107, %108 : vector<16x2048xf32>
    %c0_52 = arith.constant 0 : index
    %c0_53 = arith.constant 0 : index
    %c0_54 = arith.constant 0 : index
    %110 = vector.load %arg9[%c0_52, %c0_53, %c0_54] : memref<2x2048x32xf32, #tpu.memory_space<vmem>>, vector<1x2048x32xf32>
    %111 = vector.shape_cast %110 : vector<1x2048x32xf32> to vector<2048x32xf32>
    %cst_55 = arith.constant dense<0.000000e+00> : vector<16x32xf32>
    %112 = tpu.matmul %109, %111, %cst_55 {dimension_numbers = #tpu.dot_dimension_numbers<[1], [0], [0], [1], [0, 0, 1, 1], [], []>} : vector<16x2048xf32>, vector<2048x32xf32>, vector<16x32xf32> -> vector<16x32xf32>
    %c0_56 = arith.constant 0 : index
    %c0_57 = arith.constant 0 : index
    %c0_58 = arith.constant 0 : index
    %113 = vector.load %arg10[%c0_56, %c0_57, %c0_58] : memref<2x1x32xf32, #tpu.memory_space<vmem>>, vector<1x1x32xf32>
    %114 = vector.shape_cast %113 : vector<1x1x32xf32> to vector<1x32xf32>
    %115 = vector.broadcast %114 : vector<1x32xf32> to vector<16x32xf32>
    %116 = arith.addf %112, %115 : vector<16x32xf32>
    %117 = arith.addf %100, %116 : vector<16x32xf32>
    %c0_59 = arith.constant 0 : index
    %c0_60 = arith.constant 0 : index
    %c0_61 = arith.constant 0 : index
    %118 = vector.load %arg13[%c0_59, %c0_60, %c0_61] : memref<2x1x32xf32, #tpu.memory_space<vmem>>, vector<1x1x32xf32>
    %119 = vector.shape_cast %118 : vector<1x1x32xf32> to vector<1x32xf32>
    %c0_62 = arith.constant 0 : index
    %c0_63 = arith.constant 0 : index
    %c0_64 = arith.constant 0 : index
    %120 = vector.load %arg14[%c0_62, %c0_63, %c0_64] : memref<2x1x32xf32, #tpu.memory_space<vmem>>, vector<1x1x32xf32>
    %121 = vector.shape_cast %120 : vector<1x1x32xf32> to vector<1x32xf32>
    %cst_65 = arith.constant dense<0.000000e+00> : vector<16xf32>
    %122 = vector.multi_reduction <add>, %117, %cst_65 [1] : vector<16x32xf32> to vector<16xf32>
    %123 = vector.shape_cast %122 : vector<16xf32> to vector<16x1xf32>
    %cst_66 = arith.constant 3.200000e+01 : f32
    %124 = vector.broadcast %cst_66 : f32 to vector<16x1xf32>
    %125 = arith.divf %123, %124 : vector<16x1xf32>
    %126 = vector.broadcast %125 : vector<16x1xf32> to vector<16x32xf32>
    %127 = arith.subf %117, %126 : vector<16x32xf32>
    %128 = arith.mulf %127, %127 : vector<16x32xf32>
    %cst_67 = arith.constant dense<0.000000e+00> : vector<16xf32>
    %129 = vector.multi_reduction <add>, %128, %cst_67 [1] : vector<16x32xf32> to vector<16xf32>
    %130 = vector.shape_cast %129 : vector<16xf32> to vector<16x1xf32>
    %cst_68 = arith.constant 3.200000e+01 : f32
    %131 = vector.broadcast %cst_68 : f32 to vector<16x1xf32>
    %132 = arith.divf %130, %131 : vector<16x1xf32>
    %cst_69 = arith.constant 9.99999974E-6 : f32
    %133 = vector.broadcast %cst_69 : f32 to vector<16x1xf32>
    %134 = arith.addf %132, %133 : vector<16x1xf32>
    %135 = math.rsqrt %134 : vector<16x1xf32>
    %136 = vector.broadcast %135 : vector<16x1xf32> to vector<16x32xf32>
    %137 = arith.mulf %127, %136 : vector<16x32xf32>
    %138 = vector.broadcast %119 : vector<1x32xf32> to vector<16x32xf32>
    %139 = arith.mulf %137, %138 : vector<16x32xf32>
    %140 = vector.broadcast %121 : vector<1x32xf32> to vector<16x32xf32>
    %141 = arith.addf %139, %140 : vector<16x32xf32>
    %c1 = arith.constant 1 : index
    %c0_70 = arith.constant 0 : index
    %c0_71 = arith.constant 0 : index
    %142 = vector.load %arg3[%c1, %c0_70, %c0_71] : memref<2x32x96xf32, #tpu.memory_space<vmem>>, vector<1x32x96xf32>
    %143 = vector.shape_cast %142 : vector<1x32x96xf32> to vector<32x96xf32>
    %cst_72 = arith.constant dense<0.000000e+00> : vector<16x96xf32>
    %144 = tpu.matmul %141, %143, %cst_72 {dimension_numbers = #tpu.dot_dimension_numbers<[1], [0], [0], [1], [0, 0, 1, 1], [], []>} : vector<16x32xf32>, vector<32x96xf32>, vector<16x96xf32> -> vector<16x96xf32>
    %c1_73 = arith.constant 1 : index
    %c0_74 = arith.constant 0 : index
    %c0_75 = arith.constant 0 : index
    %145 = vector.load %arg4[%c1_73, %c0_74, %c0_75] : memref<2x1x96xf32, #tpu.memory_space<vmem>>, vector<1x1x96xf32>
    %146 = vector.shape_cast %145 : vector<1x1x96xf32> to vector<1x96xf32>
    %147 = vector.broadcast %146 : vector<1x96xf32> to vector<16x96xf32>
    %148 = arith.addf %144, %147 : vector<16x96xf32>
    %149 = vector.extract_strided_slice %148 {offsets = [0, 0], sizes = [16, 32], strides = [1, 1]} : vector<16x96xf32> to vector<16x32xf32>
    %cst_76 = arith.constant 0.176776692 : f32
    %150 = vector.broadcast %cst_76 : f32 to vector<16x32xf32>
    %151 = arith.mulf %149, %150 : vector<16x32xf32>
    %152 = vector.extract_strided_slice %148 {offsets = [0, 32], sizes = [16, 32], strides = [1, 1]} : vector<16x96xf32> to vector<16x32xf32>
    %153 = vector.extract_strided_slice %148 {offsets = [0, 64], sizes = [16, 32], strides = [1, 1]} : vector<16x96xf32> to vector<16x32xf32>
    "tpu.trace_start"() <{level = 10 : i32, message = "qd,kd->qk"}> : () -> ()
    %cst_77 = arith.constant dense<0.000000e+00> : vector<16x16xf32>
    %154 = tpu.matmul %151, %152, %cst_77 {dimension_numbers = #tpu.dot_dimension_numbers<[1], [1], [0], [0], [0, 0, 1, 0], [], []>} : vector<16x32xf32>, vector<16x32xf32>, vector<16x16xf32> -> vector<16x16xf32>
    %cst_78 = arith.constant -1.000000e+30 : f32
    "tpu.trace_stop"() : () -> ()
    %155 = vector.broadcast %cst_78 : f32 to vector<16x16xf32>
    %156 = arith.select %42, %154, %155 : vector<16x16xi1>, vector<16x16xf32>
    %cst_79 = arith.constant dense<0xFF800000> : vector<16xf32>
    %157 = vector.multi_reduction <maximumf>, %156, %cst_79 [1] : vector<16x16xf32> to vector<16xf32>
    %158 = vector.shape_cast %157 : vector<16xf32> to vector<16x1xf32>
    %159 = vector.broadcast %158 : vector<16x1xf32> to vector<16x16xf32>
    %160 = arith.subf %156, %159 : vector<16x16xf32>
    %161 = math.exp %160 : vector<16x16xf32>
    %cst_80 = arith.constant dense<0.000000e+00> : vector<16xf32>
    %162 = vector.multi_reduction <add>, %161, %cst_80 [1] : vector<16x16xf32> to vector<16xf32>
    %163 = vector.shape_cast %162 : vector<16xf32> to vector<16x1xf32>
    %164 = tpu.reciprocal %163 {approx = true} : vector<16x1xf32> -> vector<16x1xf32>
    %165 = vector.broadcast %164 : vector<16x1xf32> to vector<16x16xf32>
    %166 = arith.mulf %161, %165 : vector<16x16xf32>
    %cst_81 = arith.constant dense<0.000000e+00> : vector<16x32xf32>
    %167 = tpu.matmul %166, %153, %cst_81 {dimension_numbers = #tpu.dot_dimension_numbers<[1], [0], [0], [1], [0, 0, 1, 1], [], []>} : vector<16x16xf32>, vector<16x32xf32>, vector<16x32xf32> -> vector<16x32xf32>
    %c1_82 = arith.constant 1 : index
    %c0_83 = arith.constant 0 : index
    %c0_84 = arith.constant 0 : index
    %168 = vector.load %arg5[%c1_82, %c0_83, %c0_84] : memref<2x32x32xf32, #tpu.memory_space<vmem>>, vector<1x32x32xf32>
    %169 = vector.shape_cast %168 : vector<1x32x32xf32> to vector<32x32xf32>
    %cst_85 = arith.constant dense<0.000000e+00> : vector<16x32xf32>
    %170 = tpu.matmul %167, %169, %cst_85 {dimension_numbers = #tpu.dot_dimension_numbers<[1], [0], [0], [1], [0, 0, 1, 1], [], []>} : vector<16x32xf32>, vector<32x32xf32>, vector<16x32xf32> -> vector<16x32xf32>
    %c1_86 = arith.constant 1 : index
    %c0_87 = arith.constant 0 : index
    %c0_88 = arith.constant 0 : index
    %171 = vector.load %arg6[%c1_86, %c0_87, %c0_88] : memref<2x1x32xf32, #tpu.memory_space<vmem>>, vector<1x1x32xf32>
    %172 = vector.shape_cast %171 : vector<1x1x32xf32> to vector<1x32xf32>
    %173 = vector.broadcast %172 : vector<1x32xf32> to vector<16x32xf32>
    %174 = arith.addf %170, %173 : vector<16x32xf32>
    %175 = arith.addf %141, %174 : vector<16x32xf32>
    %c1_89 = arith.constant 1 : index
    %c0_90 = arith.constant 0 : index
    %c0_91 = arith.constant 0 : index
    %176 = vector.load %arg11[%c1_89, %c0_90, %c0_91] : memref<2x1x32xf32, #tpu.memory_space<vmem>>, vector<1x1x32xf32>
    %177 = vector.shape_cast %176 : vector<1x1x32xf32> to vector<1x32xf32>
    %c1_92 = arith.constant 1 : index
    %c0_93 = arith.constant 0 : index
    %c0_94 = arith.constant 0 : index
    %178 = vector.load %arg12[%c1_92, %c0_93, %c0_94] : memref<2x1x32xf32, #tpu.memory_space<vmem>>, vector<1x1x32xf32>
    %179 = vector.shape_cast %178 : vector<1x1x32xf32> to vector<1x32xf32>
    %cst_95 = arith.constant dense<0.000000e+00> : vector<16xf32>
    %180 = vector.multi_reduction <add>, %175, %cst_95 [1] : vector<16x32xf32> to vector<16xf32>
    %181 = vector.shape_cast %180 : vector<16xf32> to vector<16x1xf32>
    %cst_96 = arith.constant 3.200000e+01 : f32
    %182 = vector.broadcast %cst_96 : f32 to vector<16x1xf32>
    %183 = arith.divf %181, %182 : vector<16x1xf32>
    %184 = vector.broadcast %183 : vector<16x1xf32> to vector<16x32xf32>
    %185 = arith.subf %175, %184 : vector<16x32xf32>
    %186 = arith.mulf %185, %185 : vector<16x32xf32>
    %cst_97 = arith.constant dense<0.000000e+00> : vector<16xf32>
    %187 = vector.multi_reduction <add>, %186, %cst_97 [1] : vector<16x32xf32> to vector<16xf32>
    %188 = vector.shape_cast %187 : vector<16xf32> to vector<16x1xf32>
    %cst_98 = arith.constant 3.200000e+01 : f32
    %189 = vector.broadcast %cst_98 : f32 to vector<16x1xf32>
    %190 = arith.divf %188, %189 : vector<16x1xf32>
    %cst_99 = arith.constant 9.99999974E-6 : f32
    %191 = vector.broadcast %cst_99 : f32 to vector<16x1xf32>
    %192 = arith.addf %190, %191 : vector<16x1xf32>
    %193 = math.rsqrt %192 : vector<16x1xf32>
    %194 = vector.broadcast %193 : vector<16x1xf32> to vector<16x32xf32>
    %195 = arith.mulf %185, %194 : vector<16x32xf32>
    %196 = vector.broadcast %177 : vector<1x32xf32> to vector<16x32xf32>
    %197 = arith.mulf %195, %196 : vector<16x32xf32>
    %198 = vector.broadcast %179 : vector<1x32xf32> to vector<16x32xf32>
    %199 = arith.addf %197, %198 : vector<16x32xf32>
    %c1_100 = arith.constant 1 : index
    %c0_101 = arith.constant 0 : index
    %c0_102 = arith.constant 0 : index
    %200 = vector.load %arg7[%c1_100, %c0_101, %c0_102] : memref<2x32x2048xf32, #tpu.memory_space<vmem>>, vector<1x32x2048xf32>
    %201 = vector.shape_cast %200 : vector<1x32x2048xf32> to vector<32x2048xf32>
    %cst_103 = arith.constant dense<0.000000e+00> : vector<16x2048xf32>
    %202 = tpu.matmul %199, %201, %cst_103 {dimension_numbers = #tpu.dot_dimension_numbers<[1], [0], [0], [1], [0, 0, 1, 1], [], []>} : vector<16x32xf32>, vector<32x2048xf32>, vector<16x2048xf32> -> vector<16x2048xf32>
    %c1_104 = arith.constant 1 : index
    %c0_105 = arith.constant 0 : index
    %c0_106 = arith.constant 0 : index
    %203 = vector.load %arg8[%c1_104, %c0_105, %c0_106] : memref<2x1x2048xf32, #tpu.memory_space<vmem>>, vector<1x1x2048xf32>
    %204 = vector.shape_cast %203 : vector<1x1x2048xf32> to vector<1x2048xf32>
    %205 = vector.broadcast %204 : vector<1x2048xf32> to vector<16x2048xf32>
    %206 = arith.addf %202, %205 : vector<16x2048xf32>
    %cst_107 = arith.constant 0.000000e+00 : f32
    %207 = vector.broadcast %cst_107 : f32 to vector<16x2048xf32>
    %208 = arith.maximumf %206, %207 : vector<16x2048xf32>
    %c1_108 = arith.constant 1 : index
    %c0_109 = arith.constant 0 : index
    %c0_110 = arith.constant 0 : index
    %209 = vector.load %arg9[%c1_108, %c0_109, %c0_110] : memref<2x2048x32xf32, #tpu.memory_space<vmem>>, vector<1x2048x32xf32>
    %210 = vector.shape_cast %209 : vector<1x2048x32xf32> to vector<2048x32xf32>
    %cst_111 = arith.constant dense<0.000000e+00> : vector<16x32xf32>
    %211 = tpu.matmul %208, %210, %cst_111 {dimension_numbers = #tpu.dot_dimension_numbers<[1], [0], [0], [1], [0, 0, 1, 1], [], []>} : vector<16x2048xf32>, vector<2048x32xf32>, vector<16x32xf32> -> vector<16x32xf32>
    %c1_112 = arith.constant 1 : index
    %c0_113 = arith.constant 0 : index
    %c0_114 = arith.constant 0 : index
    %212 = vector.load %arg10[%c1_112, %c0_113, %c0_114] : memref<2x1x32xf32, #tpu.memory_space<vmem>>, vector<1x1x32xf32>
    %213 = vector.shape_cast %212 : vector<1x1x32xf32> to vector<1x32xf32>
    %214 = vector.broadcast %213 : vector<1x32xf32> to vector<16x32xf32>
    %215 = arith.addf %211, %214 : vector<16x32xf32>
    %216 = arith.addf %199, %215 : vector<16x32xf32>
    %c1_115 = arith.constant 1 : index
    %c0_116 = arith.constant 0 : index
    %c0_117 = arith.constant 0 : index
    %217 = vector.load %arg13[%c1_115, %c0_116, %c0_117] : memref<2x1x32xf32, #tpu.memory_space<vmem>>, vector<1x1x32xf32>
    %218 = vector.shape_cast %217 : vector<1x1x32xf32> to vector<1x32xf32>
    %c1_118 = arith.constant 1 : index
    %c0_119 = arith.constant 0 : index
    %c0_120 = arith.constant 0 : index
    %219 = vector.load %arg14[%c1_118, %c0_119, %c0_120] : memref<2x1x32xf32, #tpu.memory_space<vmem>>, vector<1x1x32xf32>
    %220 = vector.shape_cast %219 : vector<1x1x32xf32> to vector<1x32xf32>
    %cst_121 = arith.constant dense<0.000000e+00> : vector<16xf32>
    %221 = vector.multi_reduction <add>, %216, %cst_121 [1] : vector<16x32xf32> to vector<16xf32>
    %222 = vector.shape_cast %221 : vector<16xf32> to vector<16x1xf32>
    %cst_122 = arith.constant 3.200000e+01 : f32
    %223 = vector.broadcast %cst_122 : f32 to vector<16x1xf32>
    %224 = arith.divf %222, %223 : vector<16x1xf32>
    %225 = vector.broadcast %224 : vector<16x1xf32> to vector<16x32xf32>
    %226 = arith.subf %216, %225 : vector<16x32xf32>
    %227 = arith.mulf %226, %226 : vector<16x32xf32>
    %cst_123 = arith.constant dense<0.000000e+00> : vector<16xf32>
    %228 = vector.multi_reduction <add>, %227, %cst_123 [1] : vector<16x32xf32> to vector<16xf32>
    %229 = vector.shape_cast %228 : vector<16xf32> to vector<16x1xf32>
    %cst_124 = arith.constant 3.200000e+01 : f32
    %230 = vector.broadcast %cst_124 : f32 to vector<16x1xf32>
    %231 = arith.divf %229, %230 : vector<16x1xf32>
    %cst_125 = arith.constant 9.99999974E-6 : f32
    %232 = vector.broadcast %cst_125 : f32 to vector<16x1xf32>
    %233 = arith.addf %231, %232 : vector<16x1xf32>
    %234 = math.rsqrt %233 : vector<16x1xf32>
    %235 = vector.broadcast %234 : vector<16x1xf32> to vector<16x32xf32>
    %236 = arith.mulf %226, %235 : vector<16x32xf32>
    %237 = vector.broadcast %218 : vector<1x32xf32> to vector<16x32xf32>
    %238 = arith.mulf %236, %237 : vector<16x32xf32>
    %239 = vector.broadcast %220 : vector<1x32xf32> to vector<16x32xf32>
    %240 = arith.addf %238, %239 : vector<16x32xf32>
    %241 = tpu.iota {dimensions = array<i32: 0>} : vector<2x16xi32>
    %242 = tpu.iota {dimensions = array<i32: 1>} : vector<2x16xi32>
    %c8_i32_126 = arith.constant 8 : i32
    %243 = vector.broadcast %c8_i32_126 : i32 to vector<2x16xi32>
    %244 = arith.muli %241, %243 : vector<2x16xi32>
    %c7_i32 = arith.constant 7 : i32
    %245 = vector.broadcast %c7_i32 : i32 to vector<2x16xi32>
    %246 = arith.addi %244, %245 : vector<2x16xi32>
    %247 = arith.cmpi eq, %242, %246 : vector<2x16xi32>
    %248 = arith.extui %247 : vector<2x16xi1> to vector<2x16xi32>
    %249 = arith.sitofp %248 : vector<2x16xi32> to vector<2x16xf32>
    %cst_127 = arith.constant dense<0.000000e+00> : vector<2x32xf32>
    %250 = tpu.matmul %249, %240, %cst_127 {dimension_numbers = #tpu.dot_dimension_numbers<[1], [0], [0], [1], [0, 0, 1, 1], [], []>} : vector<2x16xf32>, vector<16x32xf32>, vector<2x32xf32> -> vector<2x32xf32>
    %c0_128 = arith.constant 0 : index
    %c0_129 = arith.constant 0 : index
    %251 = vector.load %arg15[%c0_128, %c0_129] : memref<32x7xf32, #tpu.memory_space<vmem>>, vector<32x7xf32>
    %cst_130 = arith.constant dense<0.000000e+00> : vector<2x7xf32>
    %252 = tpu.matmul %250, %251, %cst_130 {dimension_numbers = #tpu.dot_dimension_numbers<[1], [0], [0], [1], [0, 0, 1, 1], [], []>} : vector<2x32xf32>, vector<32x7xf32>, vector<2x7xf32> -> vector<2x7xf32>
    %c0_131 = arith.constant 0 : index
    %c0_132 = arith.constant 0 : index
    %253 = vector.load %arg16[%c0_131, %c0_132] : memref<1x7xf32, #tpu.memory_space<vmem>>, vector<1x7xf32>
    %254 = vector.broadcast %253 : vector<1x7xf32> to vector<2x7xf32>
    %255 = arith.addf %252, %254 : vector<2x7xf32>
    %c0_133 = arith.constant 0 : index
    %c0_134 = arith.constant 0 : index
    %256 = vector.load %arg17[%c0_133, %c0_134] : memref<2x7xf32, #tpu.memory_space<vmem>>, vector<2x7xf32>
    tpu.vector_store %arg17[%c0_133, %c0_134], %255 {strides = array<i32>} : memref<2x7xf32, #tpu.memory_space<vmem>>, vector<2x7xf32>,
    return
  }
}

</mosaic_0001>

<llo_original>
// kernel: model_forward.1
$region0: #{model_forward.1}
  #allocation0 [shape = 'u32[]', space=smem, size = 0x4, offset = 0x4, fixed_abs, tag = 'smem constant byte address 0x4 - core index']
  #allocation1 [shape = 'u32[144,128]{1,0:T(1,128)}', space=vmem, size = 0x12000, scoped, tag = 'internal scratch']
  %s0 = inlined_call_operand.vmem [shape: f32[16,1], index: 0, kind: input, shape index: {}]
  %s1 = inlined_call_operand.vmem [shape: f32[1,32], index: 1, kind: input, shape index: {}]
  %s2 = inlined_call_operand.vmem [shape: f32[1,32], index: 2, kind: input, shape index: {}]
  %s3 = inlined_call_operand.vmem [shape: f32[2,32,96], index: 3, kind: input, shape index: {}]
  %s4 = inlined_call_operand.vmem [shape: f32[2,1,96], index: 4, kind: input, shape index: {}]
  %s5 = inlined_call_operand.vmem [shape: f32[2,32,32], index: 5, kind: input, shape index: {}]
  %s6 = inlined_call_operand.vmem [shape: f32[2,1,32], index: 6, kind: input, shape index: {}]
  %s7 = inlined_call_operand.vmem [shape: f32[2,32,2048], index: 7, kind: input, shape index: {}]
  %s8 = inlined_call_operand.vmem [shape: f32[2,1,2048], index: 8, kind: input, shape index: {}]
  %s9 = inlined_call_operand.vmem [shape: f32[2,2048,32], index: 9, kind: input, shape index: {}]
  %s10 = inlined_call_operand.vmem [shape: f32[2,1,32], index: 10, kind: input, shape index: {}]
  %s11 = inlined_call_operand.vmem [shape: f32[2,1,32], index: 11, kind: input, shape index: {}]
  %s12 = inlined_call_operand.vmem [shape: f32[2,1,32], index: 12, kind: input, shape index: {}]
  %s13 = inlined_call_operand.vmem [shape: f32[2,1,32], index: 13, kind: input, shape index: {}]
  %s14 = inlined_call_operand.vmem [shape: f32[2,1,32], index: 14, kind: input, shape index: {}]
  %s15 = inlined_call_operand.vmem [shape: f32[32,7], index: 15, kind: input, shape index: {}]
  %s16 = inlined_call_operand.vmem [shape: f32[1,7], index: 16, kind: input, shape index: {}]
  %s17 = inlined_call_operand.hbm [shape: f32[2,7], index: 17, kind: output, shape index: {}]
  %s18 = sld [smem:[#allocation0]]
  $region78: #{model_forward.1} parent=0
    _
  %s20 = ssub.s32 1, %s18
  %s21 = scalar_select 0, %s20, %s18
  $region1: #{model_forward.1} parent=0
    #allocation2 [shape = 'u8[1024]{0}', space=vmem, size = 0x400, scoped, tag = 'output window, operand 0, single buffered']
    #allocation3 [shape = 's32[1]{0}', space=sflag, size = 0x4, scoped, tag = 'scoped memory for model_forward.1']
    %22 = vsyncpa [#allocation3], 0
    // Predicated region
    $region2: #{model_forward.1} parent=1 // pred_check
      _
    $region3: #{model_forward.1} parent=1 // pred_check_branch
      %24 = sbr.rel (0) target = $region5
    $region4: #{model_forward.1} parent=1 // pred_region
      _
    $region5: #{model_forward.1} parent=1 // pred_fallthru
      _
    // Predicated region
    $region6: #{model_forward.1} parent=1 // pred_check
      _
    $region7: #{model_forward.1} parent=1 // pred_check_branch
      %26 = sbr.rel (0) target = $region9
    $region8: #{model_forward.1} parent=1 // pred_region
      _
    $region9: #{model_forward.1} parent=1 // pred_fallthru
      _
    // Predicated region
    $region10: #{model_forward.1} parent=1 // pred_check
      _
    $region11: #{model_forward.1} parent=1 // pred_check_branch
      %28 = sbr.rel (0) target = $region13
    $region12: #{model_forward.1} parent=1 // pred_region
      _
    $region13: #{model_forward.1} parent=1 // pred_fallthru
      _
    // Predicated region
    $region14: #{model_forward.1} parent=1 // pred_check
      _
    $region15: #{model_forward.1} parent=1 // pred_check_branch
      %30 = sbr.rel (0) target = $region17
    $region16: #{model_forward.1} parent=1 // pred_region
      _
    $region17: #{model_forward.1} parent=1 // pred_fallthru
      _
    // Predicated region
    $region18: #{model_forward.1} parent=1 // pred_check
      _
    $region19: #{model_forward.1} parent=1 // pred_check_branch
      %32 = sbr.rel (0) target = $region21
    $region20: #{model_forward.1} parent=1 // pred_region
      _
    $region21: #{model_forward.1} parent=1 // pred_fallthru
      _
    // Predicated region
    $region22: #{model_forward.1} parent=1 // pred_check
      _
    $region23: #{model_forward.1} parent=1 // pred_check_branch
      %34 = sbr.rel (0) target = $region25
    $region24: #{model_forward.1} parent=1 // pred_region
      _
    $region25: #{model_forward.1} parent=1 // pred_fallthru
      _
    // Predicated region
    $region26: #{model_forward.1} parent=1 // pred_check
      _
    $region27: #{model_forward.1} parent=1 // pred_check_branch
      %36 = sbr.rel (0) target = $region29
    $region28: #{model_forward.1} parent=1 // pred_region
      _
    $region29: #{model_forward.1} parent=1 // pred_fallthru
      _
    // Predicated region
    $region30: #{model_forward.1} parent=1 // pred_check
      _
    $region31: #{model_forward.1} parent=1 // pred_check_branch
      %38 = sbr.rel (0) target = $region33
    $region32: #{model_forward.1} parent=1 // pred_region
      _
    $region33: #{model_forward.1} parent=1 // pred_fallthru
      _
    // Predicated region
    $region34: #{model_forward.1} parent=1 // pred_check
      _
    $region35: #{model_forward.1} parent=1 // pred_check_branch
      %40 = sbr.rel (0) target = $region37
    $region36: #{model_forward.1} parent=1 // pred_region
      _
    $region37: #{model_forward.1} parent=1 // pred_fallthru
      _
    // Predicated region
    $region38: #{model_forward.1} parent=1 // pred_check
      _
    $region39: #{model_forward.1} parent=1 // pred_check_branch
      %42 = sbr.rel (0) target = $region41
    $region40: #{model_forward.1} parent=1 // pred_region
      _
    $region41: #{model_forward.1} parent=1 // pred_fallthru
      _
    // Predicated region
    $region42: #{model_forward.1} parent=1 // pred_check
      _
    $region43: #{model_forward.1} parent=1 // pred_check_branch
      %44 = sbr.rel (0) target = $region45
    $region44: #{model_forward.1} parent=1 // pred_region
      _
    $region45: #{model_forward.1} parent=1 // pred_fallthru
      _
    // Predicated region
    $region46: #{model_forward.1} parent=1 // pred_check
      _
    $region47: #{model_forward.1} parent=1 // pred_check_branch
      %46 = sbr.rel (0) target = $region49
    $region48: #{model_forward.1} parent=1 // pred_region
      _
    $region49: #{model_forward.1} parent=1 // pred_fallthru
      _
    // Predicated region
    $region50: #{model_forward.1} parent=1 // pred_check
      _
    $region51: #{model_forward.1} parent=1 // pred_check_branch
      %48 = sbr.rel (0) target = $region53
    $region52: #{model_forward.1} parent=1 // pred_region
      _
    $region53: #{model_forward.1} parent=1 // pred_fallthru
      _
    // Predicated region
    $region54: #{model_forward.1} parent=1 // pred_check
      _
    $region55: #{model_forward.1} parent=1 // pred_check_branch
      %50 = sbr.rel (0) target = $region57
    $region56: #{model_forward.1} parent=1 // pred_region
      _
    $region57: #{model_forward.1} parent=1 // pred_fallthru
      _
    // Predicated region
    $region58: #{model_forward.1} parent=1 // pred_check
      _
    $region59: #{model_forward.1} parent=1 // pred_check_branch
      %52 = sbr.rel (0) target = $region61
    $region60: #{model_forward.1} parent=1 // pred_region
      _
    $region61: #{model_forward.1} parent=1 // pred_fallthru
      _
    // Predicated region
    $region62: #{model_forward.1} parent=1 // pred_check
      _
    $region63: #{model_forward.1} parent=1 // pred_check_branch
      %54 = sbr.rel (0) target = $region65
    $region64: #{model_forward.1} parent=1 // pred_region
      _
    $region65: #{model_forward.1} parent=1 // pred_fallthru
      _
    // Predicated region
    $region66: #{model_forward.1} parent=1 // pred_check
      _
    $region67: #{model_forward.1} parent=1 // pred_check_branch
      %56 = sbr.rel (0) target = $region69
    $region68: #{model_forward.1} parent=1 // pred_region
      _
    $region69: #{model_forward.1} parent=1 // pred_fallthru
      _
    %v57 = vld [vmem:[%s0] sm:$0xff]
    %v58 = vld [vmem:[%s0 + $0x8] sm:$0xff]
    %v59 = vld [vmem:[%s1] sm:$0x1]
    %61 = vset.pattern.permute.xlu0 0
    %62 = vperm.xlu0 %61, %v57
    %v63 = vpop.permute.xlu0 %62
    %66 = vset.pattern.permute.xlu0 0
    %67 = vperm.xlu0 %66, %v58
    %v68 = vpop.permute.xlu0 %67
    %v71 = vlaneseq
    %v72 = vshrl.u32 %v71, 7
    %v73 = vsub.s32 0, %v72
    %v74 = vrot.slane %v59, %v73
    %v76 = vmul.f32 %v63, %v74
    %v77 = vmul.f32 %v68, %v74
    %v78 = vld [vmem:[%s2] sm:$0x1]
    %v80 = vlaneseq
    %v81 = vshrl.u32 %v80, 7
    %v82 = vsub.s32 0, %v81
    %v83 = vrot.slane %v78, %v82
    %v85 = vadd.f32 %v76, %v83
    %v86 = vadd.f32 %v77, %v83
    %v87 = vlaneseq
    %v88 = vshrl.u32 %v87, 7
    %v89 = vadd.s32 %v88, 8
    %v90 = vlaneseq
    %v91 = vand.u32 %v90, 127
    %vm92 = vcmp.lt.s32.totalorder %v88, 0
    %v93 = vsub.s32 0, %v88
    %v94 = vsel %vm92, %v93, %v88
    %v95 = vshrl.u32 %v94, 3
    %v96 = vand.u32 %v94, 7
    %v97 = vsub.s32 0, %v96
    %v98 = vsel %vm92, %v97, %v96
    %vm99 = vcmp.lt.s32.totalorder %v89, 0
    %v100 = vsub.s32 0, %v89
    %v101 = vsel %vm99, %v100, %v89
    %v102 = vshrl.u32 %v101, 3
    %v103 = vand.u32 %v101, 7
    %v104 = vsub.s32 0, %v103
    %v105 = vsel %vm99, %v104, %v103
    %vm106 = vcmp.ne.s32.totalorder %v98, 0
    %vm107 = vcmp.ne.s32.totalorder %v105, 0
    %vm108 = vcmp.lt.s32.totalorder %v98, 0
    %vm109 = vcmp.lt.s32.totalorder %v105, 0
    %vm110 = vmand %vm108, %vm106
    %vm111 = vmand %vm109, %vm107
    %v112 = vadd.s32 %v98, 8
    %v113 = vadd.s32 %v105, 8
    %v114 = vsel %vm110, %v112, %v98
    %v115 = vsel %vm111, %v113, %v105
    %vm116 = vcmp.lt.s32.totalorder %v91, 0
    %v117 = vsub.s32 0, %v91
    %v118 = vsel %vm116, %v117, %v91
    %v119 = vshrl.u32 %v118, 3
    %v120 = vand.u32 %v118, 7
    %v121 = vsub.s32 0, %v120
    %v122 = vsel %vm116, %v121, %v120
    %vm123 = vcmp.ne.s32.totalorder %v122, 0
    %vm124 = vcmp.lt.s32.totalorder %v122, 0
    %vm125 = vmand %vm124, %vm123
    %v126 = vadd.s32 %v122, 8
    %v127 = vsel %vm125, %v126, %v122
    %vm128 = vcmp.eq.s32.totalorder %v114, %v127
    %vm129 = vcmp.eq.s32.totalorder %v115, %v127
    %v130 = vld [vmem:[%s3] sm:$0xff]
    %v131 = vld [vmem:[%s3 + $0x8] sm:$0xff]
    %v132 = vld [vmem:[%s3 + $0x10] sm:$0xff]
    %v133 = vld [vmem:[%s3 + $0x18] sm:$0xff]
    %v134 = vld [vmem:[%s4] sm:$0x1]
    %v136 = vlaneseq
    %v137 = vshrl.u32 %v136, 7
    %v138 = vsub.s32 0, %v137
    %v139 = vrot.slane %v134, %v138
    %vm141 = vcmask 261120
    %v143 = vsel %vm141, %v85, 0
    %v146 = vsel %vm141, %v86, 0
    %148 = vmatprep.subr.mxu0 0.0
    %149 = vmatpush1.msra.mxu0 %v130
    %150 = vmatprep.subr.mxu0 0.0
    %151 = vmatpush1.msra.mxu0 %v131
    %152 = vmatprep.subr.mxu0 0.0
    %153 = vmatpush1.msra.mxu0 %v132
    %154 = vmatprep.subr.mxu0 0.0
    %155 = vmatpush1.msra.mxu0 %v133
    %156 = vmatprep.subr.mxu0 0.0
    %157 = vmatpush1.msra.mxu0 0.0
    %158 = vmatprep.subr.mxu0 0.0
    %159 = vmatpush1.msra.mxu0 0.0
    %160 = vmatprep.subr.mxu0 0.0
    %161 = vmatpush1.msra.mxu0 0.0
    %162 = vmatprep.subr.mxu0 0.0
    %163 = vmatpush1.msra.mxu0 0.0
    %164 = vmatprep.subr.mxu0 0.0
    %165 = vmatpush1.msra.mxu0 0.0
    %166 = vmatprep.subr.mxu0 0.0
    %167 = vmatpush1.msra.mxu0 0.0
    %168 = vmatprep.subr.mxu0 0.0
    %169 = vmatpush1.msra.mxu0 0.0
    %170 = vmatprep.subr.mxu0 0.0
    %171 = vmatpush1.msra.mxu0 0.0
    %172 = vmatprep.subr.mxu0 0.0
    %173 = vmatpush1.msra.mxu0 0.0
    %174 = vmatprep.subr.mxu0 0.0
    %175 = vmatpush1.msra.mxu0 0.0
    %176 = vmatprep.subr.mxu0 0.0
    %177 = vmatpush1.msra.mxu0 0.0
    %178 = vmatprep.subr.mxu0 0.0
    %179 = vmatpush1.msra.mxu0 0.0
    %180 = vmatprep.subr.mxu0 0.0
    %181 = vmatpush1.msra.mxu0 0.0
    %182 = vmatprep.subr.mxu0 0.0
    %183 = vmatpush1.msra.mxu0 0.0
    %184 = vmatprep.subr.mxu0 0.0
    %185 = vmatpush1.msra.mxu0 0.0
    %186 = vmatprep.subr.mxu0 0.0
    %187 = vmatpush1.msra.mxu0 0.0
    %188 = vmatprep.subr.mxu0 0.0
    %189 = vmatpush1.msra.mxu0 0.0
    %190 = vmatprep.subr.mxu0 0.0
    %191 = vmatpush1.msra.mxu0 0.0
    %192 = vmatprep.subr.mxu0 0.0
    %193 = vmatpush1.msra.mxu0 0.0
    %194 = vmatprep.subr.mxu0 0.0
    %195 = vmatpush1.msra.mxu0 0.0
    %196 = vmatprep.subr.mxu0 0.0
    %197 = vmatpush1.msra.mxu0 0.0
    %198 = vmatprep.subr.mxu0 0.0
    %199 = vmatpush1.msra.mxu0 0.0
    %200 = vmatprep.subr.mxu0 0.0
    %201 = vmatpush1.msra.mxu0 0.0
    %202 = vmatprep.subr.mxu0 0.0
    %203 = vmatpush1.msra.mxu0 0.0
    %204 = vmatprep.subr.mxu0 0.0
    %205 = vmatpush1.msra.mxu0 0.0
    %206 = vmatprep.subr.mxu0 0.0
    %207 = vmatpush1.msra.mxu0 0.0
    %208 = vmatprep.subr.mxu0 0.0
    %209 = vmatpush1.msra.mxu0 0.0
    %210 = vmatprep.subr.mxu0 0.0
    %211 = vmatpush1.msra.mxu0 0.0
    %212 = vmatprep.mubr.f32.mxu0 0.0
    %213 = vmatmul.mubr.f32.gmra.mrb[0].mxu0 %v143
    %v214 = vpop.f32.mrb[0].mxu0
    %v215 = vadd.f32 %v139, %v214
    %v216 = vpop.f32.mrb[0].mxu0
    %217 = vmatprep.mubr.f32.mxu0 0.0
    %218 = vmatmul.mubr.f32.gmra.mrb[0].mxu0 %v146
    %v219 = vpop.f32.mrb[0].mxu0
    %v220 = vadd.f32 %v139, %v219
    %v221 = vpop.f32.mrb[0].mxu0
    %222 = vdwg.mxu0
    %v223 = vmul.f32 %v215, 0.17677669
    %v224 = vmul.f32 %v220, 0.17677669
    %227 = vrot.lane.b32.xlu0 %v215, 96
    %v228 = vpop.permute.xlu0 %227
    %229 = vrot.lane.b32.xlu0 %v220, 96
    %v230 = vpop.permute.xlu0 %229
    %v232 = vsel %vm141, %v223, 0
    %v235 = vsel %vm141, %v224, 0
    %v237 = vsel %vm141, %v228, 0
    %v239 = vsel %vm141, %v230, 0
    %241 = vmatprep.subr.mxu0 0.0
    %242 = vmatpush1.xpose.msra.mxu0 %v237
    %243 = vmatprep.subr.mxu0 0.0
    %244 = vmatpush1.xpose.msra.mxu0 %v239
    %245 = vmatprep.subr.mxu0 0.0
    %246 = vmatpush1.xpose.msra.mxu0 0.0
    %247 = vmatprep.subr.mxu0 0.0
    %248 = vmatpush1.xpose.msra.mxu0 0.0
    %249 = vmatprep.subr.mxu0 0.0
    %250 = vmatpush1.xpose.msra.mxu0 0.0
    %251 = vmatprep.subr.mxu0 0.0
    %252 = vmatpush1.xpose.msra.mxu0 0.0
    %253 = vmatprep.subr.mxu0 0.0
    %254 = vmatpush1.xpose.msra.mxu0 0.0
    %255 = vmatprep.subr.mxu0 0.0
    %256 = vmatpush1.xpose.msra.mxu0 0.0
    %257 = vmatprep.subr.mxu0 0.0
    %258 = vmatpush1.xpose.msra.mxu0 0.0
    %259 = vmatprep.subr.mxu0 0.0
    %260 = vmatpush1.xpose.msra.mxu0 0.0
    %261 = vmatprep.subr.mxu0 0.0
    %262 = vmatpush1.xpose.msra.mxu0 0.0
    %263 = vmatprep.subr.mxu0 0.0
    %264 = vmatpush1.xpose.msra.mxu0 0.0
    %265 = vmatprep.subr.mxu0 0.0
    %266 = vmatpush1.xpose.msra.mxu0 0.0
    %267 = vmatprep.subr.mxu0 0.0
    %268 = vmatpush1.xpose.msra.mxu0 0.0
    %269 = vmatprep.subr.mxu0 0.0
    %270 = vmatpush1.xpose.msra.mxu0 0.0
    %271 = vmatprep.subr.mxu0 0.0
    %272 = vmatpush1.xpose.msra.mxu0 0.0
    %273 = vmatprep.subr.mxu0 0.0
    %274 = vmatpush1.xpose.msra.mxu0 0.0
    %275 = vmatprep.subr.mxu0 0.0
    %276 = vmatpush1.xpose.msra.mxu0 0.0
    %277 = vmatprep.subr.mxu0 0.0
    %278 = vmatpush1.xpose.msra.mxu0 0.0
    %279 = vmatprep.subr.mxu0 0.0
    %280 = vmatpush1.xpose.msra.mxu0 0.0
    %281 = vmatprep.subr.mxu0 0.0
    %282 = vmatpush1.xpose.msra.mxu0 0.0
    %283 = vmatprep.subr.mxu0 0.0
    %284 = vmatpush1.xpose.msra.mxu0 0.0
    %285 = vmatprep.subr.mxu0 0.0
    %286 = vmatpush1.xpose.msra.mxu0 0.0
    %287 = vmatprep.subr.mxu0 0.0
    %288 = vmatpush1.xpose.msra.mxu0 0.0
    %289 = vmatprep.subr.mxu0 0.0
    %290 = vmatpush1.xpose.msra.mxu0 0.0
    %291 = vmatprep.subr.mxu0 0.0
    %292 = vmatpush1.xpose.msra.mxu0 0.0
    %293 = vmatprep.subr.mxu0 0.0
    %294 = vmatpush1.xpose.msra.mxu0 0.0
    %295 = vmatprep.subr.mxu0 0.0
    %296 = vmatpush1.xpose.msra.mxu0 0.0
    %297 = vmatprep.subr.mxu0 0.0
    %298 = vmatpush1.xpose.msra.mxu0 0.0
    %299 = vmatprep.subr.mxu0 0.0
    %300 = vmatpush1.xpose.msra.mxu0 0.0
    %301 = vmatprep.subr.mxu0 0.0
    %302 = vmatpush1.xpose.msra.mxu0 0.0
    %303 = vmatprep.subr.mxu0 0.0
    %304 = vmatpush1.xpose.msra.mxu0 0.0
    %305 = vmatprep.mubr.f32.mxu0 0.0
    %306 = vmatmul.mubr.f32.gmra.mrb[0].mxu0 %v232
    %v307 = vpop.f32.mrb[0].mxu0
    %v308 = vadd.f32 0.0, %v307
    %v309 = vpop.f32.mrb[0].mxu0
    %310 = vmatprep.mubr.f32.mxu0 0.0
    %311 = vmatmul.mubr.f32.gmra.mrb[0].mxu0 %v235
    %v312 = vpop.f32.mrb[0].mxu0
    %v313 = vadd.f32 0.0, %v312
    %v314 = vpop.f32.mrb[0].mxu0
    %315 = vdwg.mxu0
    %v316 = vsel %vm128, %v308, -1e+30
    %v317 = vsel %vm129, %v313, -1e+30
    %vm318 = vcmask 130048
    %v319 = vsel %vm318, %v316, -inf
    %320 = vmax.xlane.f32.xlu0 %v319
    %v321 = vpop.xlane.xlu0 %320
    %v322 = vsel %vm318, %v317, -inf
    %323 = vmax.xlane.f32.xlu0 %v322
    %v324 = vpop.xlane.xlu0 %323
    %v325 = vsub.f32 %v316, %v321
    %v326 = vsub.f32 %v317, %v324
    %v327 = vmul.f32 %v325, 1.442695
    %v328 = vpow.pop %v327
    %v329 = vmul.f32 %v326, 1.442695
    %v330 = vpow.pop %v329
    %v331 = vsel %vm318, %v328, 0.0
    %332 = vadd.xlane.f32.xlu0 %v331
    %v333 = vpop.xlane.xlu0 %332
    %v334 = vsel %vm318, %v330, 0.0
    %335 = vadd.xlane.f32.xlu0 %v334
    %v336 = vpop.xlane.xlu0 %335
    %v337 = vrcp.pop %v333
    %v338 = vrcp.pop %v336
    %v339 = vmul.f32 %v328, %v337
    %v340 = vmul.f32 %v330, %v338
    %341 = vrot.lane.b32.xlu0 %v215, 64
    %v342 = vpop.permute.xlu0 %341
    %343 = vrot.lane.b32.xlu0 %v220, 64
    %v344 = vpop.permute.xlu0 %343
    %v348 = vsel %vm318, %v339, 0
    %v351 = vsel %vm318, %v340, 0
    %353 = vmatprep.subr.mxu0 0.0
    %354 = vmatpush1.msra.mxu0 %v342
    %355 = vmatprep.subr.mxu0 0.0
    %356 = vmatpush1.msra.mxu0 %v344
    %357 = vmatprep.subr.mxu0 0.0
    %358 = vmatpush1.msra.mxu0 0.0
    %359 = vmatprep.subr.mxu0 0.0
    %360 = vmatpush1.msra.mxu0 0.0
    %361 = vmatprep.subr.mxu0 0.0
    %362 = vmatpush1.msra.mxu0 0.0
    %363 = vmatprep.subr.mxu0 0.0
    %364 = vmatpush1.msra.mxu0 0.0
    %365 = vmatprep.subr.mxu0 0.0
    %366 = vmatpush1.msra.mxu0 0.0
    %367 = vmatprep.subr.mxu0 0.0
    %368 = vmatpush1.msra.mxu0 0.0
    %369 = vmatprep.subr.mxu0 0.0
    %370 = vmatpush1.msra.mxu0 0.0
    %371 = vmatprep.subr.mxu0 0.0
    %372 = vmatpush1.msra.mxu0 0.0
    %373 = vmatprep.subr.mxu0 0.0
    %374 = vmatpush1.msra.mxu0 0.0
    %375 = vmatprep.subr.mxu0 0.0
    %376 = vmatpush1.msra.mxu0 0.0
    %377 = vmatprep.subr.mxu0 0.0
    %378 = vmatpush1.msra.mxu0 0.0
    %379 = vmatprep.subr.mxu0 0.0
    %380 = vmatpush1.msra.mxu0 0.0
    %381 = vmatprep.subr.mxu0 0.0
    %382 = vmatpush1.msra.mxu0 0.0
    %383 = vmatprep.subr.mxu0 0.0
    %384 = vmatpush1.msra.mxu0 0.0
    %385 = vmatprep.subr.mxu0 0.0
    %386 = vmatpush1.msra.mxu0 0.0
    %387 = vmatprep.subr.mxu0 0.0
    %388 = vmatpush1.msra.mxu0 0.0
    %389 = vmatprep.subr.mxu0 0.0
    %390 = vmatpush1.msra.mxu0 0.0
    %391 = vmatprep.subr.mxu0 0.0
    %392 = vmatpush1.msra.mxu0 0.0
    %393 = vmatprep.subr.mxu0 0.0
    %394 = vmatpush1.msra.mxu0 0.0
    %395 = vmatprep.subr.mxu0 0.0
    %396 = vmatpush1.msra.mxu0 0.0
    %397 = vmatprep.subr.mxu0 0.0
    %398 = vmatpush1.msra.mxu0 0.0
    %399 = vmatprep.subr.mxu0 0.0
    %400 = vmatpush1.msra.mxu0 0.0
    %401 = vmatprep.subr.mxu0 0.0
    %402 = vmatpush1.msra.mxu0 0.0
    %403 = vmatprep.subr.mxu0 0.0
    %404 = vmatpush1.msra.mxu0 0.0
    %405 = vmatprep.subr.mxu0 0.0
    %406 = vmatpush1.msra.mxu0 0.0
    %407 = vmatprep.subr.mxu0 0.0
    %408 = vmatpush1.msra.mxu0 0.0
    %409 = vmatprep.subr.mxu0 0.0
    %410 = vmatpush1.msra.mxu0 0.0
    %411 = vmatprep.subr.mxu0 0.0
    %412 = vmatpush1.msra.mxu0 0.0
    %413 = vmatprep.subr.mxu0 0.0
    %414 = vmatpush1.msra.mxu0 0.0
    %415 = vmatprep.subr.mxu0 0.0
    %416 = vmatpush1.msra.mxu0 0.0
    %417 = vmatprep.mubr.f32.mxu0 0.0
    %418 = vmatmul.mubr.f32.gmra.mrb[0].mxu0 %v348
    %v419 = vpop.f32.mrb[0].mxu0
    %v420 = vadd.f32 0.0, %v419
    %v421 = vpop.f32.mrb[0].mxu0
    %422 = vmatprep.mubr.f32.mxu0 0.0
    %423 = vmatmul.mubr.f32.gmra.mrb[0].mxu0 %v351
    %v424 = vpop.f32.mrb[0].mxu0
    %v425 = vadd.f32 0.0, %v424
    %v426 = vpop.f32.mrb[0].mxu0
    %427 = vdwg.mxu0
    %v428 = vld [vmem:[%s5] sm:$0xff]
    %v429 = vld [vmem:[%s5 + $0x8] sm:$0xff]
    %v430 = vld [vmem:[%s5 + $0x10] sm:$0xff]
    %v431 = vld [vmem:[%s5 + $0x18] sm:$0xff]
    %v432 = vld [vmem:[%s6] sm:$0x1]
    %v434 = vlaneseq
    %v435 = vshrl.u32 %v434, 7
    %v436 = vsub.s32 0, %v435
    %v437 = vrot.slane %v432, %v436
    %v440 = vsel %vm141, %v420, 0
    %v443 = vsel %vm141, %v425, 0
    %445 = vmatprep.subr.mxu0 0.0
    %446 = vmatpush1.msra.mxu0 %v428
    %447 = vmatprep.subr.mxu0 0.0
    %448 = vmatpush1.msra.mxu0 %v429
    %449 = vmatprep.subr.mxu0 0.0
    %450 = vmatpush1.msra.mxu0 %v430
    %451 = vmatprep.subr.mxu0 0.0
    %452 = vmatpush1.msra.mxu0 %v431
    %453 = vmatprep.subr.mxu0 0.0
    %454 = vmatpush1.msra.mxu0 0.0
    %455 = vmatprep.subr.mxu0 0.0
    %456 = vmatpush1.msra.mxu0 0.0
    %457 = vmatprep.subr.mxu0 0.0
    %458 = vmatpush1.msra.mxu0 0.0
    %459 = vmatprep.subr.mxu0 0.0
    %460 = vmatpush1.msra.mxu0 0.0
    %461 = vmatprep.subr.mxu0 0.0
    %462 = vmatpush1.msra.mxu0 0.0
    %463 = vmatprep.subr.mxu0 0.0
    %464 = vmatpush1.msra.mxu0 0.0
    %465 = vmatprep.subr.mxu0 0.0
    %466 = vmatpush1.msra.mxu0 0.0
    %467 = vmatprep.subr.mxu0 0.0
    %468 = vmatpush1.msra.mxu0 0.0
    %469 = vmatprep.subr.mxu0 0.0
    %470 = vmatpush1.msra.mxu0 0.0
    %471 = vmatprep.subr.mxu0 0.0
    %472 = vmatpush1.msra.mxu0 0.0
    %473 = vmatprep.subr.mxu0 0.0
    %474 = vmatpush1.msra.mxu0 0.0
    %475 = vmatprep.subr.mxu0 0.0
    %476 = vmatpush1.msra.mxu0 0.0
    %477 = vmatprep.subr.mxu0 0.0
    %478 = vmatpush1.msra.mxu0 0.0
    %479 = vmatprep.subr.mxu0 0.0
    %480 = vmatpush1.msra.mxu0 0.0
    %481 = vmatprep.subr.mxu0 0.0
    %482 = vmatpush1.msra.mxu0 0.0
    %483 = vmatprep.subr.mxu0 0.0
    %484 = vmatpush1.msra.mxu0 0.0
    %485 = vmatprep.subr.mxu0 0.0
    %486 = vmatpush1.msra.mxu0 0.0
    %487 = vmatprep.subr.mxu0 0.0
    %488 = vmatpush1.msra.mxu0 0.0
    %489 = vmatprep.subr.mxu0 0.0
    %490 = vmatpush1.msra.mxu0 0.0
    %491 = vmatprep.subr.mxu0 0.0
    %492 = vmatpush1.msra.mxu0 0.0
    %493 = vmatprep.subr.mxu0 0.0
    %494 = vmatpush1.msra.mxu0 0.0
    %495 = vmatprep.subr.mxu0 0.0
    %496 = vmatpush1.msra.mxu0 0.0
    %497 = vmatprep.subr.mxu0 0.0
    %498 = vmatpush1.msra.mxu0 0.0
    %499 = vmatprep.subr.mxu0 0.0
    %500 = vmatpush1.msra.mxu0 0.0
    %501 = vmatprep.subr.mxu0 0.0
    %502 = vmatpush1.msra.mxu0 0.0
    %503 = vmatprep.subr.mxu0 0.0
    %504 = vmatpush1.msra.mxu0 0.0
    %505 = vmatprep.subr.mxu0 0.0
    %506 = vmatpush1.msra.mxu0 0.0
    %507 = vmatprep.subr.mxu0 0.0
    %508 = vmatpush1.msra.mxu0 0.0
    %509 = vmatprep.mubr.f32.mxu0 0.0
    %510 = vmatmul.mubr.f32.gmra.mrb[0].mxu0 %v440
    %v511 = vpop.f32.mrb[0].mxu0
    %v512 = vadd.f32 %v437, %v511
    %v513 = vpop.f32.mrb[0].mxu0
    %514 = vmatprep.mubr.f32.mxu0 0.0
    %515 = vmatmul.mubr.f32.gmra.mrb[0].mxu0 %v443
    %v516 = vpop.f32.mrb[0].mxu0
    %v517 = vadd.f32 %v437, %v516
    %v518 = vpop.f32.mrb[0].mxu0
    %519 = vdwg.mxu0
    %v520 = vadd.f32 %v85, %v512
    %v521 = vadd.f32 %v86, %v517
    %v522 = vld [vmem:[%s11] sm:$0x1]
    %v523 = vld [vmem:[%s12] sm:$0x1]
    %v524 = vsel %vm141, %v520, 0.0
    %525 = vadd.xlane.f32.xlu0 %v524
    %v526 = vpop.xlane.xlu0 %525
    %v527 = vsel %vm141, %v521, 0.0
    %528 = vadd.xlane.f32.xlu0 %v527
    %v529 = vpop.xlane.xlu0 %528
    %v530 = vrcp.pop 32.0
    %v531 = vmul.f32 %v526, %v530
    %v532 = vmul.f32 %v529, %v530
    %v533 = vsub.f32 %v520, %v531
    %v534 = vsub.f32 %v521, %v532
    %v535 = vmul.f32 %v533, %v533
    %v536 = vmul.f32 %v534, %v534
    %v537 = vsel %vm141, %v535, 0.0
    %538 = vadd.xlane.f32.xlu0 %v537
    %v539 = vpop.xlane.xlu0 %538
    %v540 = vsel %vm141, %v536, 0.0
    %541 = vadd.xlane.f32.xlu0 %v540
    %v542 = vpop.xlane.xlu0 %541
    %v543 = vmul.f32 %v539, %v530
    %v544 = vmul.f32 %v542, %v530
    %v545 = vadd.f32 %v543, 1e-05
    %v546 = vadd.f32 %v544, 1e-05
    %v547 = vrsqrt.pop %v545
    %v548 = vrsqrt.pop %v546
    %v549 = vmul.f32 %v533, %v547
    %v550 = vmul.f32 %v534, %v548
    %v552 = vlaneseq
    %v553 = vshrl.u32 %v552, 7
    %v554 = vsub.s32 0, %v553
    %v555 = vrot.slane %v522, %v554
    %v557 = vmul.f32 %v549, %v555
    %v558 = vmul.f32 %v550, %v555
    %v560 = vlaneseq
    %v561 = vshrl.u32 %v560, 7
    %v562 = vsub.s32 0, %v561
    %v563 = vrot.slane %v523, %v562
    %v565 = vadd.f32 %v557, %v563
    %v566 = vadd.f32 %v558, %v563
    %v567 = vld [vmem:[%s7] sm:$0xff]
    %v568 = vld [vmem:[%s7 + $0x8] sm:$0xff]
    %v569 = vld [vmem:[%s7 + $0x10] sm:$0xff]
    %v570 = vld [vmem:[%s7 + $0x18] sm:$0xff]
    %v571 = vld [vmem:[%s7 + $0x20] sm:$0xff]
    %v572 = vld [vmem:[%s7 + $0x28] sm:$0xff]
    %v573 = vld [vmem:[%s7 + $0x30] sm:$0xff]
    %v574 = vld [vmem:[%s7 + $0x38] sm:$0xff]
    %v575 = vld [vmem:[%s7 + $0x40] sm:$0xff]
    %v576 = vld [vmem:[%s7 + $0x48] sm:$0xff]
    %v577 = vld [vmem:[%s7 + $0x50] sm:$0xff]
    %v578 = vld [vmem:[%s7 + $0x58] sm:$0xff]
    %v579 = vld [vmem:[%s7 + $0x60] sm:$0xff]
    %v580 = vld [vmem:[%s7 + $0x68] sm:$0xff]
    %v581 = vld [vmem:[%s7 + $0x70] sm:$0xff]
    %v582 = vld [vmem:[%s7 + $0x78] sm:$0xff]
    %v583 = vld [vmem:[%s7 + $0x80] sm:$0xff]
    %v584 = vld [vmem:[%s7 + $0x88] sm:$0xff]
    %v585 = vld [vmem:[%s7 + $0x90] sm:$0xff]
    %v586 = vld [vmem:[%s7 + $0x98] sm:$0xff]
    %v587 = vld [vmem:[%s7 + $0xa0] sm:$0xff]
    %v588 = vld [vmem:[%s7 + $0xa8] sm:$0xff]
    %v589 = vld [vmem:[%s7 + $0xb0] sm:$0xff]
    %v590 = vld [vmem:[%s7 + $0xb8] sm:$0xff]
    %v591 = vld [vmem:[%s7 + $0xc0] sm:$0xff]
    %v592 = vld [vmem:[%s7 + $0xc8] sm:$0xff]
    %v593 = vld [vmem:[%s7 + $0xd0] sm:$0xff]
    %v594 = vld [vmem:[%s7 + $0xd8] sm:$0xff]
    %v595 = vld [vmem:[%s7 + $0xe0] sm:$0xff]
    %v596 = vld [vmem:[%s7 + $0xe8] sm:$0xff]
    %v597 = vld [vmem:[%s7 + $0xf0] sm:$0xff]
    %v598 = vld [vmem:[%s7 + $0xf8] sm:$0xff]
    %v599 = vld [vmem:[%s7 + $0x100] sm:$0xff]
    %v600 = vld [vmem:[%s7 + $0x108] sm:$0xff]
    %v601 = vld [vmem:[%s7 + $0x110] sm:$0xff]
    %v602 = vld [vmem:[%s7 + $0x118] sm:$0xff]
    %v603 = vld [vmem:[%s7 + $0x120] sm:$0xff]
    %v604 = vld [vmem:[%s7 + $0x128] sm:$0xff]
    %v605 = vld [vmem:[%s7 + $0x130] sm:$0xff]
    %v606 = vld [vmem:[%s7 + $0x138] sm:$0xff]
    %v607 = vld [vmem:[%s7 + $0x140] sm:$0xff]
    %v608 = vld [vmem:[%s7 + $0x148] sm:$0xff]
    %v609 = vld [vmem:[%s7 + $0x150] sm:$0xff]
    %v610 = vld [vmem:[%s7 + $0x158] sm:$0xff]
    %v611 = vld [vmem:[%s7 + $0x160] sm:$0xff]
    %v612 = vld [vmem:[%s7 + $0x168] sm:$0xff]
    %v613 = vld [vmem:[%s7 + $0x170] sm:$0xff]
    %v614 = vld [vmem:[%s7 + $0x178] sm:$0xff]
    %v615 = vld [vmem:[%s7 + $0x180] sm:$0xff]
    %v616 = vld [vmem:[%s7 + $0x188] sm:$0xff]
    %v617 = vld [vmem:[%s7 + $0x190] sm:$0xff]
    %v618 = vld [vmem:[%s7 + $0x198] sm:$0xff]
    %v619 = vld [vmem:[%s7 + $0x1a0] sm:$0xff]
    %v620 = vld [vmem:[%s7 + $0x1a8] sm:$0xff]
    %v621 = vld [vmem:[%s7 + $0x1b0] sm:$0xff]
    %v622 = vld [vmem:[%s7 + $0x1b8] sm:$0xff]
    %v623 = vld [vmem:[%s7 + $0x1c0] sm:$0xff]
    %v624 = vld [vmem:[%s7 + $0x1c8] sm:$0xff]
    %v625 = vld [vmem:[%s7 + $0x1d0] sm:$0xff]
    %v626 = vld [vmem:[%s7 + $0x1d8] sm:$0xff]
    %v627 = vld [vmem:[%s7 + $0x1e0] sm:$0xff]
    %v628 = vld [vmem:[%s7 + $0x1e8] sm:$0xff]
    %v629 = vld [vmem:[%s7 + $0x1f0] sm:$0xff]
    %v630 = vld [vmem:[%s7 + $0x1f8] sm:$0xff]
    %v631 = vld [vmem:[%s8] sm:$0xff]
    %v632 = vld [vmem:[%s8 + $0x8] sm:$0xff]
    %v635 = vlaneseq
    %v636 = vshrl.u32 %v635, 7
    %v637 = vsub.s32 0, %v636
    %v638 = vrot.slane %v631, %v637
    %v639 = vlaneseq
    %v640 = vshrl.u32 %v639, 7
    %v641 = vsub.s32 1, %v640
    %v642 = vrot.slane %v631, %v641
    %v643 = vlaneseq
    %v644 = vshrl.u32 %v643, 7
    %v645 = vsub.s32 2, %v644
    %v646 = vrot.slane %v631, %v645
    %v647 = vlaneseq
    %v648 = vshrl.u32 %v647, 7
    %v649 = vsub.s32 3, %v648
    %v650 = vrot.slane %v631, %v649
    %v651 = vlaneseq
    %v652 = vshrl.u32 %v651, 7
    %v653 = vsub.s32 4, %v652
    %v654 = vrot.slane %v631, %v653
    %v655 = vlaneseq
    %v656 = vshrl.u32 %v655, 7
    %v657 = vsub.s32 5, %v656
    %v658 = vrot.slane %v631, %v657
    %v659 = vlaneseq
    %v660 = vshrl.u32 %v659, 7
    %v661 = vsub.s32 6, %v660
    %v662 = vrot.slane %v631, %v661
    %v663 = vlaneseq
    %v664 = vshrl.u32 %v663, 7
    %v665 = vsub.s32 7, %v664
    %v666 = vrot.slane %v631, %v665
    %v667 = vlaneseq
    %v668 = vshrl.u32 %v667, 7
    %v669 = vsub.s32 0, %v668
    %v670 = vrot.slane %v632, %v669
    %v671 = vlaneseq
    %v672 = vshrl.u32 %v671, 7
    %v673 = vsub.s32 1, %v672
    %v674 = vrot.slane %v632, %v673
    %v675 = vlaneseq
    %v676 = vshrl.u32 %v675, 7
    %v677 = vsub.s32 2, %v676
    %v678 = vrot.slane %v632, %v677
    %v679 = vlaneseq
    %v680 = vshrl.u32 %v679, 7
    %v681 = vsub.s32 3, %v680
    %v682 = vrot.slane %v632, %v681
    %v683 = vlaneseq
    %v684 = vshrl.u32 %v683, 7
    %v685 = vsub.s32 4, %v684
    %v686 = vrot.slane %v632, %v685
    %v687 = vlaneseq
    %v688 = vshrl.u32 %v687, 7
    %v689 = vsub.s32 5, %v688
    %v690 = vrot.slane %v632, %v689
    %v691 = vlaneseq
    %v692 = vshrl.u32 %v691, 7
    %v693 = vsub.s32 6, %v692
    %v694 = vrot.slane %v632, %v693
    %v695 = vlaneseq
    %v696 = vshrl.u32 %v695, 7
    %v697 = vsub.s32 7, %v696
    %v698 = vrot.slane %v632, %v697
    %v716 = vsel %vm141, %v565, 0
    %v719 = vsel %vm141, %v566, 0
    %721 = vmatprep.subr.mxu0 %v568
    %722 = vmatpush1.msra.mxu0 %v567
    %723 = vmatprep.subr.mxu0 %v584
    %724 = vmatpush1.msra.mxu0 %v583
    %725 = vmatprep.subr.mxu0 %v600
    %726 = vmatpush1.msra.mxu0 %v599
    %727 = vmatprep.subr.mxu0 %v616
    %728 = vmatpush1.msra.mxu0 %v615
    %729 = vmatprep.subr.mxu0 0.0
    %730 = vmatpush1.msra.mxu0 0.0
    %731 = vmatprep.subr.mxu0 0.0
    %732 = vmatpush1.msra.mxu0 0.0
    %733 = vmatprep.subr.mxu0 0.0
    %734 = vmatpush1.msra.mxu0 0.0
    %735 = vmatprep.subr.mxu0 0.0
    %736 = vmatpush1.msra.mxu0 0.0
    %737 = vmatprep.subr.mxu0 0.0
    %738 = vmatpush1.msra.mxu0 0.0
    %739 = vmatprep.subr.mxu0 0.0
    %740 = vmatpush1.msra.mxu0 0.0
    %741 = vmatprep.subr.mxu0 0.0
    %742 = vmatpush1.msra.mxu0 0.0
    %743 = vmatprep.subr.mxu0 0.0
    %744 = vmatpush1.msra.mxu0 0.0
    %745 = vmatprep.subr.mxu0 0.0
    %746 = vmatpush1.msra.mxu0 0.0
    %747 = vmatprep.subr.mxu0 0.0
    %748 = vmatpush1.msra.mxu0 0.0
    %749 = vmatprep.subr.mxu0 0.0
    %750 = vmatpush1.msra.mxu0 0.0
    %751 = vmatprep.subr.mxu0 0.0
    %752 = vmatpush1.msra.mxu0 0.0
    %753 = vmatprep.subr.mxu0 0.0
    %754 = vmatpush1.msra.mxu0 0.0
    %755 = vmatprep.subr.mxu0 0.0
    %756 = vmatpush1.msra.mxu0 0.0
    %757 = vmatprep.subr.mxu0 0.0
    %758 = vmatpush1.msra.mxu0 0.0
    %759 = vmatprep.subr.mxu0 0.0
    %760 = vmatpush1.msra.mxu0 0.0
    %761 = vmatprep.subr.mxu0 0.0
    %762 = vmatpush1.msra.mxu0 0.0
    %763 = vmatprep.subr.mxu0 0.0
    %764 = vmatpush1.msra.mxu0 0.0
    %765 = vmatprep.subr.mxu0 0.0
    %766 = vmatpush1.msra.mxu0 0.0
    %767 = vmatprep.subr.mxu0 0.0
    %768 = vmatpush1.msra.mxu0 0.0
    %769 = vmatprep.subr.mxu0 0.0
    %770 = vmatpush1.msra.mxu0 0.0
    %771 = vmatprep.subr.mxu0 0.0
    %772 = vmatpush1.msra.mxu0 0.0
    %773 = vmatprep.subr.mxu0 0.0
    %774 = vmatpush1.msra.mxu0 0.0
    %775 = vmatprep.subr.mxu0 0.0
    %776 = vmatpush1.msra.mxu0 0.0
    %777 = vmatprep.subr.mxu0 0.0
    %778 = vmatpush1.msra.mxu0 0.0
    %779 = vmatprep.subr.mxu0 0.0
    %780 = vmatpush1.msra.mxu0 0.0
    %781 = vmatprep.subr.mxu0 0.0
    %782 = vmatpush1.msra.mxu0 0.0
    %783 = vmatprep.subr.mxu0 0.0
    %784 = vmatpush1.msra.mxu0 0.0
    %785 = vmatprep.mubr.f32.mxu0 0.0
    %786 = vmatmul.mubr.f32.gmra.mrb[0].mxu0 %v716
    %v787 = vpop.f32.mrb[0].mxu0
    %v788 = vadd.f32 %v638, %v787
    %v789 = vpop.f32.mrb[0].mxu0
    %v790 = vadd.f32 %v642, %v789
    %791 = vmatprep.mubr.f32.mxu0 0.0
    %792 = vmatmul.mubr.f32.gmra.mrb[0].mxu0 %v719
    %v793 = vpop.f32.mrb[0].mxu0
    %v794 = vadd.f32 %v638, %v793
    %v795 = vpop.f32.mrb[0].mxu0
    %v796 = vadd.f32 %v642, %v795
    %797 = vdwg.mxu0
    %798 = vmatprep.subr.mxu0 %v570
    %799 = vmatpush1.msra.mxu0 %v569
    %800 = vmatprep.subr.mxu0 %v586
    %801 = vmatpush1.msra.mxu0 %v585
    %802 = vmatprep.subr.mxu0 %v602
    %803 = vmatpush1.msra.mxu0 %v601
    %804 = vmatprep.subr.mxu0 %v618
    %805 = vmatpush1.msra.mxu0 %v617
    %806 = vmatprep.subr.mxu0 0.0
    %807 = vmatpush1.msra.mxu0 0.0
    %808 = vmatprep.subr.mxu0 0.0
    %809 = vmatpush1.msra.mxu0 0.0
    %810 = vmatprep.subr.mxu0 0.0
    %811 = vmatpush1.msra.mxu0 0.0
    %812 = vmatprep.subr.mxu0 0.0
    %813 = vmatpush1.msra.mxu0 0.0
    %814 = vmatprep.subr.mxu0 0.0
    %815 = vmatpush1.msra.mxu0 0.0
    %816 = vmatprep.subr.mxu0 0.0
    %817 = vmatpush1.msra.mxu0 0.0
    %818 = vmatprep.subr.mxu0 0.0
    %819 = vmatpush1.msra.mxu0 0.0
    %820 = vmatprep.subr.mxu0 0.0
    %821 = vmatpush1.msra.mxu0 0.0
    %822 = vmatprep.subr.mxu0 0.0
    %823 = vmatpush1.msra.mxu0 0.0
    %824 = vmatprep.subr.mxu0 0.0
    %825 = vmatpush1.msra.mxu0 0.0
    %826 = vmatprep.subr.mxu0 0.0
    %827 = vmatpush1.msra.mxu0 0.0
    %828 = vmatprep.subr.mxu0 0.0
    %829 = vmatpush1.msra.mxu0 0.0
    %830 = vmatprep.subr.mxu0 0.0
    %831 = vmatpush1.msra.mxu0 0.0
    %832 = vmatprep.subr.mxu0 0.0
    %833 = vmatpush1.msra.mxu0 0.0
    %834 = vmatprep.subr.mxu0 0.0
    %835 = vmatpush1.msra.mxu0 0.0
    %836 = vmatprep.subr.mxu0 0.0
    %837 = vmatpush1.msra.mxu0 0.0
    %838 = vmatprep.subr.mxu0 0.0
    %839 = vmatpush1.msra.mxu0 0.0
    %840 = vmatprep.subr.mxu0 0.0
    %841 = vmatpush1.msra.mxu0 0.0
    %842 = vmatprep.subr.mxu0 0.0
    %843 = vmatpush1.msra.mxu0 0.0
    %844 = vmatprep.subr.mxu0 0.0
    %845 = vmatpush1.msra.mxu0 0.0
    %846 = vmatprep.subr.mxu0 0.0
    %847 = vmatpush1.msra.mxu0 0.0
    %848 = vmatprep.subr.mxu0 0.0
    %849 = vmatpush1.msra.mxu0 0.0
    %850 = vmatprep.subr.mxu0 0.0
    %851 = vmatpush1.msra.mxu0 0.0
    %852 = vmatprep.subr.mxu0 0.0
    %853 = vmatpush1.msra.mxu0 0.0
    %854 = vmatprep.subr.mxu0 0.0
    %855 = vmatpush1.msra.mxu0 0.0
    %856 = vmatprep.subr.mxu0 0.0
    %857 = vmatpush1.msra.mxu0 0.0
    %858 = vmatprep.subr.mxu0 0.0
    %859 = vmatpush1.msra.mxu0 0.0
    %860 = vmatprep.subr.mxu0 0.0
    %861 = vmatpush1.msra.mxu0 0.0
    %862 = vmatprep.mubr.f32.mxu0 0.0
    %863 = vmatmul.mubr.f32.gmra.mrb[0].mxu0 %v716
    %v864 = vpop.f32.mrb[0].mxu0
    %v865 = vadd.f32 %v646, %v864
    %v866 = vpop.f32.mrb[0].mxu0
    %v867 = vadd.f32 %v650, %v866
    %868 = vmatprep.mubr.f32.mxu0 0.0
    %869 = vmatmul.mubr.f32.gmra.mrb[0].mxu0 %v719
    %v870 = vpop.f32.mrb[0].mxu0
    %v871 = vadd.f32 %v646, %v870
    %v872 = vpop.f32.mrb[0].mxu0
    %v873 = vadd.f32 %v650, %v872
    %874 = vdwg.mxu0
    %875 = vmatprep.subr.mxu0 %v572
    %876 = vmatpush1.msra.mxu0 %v571
    %877 = vmatprep.subr.mxu0 %v588
    %878 = vmatpush1.msra.mxu0 %v587
    %879 = vmatprep.subr.mxu0 %v604
    %880 = vmatpush1.msra.mxu0 %v603
    %881 = vmatprep.subr.mxu0 %v620
    %882 = vmatpush1.msra.mxu0 %v619
    %883 = vmatprep.subr.mxu0 0.0
    %884 = vmatpush1.msra.mxu0 0.0
    %885 = vmatprep.subr.mxu0 0.0
    %886 = vmatpush1.msra.mxu0 0.0
    %887 = vmatprep.subr.mxu0 0.0
    %888 = vmatpush1.msra.mxu0 0.0
    %889 = vmatprep.subr.mxu0 0.0
    %890 = vmatpush1.msra.mxu0 0.0
    %891 = vmatprep.subr.mxu0 0.0
    %892 = vmatpush1.msra.mxu0 0.0
    %893 = vmatprep.subr.mxu0 0.0
    %894 = vmatpush1.msra.mxu0 0.0
    %895 = vmatprep.subr.mxu0 0.0
    %896 = vmatpush1.msra.mxu0 0.0
    %897 = vmatprep.subr.mxu0 0.0
    %898 = vmatpush1.msra.mxu0 0.0
    %899 = vmatprep.subr.mxu0 0.0
    %900 = vmatpush1.msra.mxu0 0.0
    %901 = vmatprep.subr.mxu0 0.0
    %902 = vmatpush1.msra.mxu0 0.0
    %903 = vmatprep.subr.mxu0 0.0
    %904 = vmatpush1.msra.mxu0 0.0
    %905 = vmatprep.subr.mxu0 0.0
    %906 = vmatpush1.msra.mxu0 0.0
    %907 = vmatprep.subr.mxu0 0.0
    %908 = vmatpush1.msra.mxu0 0.0
    %909 = vmatprep.subr.mxu0 0.0
    %910 = vmatpush1.msra.mxu0 0.0
    %911 = vmatprep.subr.mxu0 0.0
    %912 = vmatpush1.msra.mxu0 0.0
    %913 = vmatprep.subr.mxu0 0.0
    %914 = vmatpush1.msra.mxu0 0.0
    %915 = vmatprep.subr.mxu0 0.0
    %916 = vmatpush1.msra.mxu0 0.0
    %917 = vmatprep.subr.mxu0 0.0
    %918 = vmatpush1.msra.mxu0 0.0
    %919 = vmatprep.subr.mxu0 0.0
    %920 = vmatpush1.msra.mxu0 0.0
    %921 = vmatprep.subr.mxu0 0.0
    %922 = vmatpush1.msra.mxu0 0.0
    %923 = vmatprep.subr.mxu0 0.0
    %924 = vmatpush1.msra.mxu0 0.0
    %925 = vmatprep.subr.mxu0 0.0
    %926 = vmatpush1.msra.mxu0 0.0
    %927 = vmatprep.subr.mxu0 0.0
    %928 = vmatpush1.msra.mxu0 0.0
    %929 = vmatprep.subr.mxu0 0.0
    %930 = vmatpush1.msra.mxu0 0.0
    %931 = vmatprep.subr.mxu0 0.0
    %932 = vmatpush1.msra.mxu0 0.0
    %933 = vmatprep.subr.mxu0 0.0
    %934 = vmatpush1.msra.mxu0 0.0
    %935 = vmatprep.subr.mxu0 0.0
    %936 = vmatpush1.msra.mxu0 0.0
    %937 = vmatprep.subr.mxu0 0.0
    %938 = vmatpush1.msra.mxu0 0.0
    %939 = vmatprep.mubr.f32.mxu0 0.0
    %940 = vmatmul.mubr.f32.gmra.mrb[0].mxu0 %v716
    %v941 = vpop.f32.mrb[0].mxu0
    %v942 = vadd.f32 %v654, %v941
    %v943 = vpop.f32.mrb[0].mxu0
    %v944 = vadd.f32 %v658, %v943
    %945 = vmatprep.mubr.f32.mxu0 0.0
    %946 = vmatmul.mubr.f32.gmra.mrb[0].mxu0 %v719
    %v947 = vpop.f32.mrb[0].mxu0
    %v948 = vadd.f32 %v654, %v947
    %v949 = vpop.f32.mrb[0].mxu0
    %v950 = vadd.f32 %v658, %v949
    %951 = vdwg.mxu0
    %952 = vmatprep.subr.mxu0 %v574
    %953 = vmatpush1.msra.mxu0 %v573
    %954 = vmatprep.subr.mxu0 %v590
    %955 = vmatpush1.msra.mxu0 %v589
    %956 = vmatprep.subr.mxu0 %v606
    %957 = vmatpush1.msra.mxu0 %v605
    %958 = vmatprep.subr.mxu0 %v622
    %959 = vmatpush1.msra.mxu0 %v621
    %960 = vmatprep.subr.mxu0 0.0
    %961 = vmatpush1.msra.mxu0 0.0
    %962 = vmatprep.subr.mxu0 0.0
    %963 = vmatpush1.msra.mxu0 0.0
    %964 = vmatprep.subr.mxu0 0.0
    %965 = vmatpush1.msra.mxu0 0.0
    %966 = vmatprep.subr.mxu0 0.0
    %967 = vmatpush1.msra.mxu0 0.0
    %968 = vmatprep.subr.mxu0 0.0
    %969 = vmatpush1.msra.mxu0 0.0
    %970 = vmatprep.subr.mxu0 0.0
    %971 = vmatpush1.msra.mxu0 0.0
    %972 = vmatprep.subr.mxu0 0.0
    %973 = vmatpush1.msra.mxu0 0.0
    %974 = vmatprep.subr.mxu0 0.0
    %975 = vmatpush1.msra.mxu0 0.0
    %976 = vmatprep.subr.mxu0 0.0
    %977 = vmatpush1.msra.mxu0 0.0
    %978 = vmatprep.subr.mxu0 0.0
    %979 = vmatpush1.msra.mxu0 0.0
    %980 = vmatprep.subr.mxu0 0.0
    %981 = vmatpush1.msra.mxu0 0.0
    %982 = vmatprep.subr.mxu0 0.0
    %983 = vmatpush1.msra.mxu0 0.0
    %984 = vmatprep.subr.mxu0 0.0
    %985 = vmatpush1.msra.mxu0 0.0
    %986 = vmatprep.subr.mxu0 0.0
    %987 = vmatpush1.msra.mxu0 0.0
    %988 = vmatprep.subr.mxu0 0.0
    %989 = vmatpush1.msra.mxu0 0.0
    %990 = vmatprep.subr.mxu0 0.0
    %991 = vmatpush1.msra.mxu0 0.0
    %992 = vmatprep.subr.mxu0 0.0
    %993 = vmatpush1.msra.mxu0 0.0
    %994 = vmatprep.subr.mxu0 0.0
    %995 = vmatpush1.msra.mxu0 0.0
    %996 = vmatprep.subr.mxu0 0.0
    %997 = vmatpush1.msra.mxu0 0.0
    %998 = vmatprep.subr.mxu0 0.0
    %999 = vmatpush1.msra.mxu0 0.0
    %1000 = vmatprep.subr.mxu0 0.0
    %1001 = vmatpush1.msra.mxu0 0.0
    %1002 = vmatprep.subr.mxu0 0.0
    %1003 = vmatpush1.msra.mxu0 0.0
    %1004 = vmatprep.subr.mxu0 0.0
    %1005 = vmatpush1.msra.mxu0 0.0
    %1006 = vmatprep.subr.mxu0 0.0
    %1007 = vmatpush1.msra.mxu0 0.0
    %1008 = vmatprep.subr.mxu0 0.0
    %1009 = vmatpush1.msra.mxu0 0.0
    %1010 = vmatprep.subr.mxu0 0.0
    %1011 = vmatpush1.msra.mxu0 0.0
    %1012 = vmatprep.subr.mxu0 0.0
    %1013 = vmatpush1.msra.mxu0 0.0
    %1014 = vmatprep.subr.mxu0 0.0
    %1015 = vmatpush1.msra.mxu0 0.0
    %1016 = vmatprep.mubr.f32.mxu0 0.0
    %1017 = vmatmul.mubr.f32.gmra.mrb[0].mxu0 %v716
    %v1018 = vpop.f32.mrb[0].mxu0
    %v1019 = vadd.f32 %v662, %v1018
    %v1020 = vpop.f32.mrb[0].mxu0
    %v1021 = vadd.f32 %v666, %v1020
    %1022 = vmatprep.mubr.f32.mxu0 0.0
    %1023 = vmatmul.mubr.f32.gmra.mrb[0].mxu0 %v719
    %v1024 = vpop.f32.mrb[0].mxu0
    %v1025 = vadd.f32 %v662, %v1024
    %v1026 = vpop.f32.mrb[0].mxu0
    %v1027 = vadd.f32 %v666, %v1026
    %1028 = vdwg.mxu0
    %1029 = vmatprep.subr.mxu0 %v576
    %1030 = vmatpush1.msra.mxu0 %v575
    %1031 = vmatprep.subr.mxu0 %v592
    %1032 = vmatpush1.msra.mxu0 %v591
    %1033 = vmatprep.subr.mxu0 %v608
    %1034 = vmatpush1.msra.mxu0 %v607
    %1035 = vmatprep.subr.mxu0 %v624
    %1036 = vmatpush1.msra.mxu0 %v623
    %1037 = vmatprep.subr.mxu0 0.0
    %1038 = vmatpush1.msra.mxu0 0.0
    %1039 = vmatprep.subr.mxu0 0.0
    %1040 = vmatpush1.msra.mxu0 0.0
    %1041 = vmatprep.subr.mxu0 0.0
    %1042 = vmatpush1.msra.mxu0 0.0
    %1043 = vmatprep.subr.mxu0 0.0
    %1044 = vmatpush1.msra.mxu0 0.0
    %1045 = vmatprep.subr.mxu0 0.0
    %1046 = vmatpush1.msra.mxu0 0.0
    %1047 = vmatprep.subr.mxu0 0.0
    %1048 = vmatpush1.msra.mxu0 0.0
    %1049 = vmatprep.subr.mxu0 0.0
    %1050 = vmatpush1.msra.mxu0 0.0
    %1051 = vmatprep.subr.mxu0 0.0
    %1052 = vmatpush1.msra.mxu0 0.0
    %1053 = vmatprep.subr.mxu0 0.0
    %1054 = vmatpush1.msra.mxu0 0.0
    %1055 = vmatprep.subr.mxu0 0.0
    %1056 = vmatpush1.msra.mxu0 0.0
    %1057 = vmatprep.subr.mxu0 0.0
    %1058 = vmatpush1.msra.mxu0 0.0
    %1059 = vmatprep.subr.mxu0 0.0
    %1060 = vmatpush1.msra.mxu0 0.0
    %1061 = vmatprep.subr.mxu0 0.0
    %1062 = vmatpush1.msra.mxu0 0.0
    %1063 = vmatprep.subr.mxu0 0.0
    %1064 = vmatpush1.msra.mxu0 0.0
    %1065 = vmatprep.subr.mxu0 0.0
    %1066 = vmatpush1.msra.mxu0 0.0
    %1067 = vmatprep.subr.mxu0 0.0
    %1068 = vmatpush1.msra.mxu0 0.0
    %1069 = vmatprep.subr.mxu0 0.0
    %1070 = vmatpush1.msra.mxu0 0.0
    %1071 = vmatprep.subr.mxu0 0.0
    %1072 = vmatpush1.msra.mxu0 0.0
    %1073 = vmatprep.subr.mxu0 0.0
    %1074 = vmatpush1.msra.mxu0 0.0
    %1075 = vmatprep.subr.mxu0 0.0
    %1076 = vmatpush1.msra.mxu0 0.0
    %1077 = vmatprep.subr.mxu0 0.0
    %1078 = vmatpush1.msra.mxu0 0.0
    %1079 = vmatprep.subr.mxu0 0.0
    %1080 = vmatpush1.msra.mxu0 0.0
    %1081 = vmatprep.subr.mxu0 0.0
    %1082 = vmatpush1.msra.mxu0 0.0
    %1083 = vmatprep.subr.mxu0 0.0
    %1084 = vmatpush1.msra.mxu0 0.0
    %1085 = vmatprep.subr.mxu0 0.0
    %1086 = vmatpush1.msra.mxu0 0.0
    %1087 = vmatprep.subr.mxu0 0.0
    %1088 = vmatpush1.msra.mxu0 0.0
    %1089 = vmatprep.subr.mxu0 0.0
    %1090 = vmatpush1.msra.mxu0 0.0
    %1091 = vmatprep.subr.mxu0 0.0
    %1092 = vmatpush1.msra.mxu0 0.0
    %1093 = vmatprep.mubr.f32.mxu0 0.0
    %1094 = vmatmul.mubr.f32.gmra.mrb[0].mxu0 %v716
    %v1095 = vpop.f32.mrb[0].mxu0
    %v1096 = vadd.f32 %v670, %v1095
    %v1097 = vpop.f32.mrb[0].mxu0
    %v1098 = vadd.f32 %v674, %v1097
    %1099 = vmatprep.mubr.f32.mxu0 0.0
    %1100 = vmatmul.mubr.f32.gmra.mrb[0].mxu0 %v719
    %v1101 = vpop.f32.mrb[0].mxu0
    %v1102 = vadd.f32 %v670, %v1101
    %v1103 = vpop.f32.mrb[0].mxu0
    %v1104 = vadd.f32 %v674, %v1103
    %1105 = vdwg.mxu0
    %1106 = vmatprep.subr.mxu0 %v578
    %1107 = vmatpush1.msra.mxu0 %v577
    %1108 = vmatprep.subr.mxu0 %v594
    %1109 = vmatpush1.msra.mxu0 %v593
    %1110 = vmatprep.subr.mxu0 %v610
    %1111 = vmatpush1.msra.mxu0 %v609
    %1112 = vmatprep.subr.mxu0 %v626
    %1113 = vmatpush1.msra.mxu0 %v625
    %1114 = vmatprep.subr.mxu0 0.0
    %1115 = vmatpush1.msra.mxu0 0.0
    %1116 = vmatprep.subr.mxu0 0.0
    %1117 = vmatpush1.msra.mxu0 0.0
    %1118 = vmatprep.subr.mxu0 0.0
    %1119 = vmatpush1.msra.mxu0 0.0
    %1120 = vmatprep.subr.mxu0 0.0
    %1121 = vmatpush1.msra.mxu0 0.0
    %1122 = vmatprep.subr.mxu0 0.0
    %1123 = vmatpush1.msra.mxu0 0.0
    %1124 = vmatprep.subr.mxu0 0.0
    %1125 = vmatpush1.msra.mxu0 0.0
    %1126 = vmatprep.subr.mxu0 0.0
    %1127 = vmatpush1.msra.mxu0 0.0
    %1128 = vmatprep.subr.mxu0 0.0
    %1129 = vmatpush1.msra.mxu0 0.0
    %1130 = vmatprep.subr.mxu0 0.0
    %1131 = vmatpush1.msra.mxu0 0.0
    %1132 = vmatprep.subr.mxu0 0.0
    %1133 = vmatpush1.msra.mxu0 0.0
    %1134 = vmatprep.subr.mxu0 0.0
    %1135 = vmatpush1.msra.mxu0 0.0
    %1136 = vmatprep.subr.mxu0 0.0
    %1137 = vmatpush1.msra.mxu0 0.0
    %1138 = vmatprep.subr.mxu0 0.0
    %1139 = vmatpush1.msra.mxu0 0.0
    %1140 = vmatprep.subr.mxu0 0.0
    %1141 = vmatpush1.msra.mxu0 0.0
    %1142 = vmatprep.subr.mxu0 0.0
    %1143 = vmatpush1.msra.mxu0 0.0
    %1144 = vmatprep.subr.mxu0 0.0
    %1145 = vmatpush1.msra.mxu0 0.0
    %1146 = vmatprep.subr.mxu0 0.0
    %1147 = vmatpush1.msra.mxu0 0.0
    %1148 = vmatprep.subr.mxu0 0.0
    %1149 = vmatpush1.msra.mxu0 0.0
    %1150 = vmatprep.subr.mxu0 0.0
    %1151 = vmatpush1.msra.mxu0 0.0
    %1152 = vmatprep.subr.mxu0 0.0
    %1153 = vmatpush1.msra.mxu0 0.0
    %1154 = vmatprep.subr.mxu0 0.0
    %1155 = vmatpush1.msra.mxu0 0.0
    %1156 = vmatprep.subr.mxu0 0.0
    %1157 = vmatpush1.msra.mxu0 0.0
    %1158 = vmatprep.subr.mxu0 0.0
    %1159 = vmatpush1.msra.mxu0 0.0
    %1160 = vmatprep.subr.mxu0 0.0
    %1161 = vmatpush1.msra.mxu0 0.0
    %1162 = vmatprep.subr.mxu0 0.0
    %1163 = vmatpush1.msra.mxu0 0.0
    %1164 = vmatprep.subr.mxu0 0.0
    %1165 = vmatpush1.msra.mxu0 0.0
    %1166 = vmatprep.subr.mxu0 0.0
    %1167 = vmatpush1.msra.mxu0 0.0
    %1168 = vmatprep.subr.mxu0 0.0
    %1169 = vmatpush1.msra.mxu0 0.0
    %1170 = vmatprep.mubr.f32.mxu0 0.0
    %1171 = vmatmul.mubr.f32.gmra.mrb[0].mxu0 %v716
    %v1172 = vpop.f32.mrb[0].mxu0
    %v1173 = vadd.f32 %v678, %v1172
    %v1174 = vpop.f32.mrb[0].mxu0
    %v1175 = vadd.f32 %v682, %v1174
    %1176 = vmatprep.mubr.f32.mxu0 0.0
    %1177 = vmatmul.mubr.f32.gmra.mrb[0].mxu0 %v719
    %v1178 = vpop.f32.mrb[0].mxu0
    %v1179 = vadd.f32 %v678, %v1178
    %v1180 = vpop.f32.mrb[0].mxu0
    %v1181 = vadd.f32 %v682, %v1180
    %1182 = vdwg.mxu0
    %1183 = vmatprep.subr.mxu0 %v580
    %1184 = vmatpush1.msra.mxu0 %v579
    %1185 = vmatprep.subr.mxu0 %v596
    %1186 = vmatpush1.msra.mxu0 %v595
    %1187 = vmatprep.subr.mxu0 %v612
    %1188 = vmatpush1.msra.mxu0 %v611
    %1189 = vmatprep.subr.mxu0 %v628
    %1190 = vmatpush1.msra.mxu0 %v627
    %1191 = vmatprep.subr.mxu0 0.0
    %1192 = vmatpush1.msra.mxu0 0.0
    %1193 = vmatprep.subr.mxu0 0.0
    %1194 = vmatpush1.msra.mxu0 0.0
    %1195 = vmatprep.subr.mxu0 0.0
    %1196 = vmatpush1.msra.mxu0 0.0
    %1197 = vmatprep.subr.mxu0 0.0
    %1198 = vmatpush1.msra.mxu0 0.0
    %1199 = vmatprep.subr.mxu0 0.0
    %1200 = vmatpush1.msra.mxu0 0.0
    %1201 = vmatprep.subr.mxu0 0.0
    %1202 = vmatpush1.msra.mxu0 0.0
    %1203 = vmatprep.subr.mxu0 0.0
    %1204 = vmatpush1.msra.mxu0 0.0
    %1205 = vmatprep.subr.mxu0 0.0
    %1206 = vmatpush1.msra.mxu0 0.0
    %1207 = vmatprep.subr.mxu0 0.0
    %1208 = vmatpush1.msra.mxu0 0.0
    %1209 = vmatprep.subr.mxu0 0.0
    %1210 = vmatpush1.msra.mxu0 0.0
    %1211 = vmatprep.subr.mxu0 0.0
    %1212 = vmatpush1.msra.mxu0 0.0
    %1213 = vmatprep.subr.mxu0 0.0
    %1214 = vmatpush1.msra.mxu0 0.0
    %1215 = vmatprep.subr.mxu0 0.0
    %1216 = vmatpush1.msra.mxu0 0.0
    %1217 = vmatprep.subr.mxu0 0.0
    %1218 = vmatpush1.msra.mxu0 0.0
    %1219 = vmatprep.subr.mxu0 0.0
    %1220 = vmatpush1.msra.mxu0 0.0
    %1221 = vmatprep.subr.mxu0 0.0
    %1222 = vmatpush1.msra.mxu0 0.0
    %1223 = vmatprep.subr.mxu0 0.0
    %1224 = vmatpush1.msra.mxu0 0.0
    %1225 = vmatprep.subr.mxu0 0.0
    %1226 = vmatpush1.msra.mxu0 0.0
    %1227 = vmatprep.subr.mxu0 0.0
    %1228 = vmatpush1.msra.mxu0 0.0
    %1229 = vmatprep.subr.mxu0 0.0
    %1230 = vmatpush1.msra.mxu0 0.0
    %1231 = vmatprep.subr.mxu0 0.0
    %1232 = vmatpush1.msra.mxu0 0.0
    %1233 = vmatprep.subr.mxu0 0.0
    %1234 = vmatpush1.msra.mxu0 0.0
    %1235 = vmatprep.subr.mxu0 0.0
    %1236 = vmatpush1.msra.mxu0 0.0
    %1237 = vmatprep.subr.mxu0 0.0
    %1238 = vmatpush1.msra.mxu0 0.0
    %1239 = vmatprep.subr.mxu0 0.0
    %1240 = vmatpush1.msra.mxu0 0.0
    %1241 = vmatprep.subr.mxu0 0.0
    %1242 = vmatpush1.msra.mxu0 0.0
    %1243 = vmatprep.subr.mxu0 0.0
    %1244 = vmatpush1.msra.mxu0 0.0
    %1245 = vmatprep.subr.mxu0 0.0
    %1246 = vmatpush1.msra.mxu0 0.0
    %1247 = vmatprep.mubr.f32.mxu0 0.0
    %1248 = vmatmul.mubr.f32.gmra.mrb[0].mxu0 %v716
    %v1249 = vpop.f32.mrb[0].mxu0
    %v1250 = vadd.f32 %v686, %v1249
    %v1251 = vpop.f32.mrb[0].mxu0
    %v1252 = vadd.f32 %v690, %v1251
    %1253 = vmatprep.mubr.f32.mxu0 0.0
    %1254 = vmatmul.mubr.f32.gmra.mrb[0].mxu0 %v719
    %v1255 = vpop.f32.mrb[0].mxu0
    %v1256 = vadd.f32 %v686, %v1255
    %v1257 = vpop.f32.mrb[0].mxu0
    %v1258 = vadd.f32 %v690, %v1257
    %1259 = vdwg.mxu0
    %1260 = vmatprep.subr.mxu0 %v582
    %1261 = vmatpush1.msra.mxu0 %v581
    %1262 = vmatprep.subr.mxu0 %v598
    %1263 = vmatpush1.msra.mxu0 %v597
    %1264 = vmatprep.subr.mxu0 %v614
    %1265 = vmatpush1.msra.mxu0 %v613
    %1266 = vmatprep.subr.mxu0 %v630
    %1267 = vmatpush1.msra.mxu0 %v629
    %1268 = vmatprep.subr.mxu0 0.0
    %1269 = vmatpush1.msra.mxu0 0.0
    %1270 = vmatprep.subr.mxu0 0.0
    %1271 = vmatpush1.msra.mxu0 0.0
    %1272 = vmatprep.subr.mxu0 0.0
    %1273 = vmatpush1.msra.mxu0 0.0
    %1274 = vmatprep.subr.mxu0 0.0
    %1275 = vmatpush1.msra.mxu0 0.0
    %1276 = vmatprep.subr.mxu0 0.0
    %1277 = vmatpush1.msra.mxu0 0.0
    %1278 = vmatprep.subr.mxu0 0.0
    %1279 = vmatpush1.msra.mxu0 0.0
    %1280 = vmatprep.subr.mxu0 0.0
    %1281 = vmatpush1.msra.mxu0 0.0
    %1282 = vmatprep.subr.mxu0 0.0
    %1283 = vmatpush1.msra.mxu0 0.0
    %1284 = vmatprep.subr.mxu0 0.0
    %1285 = vmatpush1.msra.mxu0 0.0
    %1286 = vmatprep.subr.mxu0 0.0
    %1287 = vmatpush1.msra.mxu0 0.0
    %1288 = vmatprep.subr.mxu0 0.0
    %1289 = vmatpush1.msra.mxu0 0.0
    %1290 = vmatprep.subr.mxu0 0.0
    %1291 = vmatpush1.msra.mxu0 0.0
    %1292 = vmatprep.subr.mxu0 0.0
    %1293 = vmatpush1.msra.mxu0 0.0
    %1294 = vmatprep.subr.mxu0 0.0
    %1295 = vmatpush1.msra.mxu0 0.0
    %1296 = vmatprep.subr.mxu0 0.0
    %1297 = vmatpush1.msra.mxu0 0.0
    %1298 = vmatprep.subr.mxu0 0.0
    %1299 = vmatpush1.msra.mxu0 0.0
    %1300 = vmatprep.subr.mxu0 0.0
    %1301 = vmatpush1.msra.mxu0 0.0
    %1302 = vmatprep.subr.mxu0 0.0
    %1303 = vmatpush1.msra.mxu0 0.0
    %1304 = vmatprep.subr.mxu0 0.0
    %1305 = vmatpush1.msra.mxu0 0.0
    %1306 = vmatprep.subr.mxu0 0.0
    %1307 = vmatpush1.msra.mxu0 0.0
    %1308 = vmatprep.subr.mxu0 0.0
    %1309 = vmatpush1.msra.mxu0 0.0
    %1310 = vmatprep.subr.mxu0 0.0
    %1311 = vmatpush1.msra.mxu0 0.0
    %1312 = vmatprep.subr.mxu0 0.0
    %1313 = vmatpush1.msra.mxu0 0.0
    %1314 = vmatprep.subr.mxu0 0.0
    %1315 = vmatpush1.msra.mxu0 0.0
    %1316 = vmatprep.subr.mxu0 0.0
    %1317 = vmatpush1.msra.mxu0 0.0
    %1318 = vmatprep.subr.mxu0 0.0
    %1319 = vmatpush1.msra.mxu0 0.0
    %1320 = vmatprep.subr.mxu0 0.0
    %1321 = vmatpush1.msra.mxu0 0.0
    %1322 = vmatprep.subr.mxu0 0.0
    %1323 = vmatpush1.msra.mxu0 0.0
    %1324 = vmatprep.mubr.f32.mxu0 0.0
    %1325 = vmatmul.mubr.f32.gmra.mrb[0].mxu0 %v716
    %v1326 = vpop.f32.mrb[0].mxu0
    %v1327 = vadd.f32 %v694, %v1326
    %v1328 = vpop.f32.mrb[0].mxu0
    %v1329 = vadd.f32 %v698, %v1328
    %1330 = vmatprep.mubr.f32.mxu0 0.0
    %1331 = vmatmul.mubr.f32.gmra.mrb[0].mxu0 %v719
    %v1332 = vpop.f32.mrb[0].mxu0
    %v1333 = vadd.f32 %v694, %v1332
    %v1334 = vpop.f32.mrb[0].mxu0
    %v1335 = vadd.f32 %v698, %v1334
    %1336 = vdwg.mxu0
    %v1337 = vmax.f32 %v788, 0.0
    %v1338 = vmax.f32 %v790, 0.0
    %v1339 = vmax.f32 %v865, 0.0
    %v1340 = vmax.f32 %v867, 0.0
    %v1341 = vmax.f32 %v942, 0.0
    %v1342 = vmax.f32 %v944, 0.0
    %v1343 = vmax.f32 %v1019, 0.0
    %v1344 = vmax.f32 %v1021, 0.0
    %v1345 = vmax.f32 %v1096, 0.0
    %v1346 = vmax.f32 %v1098, 0.0
    %v1347 = vmax.f32 %v1173, 0.0
    %v1348 = vmax.f32 %v1175, 0.0
    %v1349 = vmax.f32 %v1250, 0.0
    %v1350 = vmax.f32 %v1252, 0.0
    %v1351 = vmax.f32 %v1327, 0.0
    %v1352 = vmax.f32 %v1329, 0.0
    %v1353 = vmax.f32 %v794, 0.0
    %v1354 = vmax.f32 %v796, 0.0
    %v1355 = vmax.f32 %v871, 0.0
    %v1356 = vmax.f32 %v873, 0.0
    %v1357 = vmax.f32 %v948, 0.0
    %v1358 = vmax.f32 %v950, 0.0
    %v1359 = vmax.f32 %v1025, 0.0
    %v1360 = vmax.f32 %v1027, 0.0
    %v1361 = vmax.f32 %v1102, 0.0
    %v1362 = vmax.f32 %v1104, 0.0
    %v1363 = vmax.f32 %v1179, 0.0
    %v1364 = vmax.f32 %v1181, 0.0
    %v1365 = vmax.f32 %v1256, 0.0
    %v1366 = vmax.f32 %v1258, 0.0
    %v1367 = vmax.f32 %v1333, 0.0
    %v1368 = vmax.f32 %v1335, 0.0
    %v1369 = vld [vmem:[%s9] sm:$0xff]
    %v1370 = vld [vmem:[%s9 + $0x8] sm:$0xff]
    %v1371 = vld [vmem:[%s9 + $0x10] sm:$0xff]
    %v1372 = vld [vmem:[%s9 + $0x18] sm:$0xff]
    %v1373 = vld [vmem:[%s9 + $0x20] sm:$0xff]
    %v1374 = vld [vmem:[%s9 + $0x28] sm:$0xff]
    %v1375 = vld [vmem:[%s9 + $0x30] sm:$0xff]
    %v1376 = vld [vmem:[%s9 + $0x38] sm:$0xff]
    %v1377 = vld [vmem:[%s9 + $0x40] sm:$0xff]
    %v1378 = vld [vmem:[%s9 + $0x48] sm:$0xff]
    %v1379 = vld [vmem:[%s9 + $0x50] sm:$0xff]
    %v1380 = vld [vmem:[%s9 + $0x58] sm:$0xff]
    %v1381 = vld [vmem:[%s9 + $0x60] sm:$0xff]
    %v1382 = vld [vmem:[%s9 + $0x68] sm:$0xff]
    %v1383 = vld [vmem:[%s9 + $0x70] sm:$0xff]
    %v1384 = vld [vmem:[%s9 + $0x78] sm:$0xff]
    %v1385 = vld [vmem:[%s9 + $0x80] sm:$0xff]
    %v1386 = vld [vmem:[%s9 + $0x88] sm:$0xff]
    %v1387 = vld [vmem:[%s9 + $0x90] sm:$0xff]
    %v1388 = vld [vmem:[%s9 + $0x98] sm:$0xff]
    %v1389 = vld [vmem:[%s9 + $0xa0] sm:$0xff]
    %v1390 = vld [vmem:[%s9 + $0xa8] sm:$0xff]
    %v1391 = vld [vmem:[%s9 + $0xb0] sm:$0xff]
    %v1392 = vld [vmem:[%s9 + $0xb8] sm:$0xff]
    %v1393 = vld [vmem:[%s9 + $0xc0] sm:$0xff]
    %v1394 = vld [vmem:[%s9 + $0xc8] sm:$0xff]
    %v1395 = vld [vmem:[%s9 + $0xd0] sm:$0xff]
    %v1396 = vld [vmem:[%s9 + $0xd8] sm:$0xff]
    %v1397 = vld [vmem:[%s9 + $0xe0] sm:$0xff]
    %v1398 = vld [vmem:[%s9 + $0xe8] sm:$0xff]
    %v1399 = vld [vmem:[%s9 + $0xf0] sm:$0xff]
    %v1400 = vld [vmem:[%s9 + $0xf8] sm:$0xff]
    %v1401 = vld [vmem:[%s9 + $0x100] sm:$0xff]
    %v1402 = vld [vmem:[%s9 + $0x108] sm:$0xff]
    %v1403 = vld [vmem:[%s9 + $0x110] sm:$0xff]
    %v1404 = vld [vmem:[%s9 + $0x118] sm:$0xff]
    %v1405 = vld [vmem:[%s9 + $0x120] sm:$0xff]
    %v1406 = vld [vmem:[%s9 + $0x128] sm:$0xff]
    %v1407 = vld [vmem:[%s9 + $0x130] sm:$0xff]
    %v1408 = vld [vmem:[%s9 + $0x138] sm:$0xff]
    %v1409 = vld [vmem:[%s9 + $0x140] sm:$0xff]
    %v1410 = vld [vmem:[%s9 + $0x148] sm:$0xff]
    %v1411 = vld [vmem:[%s9 + $0x150] sm:$0xff]
    %v1412 = vld [vmem:[%s9 + $0x158] sm:$0xff]
    %v1413 = vld [vmem:[%s9 + $0x160] sm:$0xff]
    %v1414 = vld [vmem:[%s9 + $0x168] sm:$0xff]
    %v1415 = vld [vmem:[%s9 + $0x170] sm:$0xff]
    %v1416 = vld [vmem:[%s9 + $0x178] sm:$0xff]
    %v1417 = vld [vmem:[%s9 + $0x180] sm:$0xff]
    %v1418 = vld [vmem:[%s9 + $0x188] sm:$0xff]
    %v1419 = vld [vmem:[%s9 + $0x190] sm:$0xff]
    %v1420 = vld [vmem:[%s9 + $0x198] sm:$0xff]
    %v1421 = vld [vmem:[%s9 + $0x1a0] sm:$0xff]
    %v1422 = vld [vmem:[%s9 + $0x1a8] sm:$0xff]
    %v1423 = vld [vmem:[%s9 + $0x1b0] sm:$0xff]
    %v1424 = vld [vmem:[%s9 + $0x1b8] sm:$0xff]
    %v1425 = vld [vmem:[%s9 + $0x1c0] sm:$0xff]
    %v1426 = vld [vmem:[%s9 + $0x1c8] sm:$0xff]
    %v1427 = vld [vmem:[%s9 + $0x1d0] sm:$0xff]
    %v1428 = vld [vmem:[%s9 + $0x1d8] sm:$0xff]
    %v1429 = vld [vmem:[%s9 + $0x1e0] sm:$0xff]
    %v1430 = vld [vmem:[%s9 + $0x1e8] sm:$0xff]
    %v1431 = vld [vmem:[%s9 + $0x1f0] sm:$0xff]
    %v1432 = vld [vmem:[%s9 + $0x1f8] sm:$0xff]
    %v1433 = vld [vmem:[%s9 + $0x200] sm:$0xff]
    %v1434 = vld [vmem:[%s9 + $0x208] sm:$0xff]
    %v1435 = vld [vmem:[%s9 + $0x210] sm:$0xff]
    %v1436 = vld [vmem:[%s9 + $0x218] sm:$0xff]
    %v1437 = vld [vmem:[%s9 + $0x220] sm:$0xff]
    %v1438 = vld [vmem:[%s9 + $0x228] sm:$0xff]
    %v1439 = vld [vmem:[%s9 + $0x230] sm:$0xff]
    %v1440 = vld [vmem:[%s9 + $0x238] sm:$0xff]
    %v1441 = vld [vmem:[%s9 + $0x240] sm:$0xff]
    %v1442 = vld [vmem:[%s9 + $0x248] sm:$0xff]
    %v1443 = vld [vmem:[%s9 + $0x250] sm:$0xff]
    %v1444 = vld [vmem:[%s9 + $0x258] sm:$0xff]
    %v1445 = vld [vmem:[%s9 + $0x260] sm:$0xff]
    %v1446 = vld [vmem:[%s9 + $0x268] sm:$0xff]
    %v1447 = vld [vmem:[%s9 + $0x270] sm:$0xff]
    %v1448 = vld [vmem:[%s9 + $0x278] sm:$0xff]
    %v1449 = vld [vmem:[%s9 + $0x280] sm:$0xff]
    %v1450 = vld [vmem:[%s9 + $0x288] sm:$0xff]
    %v1451 = vld [vmem:[%s9 + $0x290] sm:$0xff]
    %v1452 = vld [vmem:[%s9 + $0x298] sm:$0xff]
    %v1453 = vld [vmem:[%s9 + $0x2a0] sm:$0xff]
    %v1454 = vld [vmem:[%s9 + $0x2a8] sm:$0xff]
    %v1455 = vld [vmem:[%s9 + $0x2b0] sm:$0xff]
    %v1456 = vld [vmem:[%s9 + $0x2b8] sm:$0xff]
    %v1457 = vld [vmem:[%s9 + $0x2c0] sm:$0xff]
    %v1458 = vld [vmem:[%s9 + $0x2c8] sm:$0xff]
    %v1459 = vld [vmem:[%s9 + $0x2d0] sm:$0xff]
    %v1460 = vld [vmem:[%s9 + $0x2d8] sm:$0xff]
    %v1461 = vld [vmem:[%s9 + $0x2e0] sm:$0xff]
    %v1462 = vld [vmem:[%s9 + $0x2e8] sm:$0xff]
    %v1463 = vld [vmem:[%s9 + $0x2f0] sm:$0xff]
    %v1464 = vld [vmem:[%s9 + $0x2f8] sm:$0xff]
    %v1465 = vld [vmem:[%s9 + $0x300] sm:$0xff]
    %v1466 = vld [vmem:[%s9 + $0x308] sm:$0xff]
    %v1467 = vld [vmem:[%s9 + $0x310] sm:$0xff]
    %v1468 = vld [vmem:[%s9 + $0x318] sm:$0xff]
    %v1469 = vld [vmem:[%s9 + $0x320] sm:$0xff]
    %v1470 = vld [vmem:[%s9 + $0x328] sm:$0xff]
    %v1471 = vld [vmem:[%s9 + $0x330] sm:$0xff]
    %v1472 = vld [vmem:[%s9 + $0x338] sm:$0xff]
    %v1473 = vld [vmem:[%s9 + $0x340] sm:$0xff]
    %v1474 = vld [vmem:[%s9 + $0x348] sm:$0xff]
    %v1475 = vld [vmem:[%s9 + $0x350] sm:$0xff]
    %v1476 = vld [vmem:[%s9 + $0x358] sm:$0xff]
    %v1477 = vld [vmem:[%s9 + $0x360] sm:$0xff]
    %v1478 = vld [vmem:[%s9 + $0x368] sm:$0xff]
    %v1479 = vld [vmem:[%s9 + $0x370] sm:$0xff]
    %v1480 = vld [vmem:[%s9 + $0x378] sm:$0xff]
    %v1481 = vld [vmem:[%s9 + $0x380] sm:$0xff]
    %v1482 = vld [vmem:[%s9 + $0x388] sm:$0xff]
    %v1483 = vld [vmem:[%s9 + $0x390] sm:$0xff]
    %v1484 = vld [vmem:[%s9 + $0x398] sm:$0xff]
    %v1485 = vld [vmem:[%s9 + $0x3a0] sm:$0xff]
    %v1486 = vld [vmem:[%s9 + $0x3a8] sm:$0xff]
    %v1487 = vld [vmem:[%s9 + $0x3b0] sm:$0xff]
    %v1488 = vld [vmem:[%s9 + $0x3b8] sm:$0xff]
    %v1489 = vld [vmem:[%s9 + $0x3c0] sm:$0xff]
    %v1490 = vld [vmem:[%s9 + $0x3c8] sm:$0xff]
    %v1491 = vld [vmem:[%s9 + $0x3d0] sm:$0xff]
    %v1492 = vld [vmem:[%s9 + $0x3d8] sm:$0xff]
    %v1493 = vld [vmem:[%s9 + $0x3e0] sm:$0xff]
    %v1494 = vld [vmem:[%s9 + $0x3e8] sm:$0xff]
    %v1495 = vld [vmem:[%s9 + $0x3f0] sm:$0xff]
    %v1496 = vld [vmem:[%s9 + $0x3f8] sm:$0xff]
    %v1497 = vld [vmem:[%s9 + $0x400] sm:$0xff]
    %v1498 = vld [vmem:[%s9 + $0x408] sm:$0xff]
    %v1499 = vld [vmem:[%s9 + $0x410] sm:$0xff]
    %v1500 = vld [vmem:[%s9 + $0x418] sm:$0xff]
    %v1501 = vld [vmem:[%s9 + $0x420] sm:$0xff]
    %v1502 = vld [vmem:[%s9 + $0x428] sm:$0xff]
    %v1503 = vld [vmem:[%s9 + $0x430] sm:$0xff]
    %v1504 = vld [vmem:[%s9 + $0x438] sm:$0xff]
    %v1505 = vld [vmem:[%s9 + $0x440] sm:$0xff]
    %v1506 = vld [vmem:[%s9 + $0x448] sm:$0xff]
    %v1507 = vld [vmem:[%s9 + $0x450] sm:$0xff]
    %v1508 = vld [vmem:[%s9 + $0x458] sm:$0xff]
    %v1509 = vld [vmem:[%s9 + $0x460] sm:$0xff]
    %v1510 = vld [vmem:[%s9 + $0x468] sm:$0xff]
    %v1511 = vld [vmem:[%s9 + $0x470] sm:$0xff]
    %v1512 = vld [vmem:[%s9 + $0x478] sm:$0xff]
    %v1513 = vld [vmem:[%s9 + $0x480] sm:$0xff]
    %v1514 = vld [vmem:[%s9 + $0x488] sm:$0xff]
    %v1515 = vld [vmem:[%s9 + $0x490] sm:$0xff]
    %v1516 = vld [vmem:[%s9 + $0x498] sm:$0xff]
    %v1517 = vld [vmem:[%s9 + $0x4a0] sm:$0xff]
    %v1518 = vld [vmem:[%s9 + $0x4a8] sm:$0xff]
    %v1519 = vld [vmem:[%s9 + $0x4b0] sm:$0xff]
    %v1520 = vld [vmem:[%s9 + $0x4b8] sm:$0xff]
    %v1521 = vld [vmem:[%s9 + $0x4c0] sm:$0xff]
    %v1522 = vld [vmem:[%s9 + $0x4c8] sm:$0xff]
    %v1523 = vld [vmem:[%s9 + $0x4d0] sm:$0xff]
    %v1524 = vld [vmem:[%s9 + $0x4d8] sm:$0xff]
    %v1525 = vld [vmem:[%s9 + $0x4e0] sm:$0xff]
    %v1526 = vld [vmem:[%s9 + $0x4e8] sm:$0xff]
    %v1527 = vld [vmem:[%s9 + $0x4f0] sm:$0xff]
    %v1528 = vld [vmem:[%s9 + $0x4f8] sm:$0xff]
    %v1529 = vld [vmem:[%s9 + $0x500] sm:$0xff]
    %v1530 = vld [vmem:[%s9 + $0x508] sm:$0xff]
    %v1531 = vld [vmem:[%s9 + $0x510] sm:$0xff]
    %v1532 = vld [vmem:[%s9 + $0x518] sm:$0xff]
    %v1533 = vld [vmem:[%s9 + $0x520] sm:$0xff]
    %v1534 = vld [vmem:[%s9 + $0x528] sm:$0xff]
    %v1535 = vld [vmem:[%s9 + $0x530] sm:$0xff]
    %v1536 = vld [vmem:[%s9 + $0x538] sm:$0xff]
    %v1537 = vld [vmem:[%s9 + $0x540] sm:$0xff]
    %v1538 = vld [vmem:[%s9 + $0x548] sm:$0xff]
    %v1539 = vld [vmem:[%s9 + $0x550] sm:$0xff]
    %v1540 = vld [vmem:[%s9 + $0x558] sm:$0xff]
    %v1541 = vld [vmem:[%s9 + $0x560] sm:$0xff]
    %v1542 = vld [vmem:[%s9 + $0x568] sm:$0xff]
    %v1543 = vld [vmem:[%s9 + $0x570] sm:$0xff]
    %v1544 = vld [vmem:[%s9 + $0x578] sm:$0xff]
    %v1545 = vld [vmem:[%s9 + $0x580] sm:$0xff]
    %v1546 = vld [vmem:[%s9 + $0x588] sm:$0xff]
    %v1547 = vld [vmem:[%s9 + $0x590] sm:$0xff]
    %v1548 = vld [vmem:[%s9 + $0x598] sm:$0xff]
    %v1549 = vld [vmem:[%s9 + $0x5a0] sm:$0xff]
    %v1550 = vld [vmem:[%s9 + $0x5a8] sm:$0xff]
    %v1551 = vld [vmem:[%s9 + $0x5b0] sm:$0xff]
    %v1552 = vld [vmem:[%s9 + $0x5b8] sm:$0xff]
    %v1553 = vld [vmem:[%s9 + $0x5c0] sm:$0xff]
    %v1554 = vld [vmem:[%s9 + $0x5c8] sm:$0xff]
    %v1555 = vld [vmem:[%s9 + $0x5d0] sm:$0xff]
    %v1556 = vld [vmem:[%s9 + $0x5d8] sm:$0xff]
    %v1557 = vld [vmem:[%s9 + $0x5e0] sm:$0xff]
    %v1558 = vld [vmem:[%s9 + $0x5e8] sm:$0xff]
    %v1559 = vld [vmem:[%s9 + $0x5f0] sm:$0xff]
    %v1560 = vld [vmem:[%s9 + $0x5f8] sm:$0xff]
    %v1561 = vld [vmem:[%s9 + $0x600] sm:$0xff]
    %v1562 = vld [vmem:[%s9 + $0x608] sm:$0xff]
    %v1563 = vld [vmem:[%s9 + $0x610] sm:$0xff]
    %v1564 = vld [vmem:[%s9 + $0x618] sm:$0xff]
    %v1565 = vld [vmem:[%s9 + $0x620] sm:$0xff]
    %v1566 = vld [vmem:[%s9 + $0x628] sm:$0xff]
    %v1567 = vld [vmem:[%s9 + $0x630] sm:$0xff]
    %v1568 = vld [vmem:[%s9 + $0x638] sm:$0xff]
    %v1569 = vld [vmem:[%s9 + $0x640] sm:$0xff]
    %v1570 = vld [vmem:[%s9 + $0x648] sm:$0xff]
    %v1571 = vld [vmem:[%s9 + $0x650] sm:$0xff]
    %v1572 = vld [vmem:[%s9 + $0x658] sm:$0xff]
    %v1573 = vld [vmem:[%s9 + $0x660] sm:$0xff]
    %v1574 = vld [vmem:[%s9 + $0x668] sm:$0xff]
    %v1575 = vld [vmem:[%s9 + $0x670] sm:$0xff]
    %v1576 = vld [vmem:[%s9 + $0x678] sm:$0xff]
    %v1577 = vld [vmem:[%s9 + $0x680] sm:$0xff]
    %v1578 = vld [vmem:[%s9 + $0x688] sm:$0xff]
    %v1579 = vld [vmem:[%s9 + $0x690] sm:$0xff]
    %v1580 = vld [vmem:[%s9 + $0x698] sm:$0xff]
    %v1581 = vld [vmem:[%s9 + $0x6a0] sm:$0xff]
    %v1582 = vld [vmem:[%s9 + $0x6a8] sm:$0xff]
    %v1583 = vld [vmem:[%s9 + $0x6b0] sm:$0xff]
    %v1584 = vld [vmem:[%s9 + $0x6b8] sm:$0xff]
    %v1585 = vld [vmem:[%s9 + $0x6c0] sm:$0xff]
    %v1586 = vld [vmem:[%s9 + $0x6c8] sm:$0xff]
    %v1587 = vld [vmem:[%s9 + $0x6d0] sm:$0xff]
    %v1588 = vld [vmem:[%s9 + $0x6d8] sm:$0xff]
    %v1589 = vld [vmem:[%s9 + $0x6e0] sm:$0xff]
    %v1590 = vld [vmem:[%s9 + $0x6e8] sm:$0xff]
    %v1591 = vld [vmem:[%s9 + $0x6f0] sm:$0xff]
    %v1592 = vld [vmem:[%s9 + $0x6f8] sm:$0xff]
    %v1593 = vld [vmem:[%s9 + $0x700] sm:$0xff]
    %v1594 = vld [vmem:[%s9 + $0x708] sm:$0xff]
    %v1595 = vld [vmem:[%s9 + $0x710] sm:$0xff]
    %v1596 = vld [vmem:[%s9 + $0x718] sm:$0xff]
    %v1597 = vld [vmem:[%s9 + $0x720] sm:$0xff]
    %v1598 = vld [vmem:[%s9 + $0x728] sm:$0xff]
    %v1599 = vld [vmem:[%s9 + $0x730] sm:$0xff]
    %v1600 = vld [vmem:[%s9 + $0x738] sm:$0xff]
    %v1601 = vld [vmem:[%s9 + $0x740] sm:$0xff]
    %v1602 = vld [vmem:[%s9 + $0x748] sm:$0xff]
    %v1603 = vld [vmem:[%s9 + $0x750] sm:$0xff]
    %v1604 = vld [vmem:[%s9 + $0x758] sm:$0xff]
    %v1605 = vld [vmem:[%s9 + $0x760] sm:$0xff]
    %v1606 = vld [vmem:[%s9 + $0x768] sm:$0xff]
    %v1607 = vld [vmem:[%s9 + $0x770] sm:$0xff]
    %v1608 = vld [vmem:[%s9 + $0x778] sm:$0xff]
    %v1609 = vld [vmem:[%s9 + $0x780] sm:$0xff]
    %v1610 = vld [vmem:[%s9 + $0x788] sm:$0xff]
    %v1611 = vld [vmem:[%s9 + $0x790] sm:$0xff]
    %v1612 = vld [vmem:[%s9 + $0x798] sm:$0xff]
    %v1613 = vld [vmem:[%s9 + $0x7a0] sm:$0xff]
    %v1614 = vld [vmem:[%s9 + $0x7a8] sm:$0xff]
    %v1615 = vld [vmem:[%s9 + $0x7b0] sm:$0xff]
    %v1616 = vld [vmem:[%s9 + $0x7b8] sm:$0xff]
    %v1617 = vld [vmem:[%s9 + $0x7c0] sm:$0xff]
    %v1618 = vld [vmem:[%s9 + $0x7c8] sm:$0xff]
    %v1619 = vld [vmem:[%s9 + $0x7d0] sm:$0xff]
    %v1620 = vld [vmem:[%s9 + $0x7d8] sm:$0xff]
    %v1621 = vld [vmem:[%s9 + $0x7e0] sm:$0xff]
    %v1622 = vld [vmem:[%s9 + $0x7e8] sm:$0xff]
    %v1623 = vld [vmem:[%s9 + $0x7f0] sm:$0xff]
    %v1624 = vld [vmem:[%s9 + $0x7f8] sm:$0xff]
    %v1625 = vld [vmem:[%s10] sm:$0x1]
    %v1627 = vlaneseq
    %v1628 = vshrl.u32 %v1627, 7
    %v1629 = vsub.s32 0, %v1628
    %v1630 = vrot.slane %v1625, %v1629
    %1632 = vmatprep.subr.mxu0 0.0
    %1633 = vmatpush1.msra.mxu0 %v1369
    %1634 = vmatprep.subr.mxu0 0.0
    %1635 = vmatpush1.msra.mxu0 %v1370
    %1636 = vmatprep.subr.mxu0 0.0
    %1637 = vmatpush1.msra.mxu0 %v1371
    %1638 = vmatprep.subr.mxu0 0.0
    %1639 = vmatpush1.msra.mxu0 %v1372
    %1640 = vmatprep.subr.mxu0 0.0
    %1641 = vmatpush1.msra.mxu0 %v1373
    %1642 = vmatprep.subr.mxu0 0.0
    %1643 = vmatpush1.msra.mxu0 %v1374
    %1644 = vmatprep.subr.mxu0 0.0
    %1645 = vmatpush1.msra.mxu0 %v1375
    %1646 = vmatprep.subr.mxu0 0.0
    %1647 = vmatpush1.msra.mxu0 %v1376
    %1648 = vmatprep.subr.mxu0 0.0
    %1649 = vmatpush1.msra.mxu0 %v1377
    %1650 = vmatprep.subr.mxu0 0.0
    %1651 = vmatpush1.msra.mxu0 %v1378
    %1652 = vmatprep.subr.mxu0 0.0
    %1653 = vmatpush1.msra.mxu0 %v1379
    %1654 = vmatprep.subr.mxu0 0.0
    %1655 = vmatpush1.msra.mxu0 %v1380
    %1656 = vmatprep.subr.mxu0 0.0
    %1657 = vmatpush1.msra.mxu0 %v1381
    %1658 = vmatprep.subr.mxu0 0.0
    %1659 = vmatpush1.msra.mxu0 %v1382
    %1660 = vmatprep.subr.mxu0 0.0
    %1661 = vmatpush1.msra.mxu0 %v1383
    %1662 = vmatprep.subr.mxu0 0.0
    %1663 = vmatpush1.msra.mxu0 %v1384
    %1664 = vmatprep.subr.mxu0 0.0
    %1665 = vmatpush1.msra.mxu0 %v1385
    %1666 = vmatprep.subr.mxu0 0.0
    %1667 = vmatpush1.msra.mxu0 %v1386
    %1668 = vmatprep.subr.mxu0 0.0
    %1669 = vmatpush1.msra.mxu0 %v1387
    %1670 = vmatprep.subr.mxu0 0.0
    %1671 = vmatpush1.msra.mxu0 %v1388
    %1672 = vmatprep.subr.mxu0 0.0
    %1673 = vmatpush1.msra.mxu0 %v1389
    %1674 = vmatprep.subr.mxu0 0.0
    %1675 = vmatpush1.msra.mxu0 %v1390
    %1676 = vmatprep.subr.mxu0 0.0
    %1677 = vmatpush1.msra.mxu0 %v1391
    %1678 = vmatprep.subr.mxu0 0.0
    %1679 = vmatpush1.msra.mxu0 %v1392
    %1680 = vmatprep.subr.mxu0 0.0
    %1681 = vmatpush1.msra.mxu0 %v1393
    %1682 = vmatprep.subr.mxu0 0.0
    %1683 = vmatpush1.msra.mxu0 %v1394
    %1684 = vmatprep.subr.mxu0 0.0
    %1685 = vmatpush1.msra.mxu0 %v1395
    %1686 = vmatprep.subr.mxu0 0.0
    %1687 = vmatpush1.msra.mxu0 %v1396
    %1688 = vmatprep.subr.mxu0 0.0
    %1689 = vmatpush1.msra.mxu0 %v1397
    %1690 = vmatprep.subr.mxu0 0.0
    %1691 = vmatpush1.msra.mxu0 %v1398
    %1692 = vmatprep.subr.mxu0 0.0
    %1693 = vmatpush1.msra.mxu0 %v1399
    %1694 = vmatprep.subr.mxu0 0.0
    %1695 = vmatpush1.msra.mxu0 %v1400
    %1696 = vmatprep.mubr.f32.mxu0 %v1338
    %1697 = vmatmul.mubr.f32.gmra.mrb[0].mxu0 %v1337
    %v1698 = vpop.f32.mrb[0].mxu0
    %v1699 = vadd.f32 %v1630, %v1698
    %v1700 = vpop.f32.mrb[0].mxu0
    %1701 = vmatprep.mubr.f32.mxu0 %v1354
    %1702 = vmatmul.mubr.f32.gmra.mrb[0].mxu0 %v1353
    %v1703 = vpop.f32.mrb[0].mxu0
    %v1704 = vadd.f32 %v1630, %v1703
    %v1705 = vpop.f32.mrb[0].mxu0
    %1706 = vdwg.mxu0
    %1707 = vmatprep.subr.mxu0 0.0
    %1708 = vmatpush1.msra.mxu0 %v1401
    %1709 = vmatprep.subr.mxu0 0.0
    %1710 = vmatpush1.msra.mxu0 %v1402
    %1711 = vmatprep.subr.mxu0 0.0
    %1712 = vmatpush1.msra.mxu0 %v1403
    %1713 = vmatprep.subr.mxu0 0.0
    %1714 = vmatpush1.msra.mxu0 %v1404
    %1715 = vmatprep.subr.mxu0 0.0
    %1716 = vmatpush1.msra.mxu0 %v1405
    %1717 = vmatprep.subr.mxu0 0.0
    %1718 = vmatpush1.msra.mxu0 %v1406
    %1719 = vmatprep.subr.mxu0 0.0
    %1720 = vmatpush1.msra.mxu0 %v1407
    %1721 = vmatprep.subr.mxu0 0.0
    %1722 = vmatpush1.msra.mxu0 %v1408
    %1723 = vmatprep.subr.mxu0 0.0
    %1724 = vmatpush1.msra.mxu0 %v1409
    %1725 = vmatprep.subr.mxu0 0.0
    %1726 = vmatpush1.msra.mxu0 %v1410
    %1727 = vmatprep.subr.mxu0 0.0
    %1728 = vmatpush1.msra.mxu0 %v1411
    %1729 = vmatprep.subr.mxu0 0.0
    %1730 = vmatpush1.msra.mxu0 %v1412
    %1731 = vmatprep.subr.mxu0 0.0
    %1732 = vmatpush1.msra.mxu0 %v1413
    %1733 = vmatprep.subr.mxu0 0.0
    %1734 = vmatpush1.msra.mxu0 %v1414
    %1735 = vmatprep.subr.mxu0 0.0
    %1736 = vmatpush1.msra.mxu0 %v1415
    %1737 = vmatprep.subr.mxu0 0.0
    %1738 = vmatpush1.msra.mxu0 %v1416
    %1739 = vmatprep.subr.mxu0 0.0
    %1740 = vmatpush1.msra.mxu0 %v1417
    %1741 = vmatprep.subr.mxu0 0.0
    %1742 = vmatpush1.msra.mxu0 %v1418
    %1743 = vmatprep.subr.mxu0 0.0
    %1744 = vmatpush1.msra.mxu0 %v1419
    %1745 = vmatprep.subr.mxu0 0.0
    %1746 = vmatpush1.msra.mxu0 %v1420
    %1747 = vmatprep.subr.mxu0 0.0
    %1748 = vmatpush1.msra.mxu0 %v1421
    %1749 = vmatprep.subr.mxu0 0.0
    %1750 = vmatpush1.msra.mxu0 %v1422
    %1751 = vmatprep.subr.mxu0 0.0
    %1752 = vmatpush1.msra.mxu0 %v1423
    %1753 = vmatprep.subr.mxu0 0.0
    %1754 = vmatpush1.msra.mxu0 %v1424
    %1755 = vmatprep.subr.mxu0 0.0
    %1756 = vmatpush1.msra.mxu0 %v1425
    %1757 = vmatprep.subr.mxu0 0.0
    %1758 = vmatpush1.msra.mxu0 %v1426
    %1759 = vmatprep.subr.mxu0 0.0
    %1760 = vmatpush1.msra.mxu0 %v1427
    %1761 = vmatprep.subr.mxu0 0.0
    %1762 = vmatpush1.msra.mxu0 %v1428
    %1763 = vmatprep.subr.mxu0 0.0
    %1764 = vmatpush1.msra.mxu0 %v1429
    %1765 = vmatprep.subr.mxu0 0.0
    %1766 = vmatpush1.msra.mxu0 %v1430
    %1767 = vmatprep.subr.mxu0 0.0
    %1768 = vmatpush1.msra.mxu0 %v1431
    %1769 = vmatprep.subr.mxu0 0.0
    %1770 = vmatpush1.msra.mxu0 %v1432
    %1771 = vmatprep.mubr.f32.mxu0 %v1340
    %1772 = vmatmul.mubr.f32.gmra.mrb[0].mxu0 %v1339
    %v1773 = vpop.f32.mrb[0].mxu0
    %v1774 = vadd.f32 %v1699, %v1773
    %v1775 = vpop.f32.mrb[0].mxu0
    %1776 = vmatprep.mubr.f32.mxu0 %v1356
    %1777 = vmatmul.mubr.f32.gmra.mrb[0].mxu0 %v1355
    %v1778 = vpop.f32.mrb[0].mxu0
    %v1779 = vadd.f32 %v1704, %v1778
    %v1780 = vpop.f32.mrb[0].mxu0
    %1781 = vdwg.mxu0
    %1782 = vmatprep.subr.mxu0 0.0
    %1783 = vmatpush1.msra.mxu0 %v1433
    %1784 = vmatprep.subr.mxu0 0.0
    %1785 = vmatpush1.msra.mxu0 %v1434
    %1786 = vmatprep.subr.mxu0 0.0
    %1787 = vmatpush1.msra.mxu0 %v1435
    %1788 = vmatprep.subr.mxu0 0.0
    %1789 = vmatpush1.msra.mxu0 %v1436
    %1790 = vmatprep.subr.mxu0 0.0
    %1791 = vmatpush1.msra.mxu0 %v1437
    %1792 = vmatprep.subr.mxu0 0.0
    %1793 = vmatpush1.msra.mxu0 %v1438
    %1794 = vmatprep.subr.mxu0 0.0
    %1795 = vmatpush1.msra.mxu0 %v1439
    %1796 = vmatprep.subr.mxu0 0.0
    %1797 = vmatpush1.msra.mxu0 %v1440
    %1798 = vmatprep.subr.mxu0 0.0
    %1799 = vmatpush1.msra.mxu0 %v1441
    %1800 = vmatprep.subr.mxu0 0.0
    %1801 = vmatpush1.msra.mxu0 %v1442
    %1802 = vmatprep.subr.mxu0 0.0
    %1803 = vmatpush1.msra.mxu0 %v1443
    %1804 = vmatprep.subr.mxu0 0.0
    %1805 = vmatpush1.msra.mxu0 %v1444
    %1806 = vmatprep.subr.mxu0 0.0
    %1807 = vmatpush1.msra.mxu0 %v1445
    %1808 = vmatprep.subr.mxu0 0.0
    %1809 = vmatpush1.msra.mxu0 %v1446
    %1810 = vmatprep.subr.mxu0 0.0
    %1811 = vmatpush1.msra.mxu0 %v1447
    %1812 = vmatprep.subr.mxu0 0.0
    %1813 = vmatpush1.msra.mxu0 %v1448
    %1814 = vmatprep.subr.mxu0 0.0
    %1815 = vmatpush1.msra.mxu0 %v1449
    %1816 = vmatprep.subr.mxu0 0.0
    %1817 = vmatpush1.msra.mxu0 %v1450
    %1818 = vmatprep.subr.mxu0 0.0
    %1819 = vmatpush1.msra.mxu0 %v1451
    %1820 = vmatprep.subr.mxu0 0.0
    %1821 = vmatpush1.msra.mxu0 %v1452
    %1822 = vmatprep.subr.mxu0 0.0
    %1823 = vmatpush1.msra.mxu0 %v1453
    %1824 = vmatprep.subr.mxu0 0.0
    %1825 = vmatpush1.msra.mxu0 %v1454
    %1826 = vmatprep.subr.mxu0 0.0
    %1827 = vmatpush1.msra.mxu0 %v1455
    %1828 = vmatprep.subr.mxu0 0.0
    %1829 = vmatpush1.msra.mxu0 %v1456
    %1830 = vmatprep.subr.mxu0 0.0
    %1831 = vmatpush1.msra.mxu0 %v1457
    %1832 = vmatprep.subr.mxu0 0.0
    %1833 = vmatpush1.msra.mxu0 %v1458
    %1834 = vmatprep.subr.mxu0 0.0
    %1835 = vmatpush1.msra.mxu0 %v1459
    %1836 = vmatprep.subr.mxu0 0.0
    %1837 = vmatpush1.msra.mxu0 %v1460
    %1838 = vmatprep.subr.mxu0 0.0
    %1839 = vmatpush1.msra.mxu0 %v1461
    %1840 = vmatprep.subr.mxu0 0.0
    %1841 = vmatpush1.msra.mxu0 %v1462
    %1842 = vmatprep.subr.mxu0 0.0
    %1843 = vmatpush1.msra.mxu0 %v1463
    %1844 = vmatprep.subr.mxu0 0.0
    %1845 = vmatpush1.msra.mxu0 %v1464
    %1846 = vmatprep.mubr.f32.mxu0 %v1342
    %1847 = vmatmul.mubr.f32.gmra.mrb[0].mxu0 %v1341
    %v1848 = vpop.f32.mrb[0].mxu0
    %v1849 = vadd.f32 %v1774, %v1848
    %v1850 = vpop.f32.mrb[0].mxu0
    %1851 = vmatprep.mubr.f32.mxu0 %v1358
    %1852 = vmatmul.mubr.f32.gmra.mrb[0].mxu0 %v1357
    %v1853 = vpop.f32.mrb[0].mxu0
    %v1854 = vadd.f32 %v1779, %v1853
    %v1855 = vpop.f32.mrb[0].mxu0
    %1856 = vdwg.mxu0
    %1857 = vmatprep.subr.mxu0 0.0
    %1858 = vmatpush1.msra.mxu0 %v1465
    %1859 = vmatprep.subr.mxu0 0.0
    %1860 = vmatpush1.msra.mxu0 %v1466
    %1861 = vmatprep.subr.mxu0 0.0
    %1862 = vmatpush1.msra.mxu0 %v1467
    %1863 = vmatprep.subr.mxu0 0.0
    %1864 = vmatpush1.msra.mxu0 %v1468
    %1865 = vmatprep.subr.mxu0 0.0
    %1866 = vmatpush1.msra.mxu0 %v1469
    %1867 = vmatprep.subr.mxu0 0.0
    %1868 = vmatpush1.msra.mxu0 %v1470
    %1869 = vmatprep.subr.mxu0 0.0
    %1870 = vmatpush1.msra.mxu0 %v1471
    %1871 = vmatprep.subr.mxu0 0.0
    %1872 = vmatpush1.msra.mxu0 %v1472
    %1873 = vmatprep.subr.mxu0 0.0
    %1874 = vmatpush1.msra.mxu0 %v1473
    %1875 = vmatprep.subr.mxu0 0.0
    %1876 = vmatpush1.msra.mxu0 %v1474
    %1877 = vmatprep.subr.mxu0 0.0
    %1878 = vmatpush1.msra.mxu0 %v1475
    %1879 = vmatprep.subr.mxu0 0.0
    %1880 = vmatpush1.msra.mxu0 %v1476
    %1881 = vmatprep.subr.mxu0 0.0
    %1882 = vmatpush1.msra.mxu0 %v1477
    %1883 = vmatprep.subr.mxu0 0.0
    %1884 = vmatpush1.msra.mxu0 %v1478
    %1885 = vmatprep.subr.mxu0 0.0
    %1886 = vmatpush1.msra.mxu0 %v1479
    %1887 = vmatprep.subr.mxu0 0.0
    %1888 = vmatpush1.msra.mxu0 %v1480
    %1889 = vmatprep.subr.mxu0 0.0
    %1890 = vmatpush1.msra.mxu0 %v1481
    %1891 = vmatprep.subr.mxu0 0.0
    %1892 = vmatpush1.msra.mxu0 %v1482
    %1893 = vmatprep.subr.mxu0 0.0
    %1894 = vmatpush1.msra.mxu0 %v1483
    %1895 = vmatprep.subr.mxu0 0.0
    %1896 = vmatpush1.msra.mxu0 %v1484
    %1897 = vmatprep.subr.mxu0 0.0
    %1898 = vmatpush1.msra.mxu0 %v1485
    %1899 = vmatprep.subr.mxu0 0.0
    %1900 = vmatpush1.msra.mxu0 %v1486
    %1901 = vmatprep.subr.mxu0 0.0
    %1902 = vmatpush1.msra.mxu0 %v1487
    %1903 = vmatprep.subr.mxu0 0.0
    %1904 = vmatpush1.msra.mxu0 %v1488
    %1905 = vmatprep.subr.mxu0 0.0
    %1906 = vmatpush1.msra.mxu0 %v1489
    %1907 = vmatprep.subr.mxu0 0.0
    %1908 = vmatpush1.msra.mxu0 %v1490
    %1909 = vmatprep.subr.mxu0 0.0
    %1910 = vmatpush1.msra.mxu0 %v1491
    %1911 = vmatprep.subr.mxu0 0.0
    %1912 = vmatpush1.msra.mxu0 %v1492
    %1913 = vmatprep.subr.mxu0 0.0
    %1914 = vmatpush1.msra.mxu0 %v1493
    %1915 = vmatprep.subr.mxu0 0.0
    %1916 = vmatpush1.msra.mxu0 %v1494
    %1917 = vmatprep.subr.mxu0 0.0
    %1918 = vmatpush1.msra.mxu0 %v1495
    %1919 = vmatprep.subr.mxu0 0.0
    %1920 = vmatpush1.msra.mxu0 %v1496
    %1921 = vmatprep.mubr.f32.mxu0 %v1344
    %1922 = vmatmul.mubr.f32.gmra.mrb[0].mxu0 %v1343
    %v1923 = vpop.f32.mrb[0].mxu0
    %v1924 = vadd.f32 %v1849, %v1923
    %v1925 = vpop.f32.mrb[0].mxu0
    %1926 = vmatprep.mubr.f32.mxu0 %v1360
    %1927 = vmatmul.mubr.f32.gmra.mrb[0].mxu0 %v1359
    %v1928 = vpop.f32.mrb[0].mxu0
    %v1929 = vadd.f32 %v1854, %v1928
    %v1930 = vpop.f32.mrb[0].mxu0
    %1931 = vdwg.mxu0
    %1932 = vmatprep.subr.mxu0 0.0
    %1933 = vmatpush1.msra.mxu0 %v1497
    %1934 = vmatprep.subr.mxu0 0.0
    %1935 = vmatpush1.msra.mxu0 %v1498
    %1936 = vmatprep.subr.mxu0 0.0
    %1937 = vmatpush1.msra.mxu0 %v1499
    %1938 = vmatprep.subr.mxu0 0.0
    %1939 = vmatpush1.msra.mxu0 %v1500
    %1940 = vmatprep.subr.mxu0 0.0
    %1941 = vmatpush1.msra.mxu0 %v1501
    %1942 = vmatprep.subr.mxu0 0.0
    %1943 = vmatpush1.msra.mxu0 %v1502
    %1944 = vmatprep.subr.mxu0 0.0
    %1945 = vmatpush1.msra.mxu0 %v1503
    %1946 = vmatprep.subr.mxu0 0.0
    %1947 = vmatpush1.msra.mxu0 %v1504
    %1948 = vmatprep.subr.mxu0 0.0
    %1949 = vmatpush1.msra.mxu0 %v1505
    %1950 = vmatprep.subr.mxu0 0.0
    %1951 = vmatpush1.msra.mxu0 %v1506
    %1952 = vmatprep.subr.mxu0 0.0
    %1953 = vmatpush1.msra.mxu0 %v1507
    %1954 = vmatprep.subr.mxu0 0.0
    %1955 = vmatpush1.msra.mxu0 %v1508
    %1956 = vmatprep.subr.mxu0 0.0
    %1957 = vmatpush1.msra.mxu0 %v1509
    %1958 = vmatprep.subr.mxu0 0.0
    %1959 = vmatpush1.msra.mxu0 %v1510
    %1960 = vmatprep.subr.mxu0 0.0
    %1961 = vmatpush1.msra.mxu0 %v1511
    %1962 = vmatprep.subr.mxu0 0.0
    %1963 = vmatpush1.msra.mxu0 %v1512
    %1964 = vmatprep.subr.mxu0 0.0
    %1965 = vmatpush1.msra.mxu0 %v1513
    %1966 = vmatprep.subr.mxu0 0.0
    %1967 = vmatpush1.msra.mxu0 %v1514
    %1968 = vmatprep.subr.mxu0 0.0
    %1969 = vmatpush1.msra.mxu0 %v1515
    %1970 = vmatprep.subr.mxu0 0.0
    %1971 = vmatpush1.msra.mxu0 %v1516
    %1972 = vmatprep.subr.mxu0 0.0
    %1973 = vmatpush1.msra.mxu0 %v1517
    %1974 = vmatprep.subr.mxu0 0.0
    %1975 = vmatpush1.msra.mxu0 %v1518
    %1976 = vmatprep.subr.mxu0 0.0
    %1977 = vmatpush1.msra.mxu0 %v1519
    %1978 = vmatprep.subr.mxu0 0.0
    %1979 = vmatpush1.msra.mxu0 %v1520
    %1980 = vmatprep.subr.mxu0 0.0
    %1981 = vmatpush1.msra.mxu0 %v1521
    %1982 = vmatprep.subr.mxu0 0.0
    %1983 = vmatpush1.msra.mxu0 %v1522
    %1984 = vmatprep.subr.mxu0 0.0
    %1985 = vmatpush1.msra.mxu0 %v1523
    %1986 = vmatprep.subr.mxu0 0.0
    %1987 = vmatpush1.msra.mxu0 %v1524
    %1988 = vmatprep.subr.mxu0 0.0
    %1989 = vmatpush1.msra.mxu0 %v1525
    %1990 = vmatprep.subr.mxu0 0.0
    %1991 = vmatpush1.msra.mxu0 %v1526
    %1992 = vmatprep.subr.mxu0 0.0
    %1993 = vmatpush1.msra.mxu0 %v1527
    %1994 = vmatprep.subr.mxu0 0.0
    %1995 = vmatpush1.msra.mxu0 %v1528
    %1996 = vmatprep.mubr.f32.mxu0 %v1346
    %1997 = vmatmul.mubr.f32.gmra.mrb[0].mxu0 %v1345
    %v1998 = vpop.f32.mrb[0].mxu0
    %v1999 = vadd.f32 %v1924, %v1998
    %v2000 = vpop.f32.mrb[0].mxu0
    %2001 = vmatprep.mubr.f32.mxu0 %v1362
    %2002 = vmatmul.mubr.f32.gmra.mrb[0].mxu0 %v1361
    %v2003 = vpop.f32.mrb[0].mxu0
    %v2004 = vadd.f32 %v1929, %v2003
    %v2005 = vpop.f32.mrb[0].mxu0
    %2006 = vdwg.mxu0
    %2007 = vmatprep.subr.mxu0 0.0
    %2008 = vmatpush1.msra.mxu0 %v1529
    %2009 = vmatprep.subr.mxu0 0.0
    %2010 = vmatpush1.msra.mxu0 %v1530
    %2011 = vmatprep.subr.mxu0 0.0
    %2012 = vmatpush1.msra.mxu0 %v1531
    %2013 = vmatprep.subr.mxu0 0.0
    %2014 = vmatpush1.msra.mxu0 %v1532
    %2015 = vmatprep.subr.mxu0 0.0
    %2016 = vmatpush1.msra.mxu0 %v1533
    %2017 = vmatprep.subr.mxu0 0.0
    %2018 = vmatpush1.msra.mxu0 %v1534
    %2019 = vmatprep.subr.mxu0 0.0
    %2020 = vmatpush1.msra.mxu0 %v1535
    %2021 = vmatprep.subr.mxu0 0.0
    %2022 = vmatpush1.msra.mxu0 %v1536
    %2023 = vmatprep.subr.mxu0 0.0
    %2024 = vmatpush1.msra.mxu0 %v1537
    %2025 = vmatprep.subr.mxu0 0.0
    %2026 = vmatpush1.msra.mxu0 %v1538
    %2027 = vmatprep.subr.mxu0 0.0
    %2028 = vmatpush1.msra.mxu0 %v1539
    %2029 = vmatprep.subr.mxu0 0.0
    %2030 = vmatpush1.msra.mxu0 %v1540
    %2031 = vmatprep.subr.mxu0 0.0
    %2032 = vmatpush1.msra.mxu0 %v1541
    %2033 = vmatprep.subr.mxu0 0.0
    %2034 = vmatpush1.msra.mxu0 %v1542
    %2035 = vmatprep.subr.mxu0 0.0
    %2036 = vmatpush1.msra.mxu0 %v1543
    %2037 = vmatprep.subr.mxu0 0.0
    %2038 = vmatpush1.msra.mxu0 %v1544
    %2039 = vmatprep.subr.mxu0 0.0
    %2040 = vmatpush1.msra.mxu0 %v1545
    %2041 = vmatprep.subr.mxu0 0.0
    %2042 = vmatpush1.msra.mxu0 %v1546
    %2043 = vmatprep.subr.mxu0 0.0
    %2044 = vmatpush1.msra.mxu0 %v1547
    %2045 = vmatprep.subr.mxu0 0.0
    %2046 = vmatpush1.msra.mxu0 %v1548
    %2047 = vmatprep.subr.mxu0 0.0
    %2048 = vmatpush1.msra.mxu0 %v1549
    %2049 = vmatprep.subr.mxu0 0.0
    %2050 = vmatpush1.msra.mxu0 %v1550
    %2051 = vmatprep.subr.mxu0 0.0
    %2052 = vmatpush1.msra.mxu0 %v1551
    %2053 = vmatprep.subr.mxu0 0.0
    %2054 = vmatpush1.msra.mxu0 %v1552
    %2055 = vmatprep.subr.mxu0 0.0
    %2056 = vmatpush1.msra.mxu0 %v1553
    %2057 = vmatprep.subr.mxu0 0.0
    %2058 = vmatpush1.msra.mxu0 %v1554
    %2059 = vmatprep.subr.mxu0 0.0
    %2060 = vmatpush1.msra.mxu0 %v1555
    %2061 = vmatprep.subr.mxu0 0.0
    %2062 = vmatpush1.msra.mxu0 %v1556
    %2063 = vmatprep.subr.mxu0 0.0
    %2064 = vmatpush1.msra.mxu0 %v1557
    %2065 = vmatprep.subr.mxu0 0.0
    %2066 = vmatpush1.msra.mxu0 %v1558
    %2067 = vmatprep.subr.mxu0 0.0
    %2068 = vmatpush1.msra.mxu0 %v1559
    %2069 = vmatprep.subr.mxu0 0.0
    %2070 = vmatpush1.msra.mxu0 %v1560
    %2071 = vmatprep.mubr.f32.mxu0 %v1348
    %2072 = vmatmul.mubr.f32.gmra.mrb[0].mxu0 %v1347
    %v2073 = vpop.f32.mrb[0].mxu0
    %v2074 = vadd.f32 %v1999, %v2073
    %v2075 = vpop.f32.mrb[0].mxu0
    %2076 = vmatprep.mubr.f32.mxu0 %v1364
    %2077 = vmatmul.mubr.f32.gmra.mrb[0].mxu0 %v1363
    %v2078 = vpop.f32.mrb[0].mxu0
    %v2079 = vadd.f32 %v2004, %v2078
    %v2080 = vpop.f32.mrb[0].mxu0
    %2081 = vdwg.mxu0
    %2082 = vmatprep.subr.mxu0 0.0
    %2083 = vmatpush1.msra.mxu0 %v1561
    %2084 = vmatprep.subr.mxu0 0.0
    %2085 = vmatpush1.msra.mxu0 %v1562
    %2086 = vmatprep.subr.mxu0 0.0
    %2087 = vmatpush1.msra.mxu0 %v1563
    %2088 = vmatprep.subr.mxu0 0.0
    %2089 = vmatpush1.msra.mxu0 %v1564
    %2090 = vmatprep.subr.mxu0 0.0
    %2091 = vmatpush1.msra.mxu0 %v1565
    %2092 = vmatprep.subr.mxu0 0.0
    %2093 = vmatpush1.msra.mxu0 %v1566
    %2094 = vmatprep.subr.mxu0 0.0
    %2095 = vmatpush1.msra.mxu0 %v1567
    %2096 = vmatprep.subr.mxu0 0.0
    %2097 = vmatpush1.msra.mxu0 %v1568
    %2098 = vmatprep.subr.mxu0 0.0
    %2099 = vmatpush1.msra.mxu0 %v1569
    %2100 = vmatprep.subr.mxu0 0.0
    %2101 = vmatpush1.msra.mxu0 %v1570
    %2102 = vmatprep.subr.mxu0 0.0
    %2103 = vmatpush1.msra.mxu0 %v1571
    %2104 = vmatprep.subr.mxu0 0.0
    %2105 = vmatpush1.msra.mxu0 %v1572
    %2106 = vmatprep.subr.mxu0 0.0
    %2107 = vmatpush1.msra.mxu0 %v1573
    %2108 = vmatprep.subr.mxu0 0.0
    %2109 = vmatpush1.msra.mxu0 %v1574
    %2110 = vmatprep.subr.mxu0 0.0
    %2111 = vmatpush1.msra.mxu0 %v1575
    %2112 = vmatprep.subr.mxu0 0.0
    %2113 = vmatpush1.msra.mxu0 %v1576
    %2114 = vmatprep.subr.mxu0 0.0
    %2115 = vmatpush1.msra.mxu0 %v1577
    %2116 = vmatprep.subr.mxu0 0.0
    %2117 = vmatpush1.msra.mxu0 %v1578
    %2118 = vmatprep.subr.mxu0 0.0
    %2119 = vmatpush1.msra.mxu0 %v1579
    %2120 = vmatprep.subr.mxu0 0.0
    %2121 = vmatpush1.msra.mxu0 %v1580
    %2122 = vmatprep.subr.mxu0 0.0
    %2123 = vmatpush1.msra.mxu0 %v1581
    %2124 = vmatprep.subr.mxu0 0.0
    %2125 = vmatpush1.msra.mxu0 %v1582
    %2126 = vmatprep.subr.mxu0 0.0
    %2127 = vmatpush1.msra.mxu0 %v1583
    %2128 = vmatprep.subr.mxu0 0.0
    %2129 = vmatpush1.msra.mxu0 %v1584
    %2130 = vmatprep.subr.mxu0 0.0
    %2131 = vmatpush1.msra.mxu0 %v1585
    %2132 = vmatprep.subr.mxu0 0.0
    %2133 = vmatpush1.msra.mxu0 %v1586
    %2134 = vmatprep.subr.mxu0 0.0
    %2135 = vmatpush1.msra.mxu0 %v1587
    %2136 = vmatprep.subr.mxu0 0.0
    %2137 = vmatpush1.msra.mxu0 %v1588
    %2138 = vmatprep.subr.mxu0 0.0
    %2139 = vmatpush1.msra.mxu0 %v1589
    %2140 = vmatprep.subr.mxu0 0.0
    %2141 = vmatpush1.msra.mxu0 %v1590
    %2142 = vmatprep.subr.mxu0 0.0
    %2143 = vmatpush1.msra.mxu0 %v1591
    %2144 = vmatprep.subr.mxu0 0.0
    %2145 = vmatpush1.msra.mxu0 %v1592
    %2146 = vmatprep.mubr.f32.mxu0 %v1350
    %2147 = vmatmul.mubr.f32.gmra.mrb[0].mxu0 %v1349
    %v2148 = vpop.f32.mrb[0].mxu0
    %v2149 = vadd.f32 %v2074, %v2148
    %v2150 = vpop.f32.mrb[0].mxu0
    %2151 = vmatprep.mubr.f32.mxu0 %v1366
    %2152 = vmatmul.mubr.f32.gmra.mrb[0].mxu0 %v1365
    %v2153 = vpop.f32.mrb[0].mxu0
    %v2154 = vadd.f32 %v2079, %v2153
    %v2155 = vpop.f32.mrb[0].mxu0
    %2156 = vdwg.mxu0
    %2157 = vmatprep.subr.mxu0 0.0
    %2158 = vmatpush1.msra.mxu0 %v1593
    %2159 = vmatprep.subr.mxu0 0.0
    %2160 = vmatpush1.msra.mxu0 %v1594
    %2161 = vmatprep.subr.mxu0 0.0
    %2162 = vmatpush1.msra.mxu0 %v1595
    %2163 = vmatprep.subr.mxu0 0.0
    %2164 = vmatpush1.msra.mxu0 %v1596
    %2165 = vmatprep.subr.mxu0 0.0
    %2166 = vmatpush1.msra.mxu0 %v1597
    %2167 = vmatprep.subr.mxu0 0.0
    %2168 = vmatpush1.msra.mxu0 %v1598
    %2169 = vmatprep.subr.mxu0 0.0
    %2170 = vmatpush1.msra.mxu0 %v1599
    %2171 = vmatprep.subr.mxu0 0.0
    %2172 = vmatpush1.msra.mxu0 %v1600
    %2173 = vmatprep.subr.mxu0 0.0
    %2174 = vmatpush1.msra.mxu0 %v1601
    %2175 = vmatprep.subr.mxu0 0.0
    %2176 = vmatpush1.msra.mxu0 %v1602
    %2177 = vmatprep.subr.mxu0 0.0
    %2178 = vmatpush1.msra.mxu0 %v1603
    %2179 = vmatprep.subr.mxu0 0.0
    %2180 = vmatpush1.msra.mxu0 %v1604
    %2181 = vmatprep.subr.mxu0 0.0
    %2182 = vmatpush1.msra.mxu0 %v1605
    %2183 = vmatprep.subr.mxu0 0.0
    %2184 = vmatpush1.msra.mxu0 %v1606
    %2185 = vmatprep.subr.mxu0 0.0
    %2186 = vmatpush1.msra.mxu0 %v1607
    %2187 = vmatprep.subr.mxu0 0.0
    %2188 = vmatpush1.msra.mxu0 %v1608
    %2189 = vmatprep.subr.mxu0 0.0
    %2190 = vmatpush1.msra.mxu0 %v1609
    %2191 = vmatprep.subr.mxu0 0.0
    %2192 = vmatpush1.msra.mxu0 %v1610
    %2193 = vmatprep.subr.mxu0 0.0
    %2194 = vmatpush1.msra.mxu0 %v1611
    %2195 = vmatprep.subr.mxu0 0.0
    %2196 = vmatpush1.msra.mxu0 %v1612
    %2197 = vmatprep.subr.mxu0 0.0
    %2198 = vmatpush1.msra.mxu0 %v1613
    %2199 = vmatprep.subr.mxu0 0.0
    %2200 = vmatpush1.msra.mxu0 %v1614
    %2201 = vmatprep.subr.mxu0 0.0
    %2202 = vmatpush1.msra.mxu0 %v1615
    %2203 = vmatprep.subr.mxu0 0.0
    %2204 = vmatpush1.msra.mxu0 %v1616
    %2205 = vmatprep.subr.mxu0 0.0
    %2206 = vmatpush1.msra.mxu0 %v1617
    %2207 = vmatprep.subr.mxu0 0.0
    %2208 = vmatpush1.msra.mxu0 %v1618
    %2209 = vmatprep.subr.mxu0 0.0
    %2210 = vmatpush1.msra.mxu0 %v1619
    %2211 = vmatprep.subr.mxu0 0.0
    %2212 = vmatpush1.msra.mxu0 %v1620
    %2213 = vmatprep.subr.mxu0 0.0
    %2214 = vmatpush1.msra.mxu0 %v1621
    %2215 = vmatprep.subr.mxu0 0.0
    %2216 = vmatpush1.msra.mxu0 %v1622
    %2217 = vmatprep.subr.mxu0 0.0
    %2218 = vmatpush1.msra.mxu0 %v1623
    %2219 = vmatprep.subr.mxu0 0.0
    %2220 = vmatpush1.msra.mxu0 %v1624
    %2221 = vmatprep.mubr.f32.mxu0 %v1352
    %2222 = vmatmul.mubr.f32.gmra.mrb[0].mxu0 %v1351
    %v2223 = vpop.f32.mrb[0].mxu0
    %v2224 = vadd.f32 %v2149, %v2223
    %v2225 = vpop.f32.mrb[0].mxu0
    %2226 = vmatprep.mubr.f32.mxu0 %v1368
    %2227 = vmatmul.mubr.f32.gmra.mrb[0].mxu0 %v1367
    %v2228 = vpop.f32.mrb[0].mxu0
    %v2229 = vadd.f32 %v2154, %v2228
    %v2230 = vpop.f32.mrb[0].mxu0
    %2231 = vdwg.mxu0
    %v2232 = vadd.f32 %v565, %v2224
    %v2233 = vadd.f32 %v566, %v2229
    %v2234 = vld [vmem:[%s13] sm:$0x1]
    %v2235 = vld [vmem:[%s14] sm:$0x1]
    %v2236 = vsel %vm141, %v2232, 0.0
    %2237 = vadd.xlane.f32.xlu0 %v2236
    %v2238 = vpop.xlane.xlu0 %2237
    %v2239 = vsel %vm141, %v2233, 0.0
    %2240 = vadd.xlane.f32.xlu0 %v2239
    %v2241 = vpop.xlane.xlu0 %2240
    %v2242 = vmul.f32 %v2238, %v530
    %v2243 = vmul.f32 %v2241, %v530
    %v2244 = vsub.f32 %v2232, %v2242
    %v2245 = vsub.f32 %v2233, %v2243
    %v2246 = vmul.f32 %v2244, %v2244
    %v2247 = vmul.f32 %v2245, %v2245
    %v2248 = vsel %vm141, %v2246, 0.0
    %2249 = vadd.xlane.f32.xlu0 %v2248
    %v2250 = vpop.xlane.xlu0 %2249
    %v2251 = vsel %vm141, %v2247, 0.0
    %2252 = vadd.xlane.f32.xlu0 %v2251
    %v2253 = vpop.xlane.xlu0 %2252
    %v2254 = vmul.f32 %v2250, %v530
    %v2255 = vmul.f32 %v2253, %v530
    %v2256 = vadd.f32 %v2254, 1e-05
    %v2257 = vadd.f32 %v2255, 1e-05
    %v2258 = vrsqrt.pop %v2256
    %v2259 = vrsqrt.pop %v2257
    %v2260 = vmul.f32 %v2244, %v2258
    %v2261 = vmul.f32 %v2245, %v2259
    %v2263 = vlaneseq
    %v2264 = vshrl.u32 %v2263, 7
    %v2265 = vsub.s32 0, %v2264
    %v2266 = vrot.slane %v2234, %v2265
    %v2268 = vmul.f32 %v2260, %v2266
    %v2269 = vmul.f32 %v2261, %v2266
    %v2271 = vlaneseq
    %v2272 = vshrl.u32 %v2271, 7
    %v2273 = vsub.s32 0, %v2272
    %v2274 = vrot.slane %v2235, %v2273
    %v2276 = vadd.f32 %v2268, %v2274
    %v2277 = vadd.f32 %v2269, %v2274
    %s2278 = scalar_lea.vmem %s3, 32
    %v2279 = vld [vmem:[%s2278] sm:$0xff]
    %v2280 = vld [vmem:[%s2278 + $0x8] sm:$0xff]
    %v2281 = vld [vmem:[%s2278 + $0x10] sm:$0xff]
    %v2282 = vld [vmem:[%s2278 + $0x18] sm:$0xff]
    %s2283 = scalar_lea.vmem %s4, 1
    %v2284 = vld [vmem:[%s2283] sm:$0x1]
    %v2286 = vlaneseq
    %v2287 = vshrl.u32 %v2286, 7
    %v2288 = vsub.s32 0, %v2287
    %v2289 = vrot.slane %v2284, %v2288
    %v2292 = vsel %vm141, %v2276, 0
    %v2295 = vsel %vm141, %v2277, 0
    %2297 = vmatprep.subr.mxu0 0.0
    %2298 = vmatpush1.msra.mxu0 %v2279
    %2299 = vmatprep.subr.mxu0 0.0
    %2300 = vmatpush1.msra.mxu0 %v2280
    %2301 = vmatprep.subr.mxu0 0.0
    %2302 = vmatpush1.msra.mxu0 %v2281
    %2303 = vmatprep.subr.mxu0 0.0
    %2304 = vmatpush1.msra.mxu0 %v2282
    %2305 = vmatprep.subr.mxu0 0.0
    %2306 = vmatpush1.msra.mxu0 0.0
    %2307 = vmatprep.subr.mxu0 0.0
    %2308 = vmatpush1.msra.mxu0 0.0
    %2309 = vmatprep.subr.mxu0 0.0
    %2310 = vmatpush1.msra.mxu0 0.0
    %2311 = vmatprep.subr.mxu0 0.0
    %2312 = vmatpush1.msra.mxu0 0.0
    %2313 = vmatprep.subr.mxu0 0.0
    %2314 = vmatpush1.msra.mxu0 0.0
    %2315 = vmatprep.subr.mxu0 0.0
    %2316 = vmatpush1.msra.mxu0 0.0
    %2317 = vmatprep.subr.mxu0 0.0
    %2318 = vmatpush1.msra.mxu0 0.0
    %2319 = vmatprep.subr.mxu0 0.0
    %2320 = vmatpush1.msra.mxu0 0.0
    %2321 = vmatprep.subr.mxu0 0.0
    %2322 = vmatpush1.msra.mxu0 0.0
    %2323 = vmatprep.subr.mxu0 0.0
    %2324 = vmatpush1.msra.mxu0 0.0
    %2325 = vmatprep.subr.mxu0 0.0
    %2326 = vmatpush1.msra.mxu0 0.0
    %2327 = vmatprep.subr.mxu0 0.0
    %2328 = vmatpush1.msra.mxu0 0.0
    %2329 = vmatprep.subr.mxu0 0.0
    %2330 = vmatpush1.msra.mxu0 0.0
    %2331 = vmatprep.subr.mxu0 0.0
    %2332 = vmatpush1.msra.mxu0 0.0
    %2333 = vmatprep.subr.mxu0 0.0
    %2334 = vmatpush1.msra.mxu0 0.0
    %2335 = vmatprep.subr.mxu0 0.0
    %2336 = vmatpush1.msra.mxu0 0.0
    %2337 = vmatprep.subr.mxu0 0.0
    %2338 = vmatpush1.msra.mxu0 0.0
    %2339 = vmatprep.subr.mxu0 0.0
    %2340 = vmatpush1.msra.mxu0 0.0
    %2341 = vmatprep.subr.mxu0 0.0
    %2342 = vmatpush1.msra.mxu0 0.0
    %2343 = vmatprep.subr.mxu0 0.0
    %2344 = vmatpush1.msra.mxu0 0.0
    %2345 = vmatprep.subr.mxu0 0.0
    %2346 = vmatpush1.msra.mxu0 0.0
    %2347 = vmatprep.subr.mxu0 0.0
    %2348 = vmatpush1.msra.mxu0 0.0
    %2349 = vmatprep.subr.mxu0 0.0
    %2350 = vmatpush1.msra.mxu0 0.0
    %2351 = vmatprep.subr.mxu0 0.0
    %2352 = vmatpush1.msra.mxu0 0.0
    %2353 = vmatprep.subr.mxu0 0.0
    %2354 = vmatpush1.msra.mxu0 0.0
    %2355 = vmatprep.subr.mxu0 0.0
    %2356 = vmatpush1.msra.mxu0 0.0
    %2357 = vmatprep.subr.mxu0 0.0
    %2358 = vmatpush1.msra.mxu0 0.0
    %2359 = vmatprep.subr.mxu0 0.0
    %2360 = vmatpush1.msra.mxu0 0.0
    %2361 = vmatprep.mubr.f32.mxu0 0.0
    %2362 = vmatmul.mubr.f32.gmra.mrb[0].mxu0 %v2292
    %v2363 = vpop.f32.mrb[0].mxu0
    %v2364 = vadd.f32 %v2289, %v2363
    %v2365 = vpop.f32.mrb[0].mxu0
    %2366 = vmatprep.mubr.f32.mxu0 0.0
    %2367 = vmatmul.mubr.f32.gmra.mrb[0].mxu0 %v2295
    %v2368 = vpop.f32.mrb[0].mxu0
    %v2369 = vadd.f32 %v2289, %v2368
    %v2370 = vpop.f32.mrb[0].mxu0
    %2371 = vdwg.mxu0
    %v2372 = vmul.f32 %v2364, 0.17677669
    %v2373 = vmul.f32 %v2369, 0.17677669
    %2376 = vrot.lane.b32.xlu0 %v2364, 96
    %v2377 = vpop.permute.xlu0 %2376
    %2378 = vrot.lane.b32.xlu0 %v2369, 96
    %v2379 = vpop.permute.xlu0 %2378
    %v2381 = vsel %vm141, %v2372, 0
    %v2384 = vsel %vm141, %v2373, 0
    %v2386 = vsel %vm141, %v2377, 0
    %v2388 = vsel %vm141, %v2379, 0
    %2390 = vmatprep.subr.mxu0 0.0
    %2391 = vmatpush1.xpose.msra.mxu0 %v2386
    %2392 = vmatprep.subr.mxu0 0.0
    %2393 = vmatpush1.xpose.msra.mxu0 %v2388
    %2394 = vmatprep.subr.mxu0 0.0
    %2395 = vmatpush1.xpose.msra.mxu0 0.0
    %2396 = vmatprep.subr.mxu0 0.0
    %2397 = vmatpush1.xpose.msra.mxu0 0.0
    %2398 = vmatprep.subr.mxu0 0.0
    %2399 = vmatpush1.xpose.msra.mxu0 0.0
    %2400 = vmatprep.subr.mxu0 0.0
    %2401 = vmatpush1.xpose.msra.mxu0 0.0
    %2402 = vmatprep.subr.mxu0 0.0
    %2403 = vmatpush1.xpose.msra.mxu0 0.0
    %2404 = vmatprep.subr.mxu0 0.0
    %2405 = vmatpush1.xpose.msra.mxu0 0.0
    %2406 = vmatprep.subr.mxu0 0.0
    %2407 = vmatpush1.xpose.msra.mxu0 0.0
    %2408 = vmatprep.subr.mxu0 0.0
    %2409 = vmatpush1.xpose.msra.mxu0 0.0
    %2410 = vmatprep.subr.mxu0 0.0
    %2411 = vmatpush1.xpose.msra.mxu0 0.0
    %2412 = vmatprep.subr.mxu0 0.0
    %2413 = vmatpush1.xpose.msra.mxu0 0.0
    %2414 = vmatprep.subr.mxu0 0.0
    %2415 = vmatpush1.xpose.msra.mxu0 0.0
    %2416 = vmatprep.subr.mxu0 0.0
    %2417 = vmatpush1.xpose.msra.mxu0 0.0
    %2418 = vmatprep.subr.mxu0 0.0
    %2419 = vmatpush1.xpose.msra.mxu0 0.0
    %2420 = vmatprep.subr.mxu0 0.0
    %2421 = vmatpush1.xpose.msra.mxu0 0.0
    %2422 = vmatprep.subr.mxu0 0.0
    %2423 = vmatpush1.xpose.msra.mxu0 0.0
    %2424 = vmatprep.subr.mxu0 0.0
    %2425 = vmatpush1.xpose.msra.mxu0 0.0
    %2426 = vmatprep.subr.mxu0 0.0
    %2427 = vmatpush1.xpose.msra.mxu0 0.0
    %2428 = vmatprep.subr.mxu0 0.0
    %2429 = vmatpush1.xpose.msra.mxu0 0.0
    %2430 = vmatprep.subr.mxu0 0.0
    %2431 = vmatpush1.xpose.msra.mxu0 0.0
    %2432 = vmatprep.subr.mxu0 0.0
    %2433 = vmatpush1.xpose.msra.mxu0 0.0
    %2434 = vmatprep.subr.mxu0 0.0
    %2435 = vmatpush1.xpose.msra.mxu0 0.0
    %2436 = vmatprep.subr.mxu0 0.0
    %2437 = vmatpush1.xpose.msra.mxu0 0.0
    %2438 = vmatprep.subr.mxu0 0.0
    %2439 = vmatpush1.xpose.msra.mxu0 0.0
    %2440 = vmatprep.subr.mxu0 0.0
    %2441 = vmatpush1.xpose.msra.mxu0 0.0
    %2442 = vmatprep.subr.mxu0 0.0
    %2443 = vmatpush1.xpose.msra.mxu0 0.0
    %2444 = vmatprep.subr.mxu0 0.0
    %2445 = vmatpush1.xpose.msra.mxu0 0.0
    %2446 = vmatprep.subr.mxu0 0.0
    %2447 = vmatpush1.xpose.msra.mxu0 0.0
    %2448 = vmatprep.subr.mxu0 0.0
    %2449 = vmatpush1.xpose.msra.mxu0 0.0
    %2450 = vmatprep.subr.mxu0 0.0
    %2451 = vmatpush1.xpose.msra.mxu0 0.0
    %2452 = vmatprep.subr.mxu0 0.0
    %2453 = vmatpush1.xpose.msra.mxu0 0.0
    %2454 = vmatprep.mubr.f32.mxu0 0.0
    %2455 = vmatmul.mubr.f32.gmra.mrb[0].mxu0 %v2381
    %v2456 = vpop.f32.mrb[0].mxu0
    %v2457 = vadd.f32 0.0, %v2456
    %v2458 = vpop.f32.mrb[0].mxu0
    %2459 = vmatprep.mubr.f32.mxu0 0.0
    %2460 = vmatmul.mubr.f32.gmra.mrb[0].mxu0 %v2384
    %v2461 = vpop.f32.mrb[0].mxu0
    %v2462 = vadd.f32 0.0, %v2461
    %v2463 = vpop.f32.mrb[0].mxu0
    %2464 = vdwg.mxu0
    %v2465 = vsel %vm128, %v2457, -1e+30
    %v2466 = vsel %vm129, %v2462, -1e+30
    %v2467 = vsel %vm318, %v2465, -inf
    %2468 = vmax.xlane.f32.xlu0 %v2467
    %v2469 = vpop.xlane.xlu0 %2468
    %v2470 = vsel %vm318, %v2466, -inf
    %2471 = vmax.xlane.f32.xlu0 %v2470
    %v2472 = vpop.xlane.xlu0 %2471
    %v2473 = vsub.f32 %v2465, %v2469
    %v2474 = vsub.f32 %v2466, %v2472
    %v2475 = vmul.f32 %v2473, 1.442695
    %v2476 = vpow.pop %v2475
    %v2477 = vmul.f32 %v2474, 1.442695
    %v2478 = vpow.pop %v2477
    %v2479 = vsel %vm318, %v2476, 0.0
    %2480 = vadd.xlane.f32.xlu0 %v2479
    %v2481 = vpop.xlane.xlu0 %2480
    %v2482 = vsel %vm318, %v2478, 0.0
    %2483 = vadd.xlane.f32.xlu0 %v2482
    %v2484 = vpop.xlane.xlu0 %2483
    %v2485 = vrcp.pop %v2481
    %v2486 = vrcp.pop %v2484
    %v2487 = vmul.f32 %v2476, %v2485
    %v2488 = vmul.f32 %v2478, %v2486
    %2489 = vrot.lane.b32.xlu0 %v2364, 64
    %v2490 = vpop.permute.xlu0 %2489
    %2491 = vrot.lane.b32.xlu0 %v2369, 64
    %v2492 = vpop.permute.xlu0 %2491
    %v2496 = vsel %vm318, %v2487, 0
    %v2499 = vsel %vm318, %v2488, 0
    %2501 = vmatprep.subr.mxu0 0.0
    %2502 = vmatpush1.msra.mxu0 %v2490
    %2503 = vmatprep.subr.mxu0 0.0
    %2504 = vmatpush1.msra.mxu0 %v2492
    %2505 = vmatprep.subr.mxu0 0.0
    %2506 = vmatpush1.msra.mxu0 0.0
    %2507 = vmatprep.subr.mxu0 0.0
    %2508 = vmatpush1.msra.mxu0 0.0
    %2509 = vmatprep.subr.mxu0 0.0
    %2510 = vmatpush1.msra.mxu0 0.0
    %2511 = vmatprep.subr.mxu0 0.0
    %2512 = vmatpush1.msra.mxu0 0.0
    %2513 = vmatprep.subr.mxu0 0.0
    %2514 = vmatpush1.msra.mxu0 0.0
    %2515 = vmatprep.subr.mxu0 0.0
    %2516 = vmatpush1.msra.mxu0 0.0
    %2517 = vmatprep.subr.mxu0 0.0
    %2518 = vmatpush1.msra.mxu0 0.0
    %2519 = vmatprep.subr.mxu0 0.0
    %2520 = vmatpush1.msra.mxu0 0.0
    %2521 = vmatprep.subr.mxu0 0.0
    %2522 = vmatpush1.msra.mxu0 0.0
    %2523 = vmatprep.subr.mxu0 0.0
    %2524 = vmatpush1.msra.mxu0 0.0
    %2525 = vmatprep.subr.mxu0 0.0
    %2526 = vmatpush1.msra.mxu0 0.0
    %2527 = vmatprep.subr.mxu0 0.0
    %2528 = vmatpush1.msra.mxu0 0.0
    %2529 = vmatprep.subr.mxu0 0.0
    %2530 = vmatpush1.msra.mxu0 0.0
    %2531 = vmatprep.subr.mxu0 0.0
    %2532 = vmatpush1.msra.mxu0 0.0
    %2533 = vmatprep.subr.mxu0 0.0
    %2534 = vmatpush1.msra.mxu0 0.0
    %2535 = vmatprep.subr.mxu0 0.0
    %2536 = vmatpush1.msra.mxu0 0.0
    %2537 = vmatprep.subr.mxu0 0.0
    %2538 = vmatpush1.msra.mxu0 0.0
    %2539 = vmatprep.subr.mxu0 0.0
    %2540 = vmatpush1.msra.mxu0 0.0
    %2541 = vmatprep.subr.mxu0 0.0
    %2542 = vmatpush1.msra.mxu0 0.0
    %2543 = vmatprep.subr.mxu0 0.0
    %2544 = vmatpush1.msra.mxu0 0.0
    %2545 = vmatprep.subr.mxu0 0.0
    %2546 = vmatpush1.msra.mxu0 0.0
    %2547 = vmatprep.subr.mxu0 0.0
    %2548 = vmatpush1.msra.mxu0 0.0
    %2549 = vmatprep.subr.mxu0 0.0
    %2550 = vmatpush1.msra.mxu0 0.0
    %2551 = vmatprep.subr.mxu0 0.0
    %2552 = vmatpush1.msra.mxu0 0.0
    %2553 = vmatprep.subr.mxu0 0.0
    %2554 = vmatpush1.msra.mxu0 0.0
    %2555 = vmatprep.subr.mxu0 0.0
    %2556 = vmatpush1.msra.mxu0 0.0
    %2557 = vmatprep.subr.mxu0 0.0
    %2558 = vmatpush1.msra.mxu0 0.0
    %2559 = vmatprep.subr.mxu0 0.0
    %2560 = vmatpush1.msra.mxu0 0.0
    %2561 = vmatprep.subr.mxu0 0.0
    %2562 = vmatpush1.msra.mxu0 0.0
    %2563 = vmatprep.subr.mxu0 0.0
    %2564 = vmatpush1.msra.mxu0 0.0
    %2565 = vmatprep.mubr.f32.mxu0 0.0
    %2566 = vmatmul.mubr.f32.gmra.mrb[0].mxu0 %v2496
    %v2567 = vpop.f32.mrb[0].mxu0
    %v2568 = vadd.f32 0.0, %v2567
    %v2569 = vpop.f32.mrb[0].mxu0
    %2570 = vmatprep.mubr.f32.mxu0 0.0
    %2571 = vmatmul.mubr.f32.gmra.mrb[0].mxu0 %v2499
    %v2572 = vpop.f32.mrb[0].mxu0
    %v2573 = vadd.f32 0.0, %v2572
    %v2574 = vpop.f32.mrb[0].mxu0
    %2575 = vdwg.mxu0
    %s2576 = scalar_lea.vmem %s5, 32
    %v2577 = vld [vmem:[%s2576] sm:$0xff]
    %v2578 = vld [vmem:[%s2576 + $0x8] sm:$0xff]
    %v2579 = vld [vmem:[%s2576 + $0x10] sm:$0xff]
    %v2580 = vld [vmem:[%s2576 + $0x18] sm:$0xff]
    %s2581 = scalar_lea.vmem %s6, 1
    %v2582 = vld [vmem:[%s2581] sm:$0x1]
    %v2584 = vlaneseq
    %v2585 = vshrl.u32 %v2584, 7
    %v2586 = vsub.s32 0, %v2585
    %v2587 = vrot.slane %v2582, %v2586
    %v2590 = vsel %vm141, %v2568, 0
    %v2593 = vsel %vm141, %v2573, 0
    %2595 = vmatprep.subr.mxu0 0.0
    %2596 = vmatpush1.msra.mxu0 %v2577
    %2597 = vmatprep.subr.mxu0 0.0
    %2598 = vmatpush1.msra.mxu0 %v2578
    %2599 = vmatprep.subr.mxu0 0.0
    %2600 = vmatpush1.msra.mxu0 %v2579
    %2601 = vmatprep.subr.mxu0 0.0
    %2602 = vmatpush1.msra.mxu0 %v2580
    %2603 = vmatprep.subr.mxu0 0.0
    %2604 = vmatpush1.msra.mxu0 0.0
    %2605 = vmatprep.subr.mxu0 0.0
    %2606 = vmatpush1.msra.mxu0 0.0
    %2607 = vmatprep.subr.mxu0 0.0
    %2608 = vmatpush1.msra.mxu0 0.0
    %2609 = vmatprep.subr.mxu0 0.0
    %2610 = vmatpush1.msra.mxu0 0.0
    %2611 = vmatprep.subr.mxu0 0.0
    %2612 = vmatpush1.msra.mxu0 0.0
    %2613 = vmatprep.subr.mxu0 0.0
    %2614 = vmatpush1.msra.mxu0 0.0
    %2615 = vmatprep.subr.mxu0 0.0
    %2616 = vmatpush1.msra.mxu0 0.0
    %2617 = vmatprep.subr.mxu0 0.0
    %2618 = vmatpush1.msra.mxu0 0.0
    %2619 = vmatprep.subr.mxu0 0.0
    %2620 = vmatpush1.msra.mxu0 0.0
    %2621 = vmatprep.subr.mxu0 0.0
    %2622 = vmatpush1.msra.mxu0 0.0
    %2623 = vmatprep.subr.mxu0 0.0
    %2624 = vmatpush1.msra.mxu0 0.0
    %2625 = vmatprep.subr.mxu0 0.0
    %2626 = vmatpush1.msra.mxu0 0.0
    %2627 = vmatprep.subr.mxu0 0.0
    %2628 = vmatpush1.msra.mxu0 0.0
    %2629 = vmatprep.subr.mxu0 0.0
    %2630 = vmatpush1.msra.mxu0 0.0
    %2631 = vmatprep.subr.mxu0 0.0
    %2632 = vmatpush1.msra.mxu0 0.0
    %2633 = vmatprep.subr.mxu0 0.0
    %2634 = vmatpush1.msra.mxu0 0.0
    %2635 = vmatprep.subr.mxu0 0.0
    %2636 = vmatpush1.msra.mxu0 0.0
    %2637 = vmatprep.subr.mxu0 0.0
    %2638 = vmatpush1.msra.mxu0 0.0
    %2639 = vmatprep.subr.mxu0 0.0
    %2640 = vmatpush1.msra.mxu0 0.0
    %2641 = vmatprep.subr.mxu0 0.0
    %2642 = vmatpush1.msra.mxu0 0.0
    %2643 = vmatprep.subr.mxu0 0.0
    %2644 = vmatpush1.msra.mxu0 0.0
    %2645 = vmatprep.subr.mxu0 0.0
    %2646 = vmatpush1.msra.mxu0 0.0
    %2647 = vmatprep.subr.mxu0 0.0
    %2648 = vmatpush1.msra.mxu0 0.0
    %2649 = vmatprep.subr.mxu0 0.0
    %2650 = vmatpush1.msra.mxu0 0.0
    %2651 = vmatprep.subr.mxu0 0.0
    %2652 = vmatpush1.msra.mxu0 0.0
    %2653 = vmatprep.subr.mxu0 0.0
    %2654 = vmatpush1.msra.mxu0 0.0
    %2655 = vmatprep.subr.mxu0 0.0
    %2656 = vmatpush1.msra.mxu0 0.0
    %2657 = vmatprep.subr.mxu0 0.0
    %2658 = vmatpush1.msra.mxu0 0.0
    %2659 = vmatprep.mubr.f32.mxu0 0.0
    %2660 = vmatmul.mubr.f32.gmra.mrb[0].mxu0 %v2590
    %v2661 = vpop.f32.mrb[0].mxu0
    %v2662 = vadd.f32 %v2587, %v2661
    %v2663 = vpop.f32.mrb[0].mxu0
    %2664 = vmatprep.mubr.f32.mxu0 0.0
    %2665 = vmatmul.mubr.f32.gmra.mrb[0].mxu0 %v2593
    %v2666 = vpop.f32.mrb[0].mxu0
    %v2667 = vadd.f32 %v2587, %v2666
    %v2668 = vpop.f32.mrb[0].mxu0
    %2669 = vdwg.mxu0
    %v2670 = vadd.f32 %v2276, %v2662
    %v2671 = vadd.f32 %v2277, %v2667
    %s2672 = scalar_lea.vmem %s11, 1
    %v2673 = vld [vmem:[%s2672] sm:$0x1]
    %s2674 = scalar_lea.vmem %s12, 1
    %v2675 = vld [vmem:[%s2674] sm:$0x1]
    %v2676 = vsel %vm141, %v2670, 0.0
    %2677 = vadd.xlane.f32.xlu0 %v2676
    %v2678 = vpop.xlane.xlu0 %2677
    %v2679 = vsel %vm141, %v2671, 0.0
    %2680 = vadd.xlane.f32.xlu0 %v2679
    %v2681 = vpop.xlane.xlu0 %2680
    %v2682 = vmul.f32 %v2678, %v530
    %v2683 = vmul.f32 %v2681, %v530
    %v2684 = vsub.f32 %v2670, %v2682
    %v2685 = vsub.f32 %v2671, %v2683
    %v2686 = vmul.f32 %v2684, %v2684
    %v2687 = vmul.f32 %v2685, %v2685
    %v2688 = vsel %vm141, %v2686, 0.0
    %2689 = vadd.xlane.f32.xlu0 %v2688
    %v2690 = vpop.xlane.xlu0 %2689
    %v2691 = vsel %vm141, %v2687, 0.0
    %2692 = vadd.xlane.f32.xlu0 %v2691
    %v2693 = vpop.xlane.xlu0 %2692
    %v2694 = vmul.f32 %v2690, %v530
    %v2695 = vmul.f32 %v2693, %v530
    %v2696 = vadd.f32 %v2694, 1e-05
    %v2697 = vadd.f32 %v2695, 1e-05
    %v2698 = vrsqrt.pop %v2696
    %v2699 = vrsqrt.pop %v2697
    %v2700 = vmul.f32 %v2684, %v2698
    %v2701 = vmul.f32 %v2685, %v2699
    %v2703 = vlaneseq
    %v2704 = vshrl.u32 %v2703, 7
    %v2705 = vsub.s32 0, %v2704
    %v2706 = vrot.slane %v2673, %v2705
    %v2708 = vmul.f32 %v2700, %v2706
    %v2709 = vmul.f32 %v2701, %v2706
    %v2711 = vlaneseq
    %v2712 = vshrl.u32 %v2711, 7
    %v2713 = vsub.s32 0, %v2712
    %v2714 = vrot.slane %v2675, %v2713
    %v2716 = vadd.f32 %v2708, %v2714
    %v2717 = vadd.f32 %v2709, %v2714
    %s2718 = scalar_lea.vmem %s7, 512
    %v2719 = vld [vmem:[%s2718] sm:$0xff]
    %v2720 = vld [vmem:[%s2718 + $0x8] sm:$0xff]
    %v2721 = vld [vmem:[%s2718 + $0x10] sm:$0xff]
    %v2722 = vld [vmem:[%s2718 + $0x18] sm:$0xff]
    %v2723 = vld [vmem:[%s2718 + $0x20] sm:$0xff]
    %v2724 = vld [vmem:[%s2718 + $0x28] sm:$0xff]
    %v2725 = vld [vmem:[%s2718 + $0x30] sm:$0xff]
    %v2726 = vld [vmem:[%s2718 + $0x38] sm:$0xff]
    %v2727 = vld [vmem:[%s2718 + $0x40] sm:$0xff]
    %v2728 = vld [vmem:[%s2718 + $0x48] sm:$0xff]
    %v2729 = vld [vmem:[%s2718 + $0x50] sm:$0xff]
    %v2730 = vld [vmem:[%s2718 + $0x58] sm:$0xff]
    %v2731 = vld [vmem:[%s2718 + $0x60] sm:$0xff]
    %v2732 = vld [vmem:[%s2718 + $0x68] sm:$0xff]
    %v2733 = vld [vmem:[%s2718 + $0x70] sm:$0xff]
    %v2734 = vld [vmem:[%s2718 + $0x78] sm:$0xff]
    %v2735 = vld [vmem:[%s2718 + $0x80] sm:$0xff]
    %v2736 = vld [vmem:[%s2718 + $0x88] sm:$0xff]
    %v2737 = vld [vmem:[%s2718 + $0x90] sm:$0xff]
    %v2738 = vld [vmem:[%s2718 + $0x98] sm:$0xff]
    %v2739 = vld [vmem:[%s2718 + $0xa0] sm:$0xff]
    %v2740 = vld [vmem:[%s2718 + $0xa8] sm:$0xff]
    %v2741 = vld [vmem:[%s2718 + $0xb0] sm:$0xff]
    %v2742 = vld [vmem:[%s2718 + $0xb8] sm:$0xff]
    %v2743 = vld [vmem:[%s2718 + $0xc0] sm:$0xff]
    %v2744 = vld [vmem:[%s2718 + $0xc8] sm:$0xff]
    %v2745 = vld [vmem:[%s2718 + $0xd0] sm:$0xff]
    %v2746 = vld [vmem:[%s2718 + $0xd8] sm:$0xff]
    %v2747 = vld [vmem:[%s2718 + $0xe0] sm:$0xff]
    %v2748 = vld [vmem:[%s2718 + $0xe8] sm:$0xff]
    %v2749 = vld [vmem:[%s2718 + $0xf0] sm:$0xff]
    %v2750 = vld [vmem:[%s2718 + $0xf8] sm:$0xff]
    %v2751 = vld [vmem:[%s2718 + $0x100] sm:$0xff]
    %v2752 = vld [vmem:[%s2718 + $0x108] sm:$0xff]
    %v2753 = vld [vmem:[%s2718 + $0x110] sm:$0xff]
    %v2754 = vld [vmem:[%s2718 + $0x118] sm:$0xff]
    %v2755 = vld [vmem:[%s2718 + $0x120] sm:$0xff]
    %v2756 = vld [vmem:[%s2718 + $0x128] sm:$0xff]
    %v2757 = vld [vmem:[%s2718 + $0x130] sm:$0xff]
    %v2758 = vld [vmem:[%s2718 + $0x138] sm:$0xff]
    %v2759 = vld [vmem:[%s2718 + $0x140] sm:$0xff]
    %v2760 = vld [vmem:[%s2718 + $0x148] sm:$0xff]
    %v2761 = vld [vmem:[%s2718 + $0x150] sm:$0xff]
    %v2762 = vld [vmem:[%s2718 + $0x158] sm:$0xff]
    %v2763 = vld [vmem:[%s2718 + $0x160] sm:$0xff]
    %v2764 = vld [vmem:[%s2718 + $0x168] sm:$0xff]
    %v2765 = vld [vmem:[%s2718 + $0x170] sm:$0xff]
    %v2766 = vld [vmem:[%s2718 + $0x178] sm:$0xff]
    %v2767 = vld [vmem:[%s2718 + $0x180] sm:$0xff]
    %v2768 = vld [vmem:[%s2718 + $0x188] sm:$0xff]
    %v2769 = vld [vmem:[%s2718 + $0x190] sm:$0xff]
    %v2770 = vld [vmem:[%s2718 + $0x198] sm:$0xff]
    %v2771 = vld [vmem:[%s2718 + $0x1a0] sm:$0xff]
    %v2772 = vld [vmem:[%s2718 + $0x1a8] sm:$0xff]
    %v2773 = vld [vmem:[%s2718 + $0x1b0] sm:$0xff]
    %v2774 = vld [vmem:[%s2718 + $0x1b8] sm:$0xff]
    %v2775 = vld [vmem:[%s2718 + $0x1c0] sm:$0xff]
    %v2776 = vld [vmem:[%s2718 + $0x1c8] sm:$0xff]
    %v2777 = vld [vmem:[%s2718 + $0x1d0] sm:$0xff]
    %v2778 = vld [vmem:[%s2718 + $0x1d8] sm:$0xff]
    %v2779 = vld [vmem:[%s2718 + $0x1e0] sm:$0xff]
    %v2780 = vld [vmem:[%s2718 + $0x1e8] sm:$0xff]
    %v2781 = vld [vmem:[%s2718 + $0x1f0] sm:$0xff]
    %v2782 = vld [vmem:[%s2718 + $0x1f8] sm:$0xff]
    %s2783 = scalar_lea.vmem %s8, 16
    %v2784 = vld [vmem:[%s2783] sm:$0xff]
    %v2785 = vld [vmem:[%s2783 + $0x8] sm:$0xff]
    %v2788 = vlaneseq
    %v2789 = vshrl.u32 %v2788, 7
    %v2790 = vsub.s32 0, %v2789
    %v2791 = vrot.slane %v2784, %v2790
    %v2792 = vlaneseq
    %v2793 = vshrl.u32 %v2792, 7
    %v2794 = vsub.s32 1, %v2793
    %v2795 = vrot.slane %v2784, %v2794
    %v2796 = vlaneseq
    %v2797 = vshrl.u32 %v2796, 7
    %v2798 = vsub.s32 2, %v2797
    %v2799 = vrot.slane %v2784, %v2798
    %v2800 = vlaneseq
    %v2801 = vshrl.u32 %v2800, 7
    %v2802 = vsub.s32 3, %v2801
    %v2803 = vrot.slane %v2784, %v2802
    %v2804 = vlaneseq
    %v2805 = vshrl.u32 %v2804, 7
    %v2806 = vsub.s32 4, %v2805
    %v2807 = vrot.slane %v2784, %v2806
    %v2808 = vlaneseq
    %v2809 = vshrl.u32 %v2808, 7
    %v2810 = vsub.s32 5, %v2809
    %v2811 = vrot.slane %v2784, %v2810
    %v2812 = vlaneseq
    %v2813 = vshrl.u32 %v2812, 7
    %v2814 = vsub.s32 6, %v2813
    %v2815 = vrot.slane %v2784, %v2814
    %v2816 = vlaneseq
    %v2817 = vshrl.u32 %v2816, 7
    %v2818 = vsub.s32 7, %v2817
    %v2819 = vrot.slane %v2784, %v2818
    %v2820 = vlaneseq
    %v2821 = vshrl.u32 %v2820, 7
    %v2822 = vsub.s32 0, %v2821
    %v2823 = vrot.slane %v2785, %v2822
    %v2824 = vlaneseq
    %v2825 = vshrl.u32 %v2824, 7
    %v2826 = vsub.s32 1, %v2825
    %v2827 = vrot.slane %v2785, %v2826
    %v2828 = vlaneseq
    %v2829 = vshrl.u32 %v2828, 7
    %v2830 = vsub.s32 2, %v2829
    %v2831 = vrot.slane %v2785, %v2830
    %v2832 = vlaneseq
    %v2833 = vshrl.u32 %v2832, 7
    %v2834 = vsub.s32 3, %v2833
    %v2835 = vrot.slane %v2785, %v2834
    %v2836 = vlaneseq
    %v2837 = vshrl.u32 %v2836, 7
    %v2838 = vsub.s32 4, %v2837
    %v2839 = vrot.slane %v2785, %v2838
    %v2840 = vlaneseq
    %v2841 = vshrl.u32 %v2840, 7
    %v2842 = vsub.s32 5, %v2841
    %v2843 = vrot.slane %v2785, %v2842
    %v2844 = vlaneseq
    %v2845 = vshrl.u32 %v2844, 7
    %v2846 = vsub.s32 6, %v2845
    %v2847 = vrot.slane %v2785, %v2846
    %v2848 = vlaneseq
    %v2849 = vshrl.u32 %v2848, 7
    %v2850 = vsub.s32 7, %v2849
    %v2851 = vrot.slane %v2785, %v2850
    %v2869 = vsel %vm141, %v2716, 0
    %v2872 = vsel %vm141, %v2717, 0
    %2874 = vmatprep.subr.mxu0 %v2720
    %2875 = vmatpush1.msra.mxu0 %v2719
    %2876 = vmatprep.subr.mxu0 %v2736
    %2877 = vmatpush1.msra.mxu0 %v2735
    %2878 = vmatprep.subr.mxu0 %v2752
    %2879 = vmatpush1.msra.mxu0 %v2751
    %2880 = vmatprep.subr.mxu0 %v2768
    %2881 = vmatpush1.msra.mxu0 %v2767
    %2882 = vmatprep.subr.mxu0 0.0
    %2883 = vmatpush1.msra.mxu0 0.0
    %2884 = vmatprep.subr.mxu0 0.0
    %2885 = vmatpush1.msra.mxu0 0.0
    %2886 = vmatprep.subr.mxu0 0.0
    %2887 = vmatpush1.msra.mxu0 0.0
    %2888 = vmatprep.subr.mxu0 0.0
    %2889 = vmatpush1.msra.mxu0 0.0
    %2890 = vmatprep.subr.mxu0 0.0
    %2891 = vmatpush1.msra.mxu0 0.0
    %2892 = vmatprep.subr.mxu0 0.0
    %2893 = vmatpush1.msra.mxu0 0.0
    %2894 = vmatprep.subr.mxu0 0.0
    %2895 = vmatpush1.msra.mxu0 0.0
    %2896 = vmatprep.subr.mxu0 0.0
    %2897 = vmatpush1.msra.mxu0 0.0
    %2898 = vmatprep.subr.mxu0 0.0
    %2899 = vmatpush1.msra.mxu0 0.0
    %2900 = vmatprep.subr.mxu0 0.0
    %2901 = vmatpush1.msra.mxu0 0.0
    %2902 = vmatprep.subr.mxu0 0.0
    %2903 = vmatpush1.msra.mxu0 0.0
    %2904 = vmatprep.subr.mxu0 0.0
    %2905 = vmatpush1.msra.mxu0 0.0
    %2906 = vmatprep.subr.mxu0 0.0
    %2907 = vmatpush1.msra.mxu0 0.0
    %2908 = vmatprep.subr.mxu0 0.0
    %2909 = vmatpush1.msra.mxu0 0.0
    %2910 = vmatprep.subr.mxu0 0.0
    %2911 = vmatpush1.msra.mxu0 0.0
    %2912 = vmatprep.subr.mxu0 0.0
    %2913 = vmatpush1.msra.mxu0 0.0
    %2914 = vmatprep.subr.mxu0 0.0
    %2915 = vmatpush1.msra.mxu0 0.0
    %2916 = vmatprep.subr.mxu0 0.0
    %2917 = vmatpush1.msra.mxu0 0.0
    %2918 = vmatprep.subr.mxu0 0.0
    %2919 = vmatpush1.msra.mxu0 0.0
    %2920 = vmatprep.subr.mxu0 0.0
    %2921 = vmatpush1.msra.mxu0 0.0
    %2922 = vmatprep.subr.mxu0 0.0
    %2923 = vmatpush1.msra.mxu0 0.0
    %2924 = vmatprep.subr.mxu0 0.0
    %2925 = vmatpush1.msra.mxu0 0.0
    %2926 = vmatprep.subr.mxu0 0.0
    %2927 = vmatpush1.msra.mxu0 0.0
    %2928 = vmatprep.subr.mxu0 0.0
    %2929 = vmatpush1.msra.mxu0 0.0
    %2930 = vmatprep.subr.mxu0 0.0
    %2931 = vmatpush1.msra.mxu0 0.0
    %2932 = vmatprep.subr.mxu0 0.0
    %2933 = vmatpush1.msra.mxu0 0.0
    %2934 = vmatprep.subr.mxu0 0.0
    %2935 = vmatpush1.msra.mxu0 0.0
    %2936 = vmatprep.subr.mxu0 0.0
    %2937 = vmatpush1.msra.mxu0 0.0
    %2938 = vmatprep.mubr.f32.mxu0 0.0
    %2939 = vmatmul.mubr.f32.gmra.mrb[0].mxu0 %v2869
    %v2940 = vpop.f32.mrb[0].mxu0
    %v2941 = vadd.f32 %v2791, %v2940
    %v2942 = vpop.f32.mrb[0].mxu0
    %v2943 = vadd.f32 %v2795, %v2942
    %2944 = vmatprep.mubr.f32.mxu0 0.0
    %2945 = vmatmul.mubr.f32.gmra.mrb[0].mxu0 %v2872
    %v2946 = vpop.f32.mrb[0].mxu0
    %v2947 = vadd.f32 %v2791, %v2946
    %v2948 = vpop.f32.mrb[0].mxu0
    %v2949 = vadd.f32 %v2795, %v2948
    %2950 = vdwg.mxu0
    %2951 = vmatprep.subr.mxu0 %v2722
    %2952 = vmatpush1.msra.mxu0 %v2721
    %2953 = vmatprep.subr.mxu0 %v2738
    %2954 = vmatpush1.msra.mxu0 %v2737
    %2955 = vmatprep.subr.mxu0 %v2754
    %2956 = vmatpush1.msra.mxu0 %v2753
    %2957 = vmatprep.subr.mxu0 %v2770
    %2958 = vmatpush1.msra.mxu0 %v2769
    %2959 = vmatprep.subr.mxu0 0.0
    %2960 = vmatpush1.msra.mxu0 0.0
    %2961 = vmatprep.subr.mxu0 0.0
    %2962 = vmatpush1.msra.mxu0 0.0
    %2963 = vmatprep.subr.mxu0 0.0
    %2964 = vmatpush1.msra.mxu0 0.0
    %2965 = vmatprep.subr.mxu0 0.0
    %2966 = vmatpush1.msra.mxu0 0.0
    %2967 = vmatprep.subr.mxu0 0.0
    %2968 = vmatpush1.msra.mxu0 0.0
    %2969 = vmatprep.subr.mxu0 0.0
    %2970 = vmatpush1.msra.mxu0 0.0
    %2971 = vmatprep.subr.mxu0 0.0
    %2972 = vmatpush1.msra.mxu0 0.0
    %2973 = vmatprep.subr.mxu0 0.0
    %2974 = vmatpush1.msra.mxu0 0.0
    %2975 = vmatprep.subr.mxu0 0.0
    %2976 = vmatpush1.msra.mxu0 0.0
    %2977 = vmatprep.subr.mxu0 0.0
    %2978 = vmatpush1.msra.mxu0 0.0
    %2979 = vmatprep.subr.mxu0 0.0
    %2980 = vmatpush1.msra.mxu0 0.0
    %2981 = vmatprep.subr.mxu0 0.0
    %2982 = vmatpush1.msra.mxu0 0.0
    %2983 = vmatprep.subr.mxu0 0.0
    %2984 = vmatpush1.msra.mxu0 0.0
    %2985 = vmatprep.subr.mxu0 0.0
    %2986 = vmatpush1.msra.mxu0 0.0
    %2987 = vmatprep.subr.mxu0 0.0
    %2988 = vmatpush1.msra.mxu0 0.0
    %2989 = vmatprep.subr.mxu0 0.0
    %2990 = vmatpush1.msra.mxu0 0.0
    %2991 = vmatprep.subr.mxu0 0.0
    %2992 = vmatpush1.msra.mxu0 0.0
    %2993 = vmatprep.subr.mxu0 0.0
    %2994 = vmatpush1.msra.mxu0 0.0
    %2995 = vmatprep.subr.mxu0 0.0
    %2996 = vmatpush1.msra.mxu0 0.0
    %2997 = vmatprep.subr.mxu0 0.0
    %2998 = vmatpush1.msra.mxu0 0.0
    %2999 = vmatprep.subr.mxu0 0.0
    %3000 = vmatpush1.msra.mxu0 0.0
    %3001 = vmatprep.subr.mxu0 0.0
    %3002 = vmatpush1.msra.mxu0 0.0
    %3003 = vmatprep.subr.mxu0 0.0
    %3004 = vmatpush1.msra.mxu0 0.0
    %3005 = vmatprep.subr.mxu0 0.0
    %3006 = vmatpush1.msra.mxu0 0.0
    %3007 = vmatprep.subr.mxu0 0.0
    %3008 = vmatpush1.msra.mxu0 0.0
    %3009 = vmatprep.subr.mxu0 0.0
    %3010 = vmatpush1.msra.mxu0 0.0
    %3011 = vmatprep.subr.mxu0 0.0
    %3012 = vmatpush1.msra.mxu0 0.0
    %3013 = vmatprep.subr.mxu0 0.0
    %3014 = vmatpush1.msra.mxu0 0.0
    %3015 = vmatprep.mubr.f32.mxu0 0.0
    %3016 = vmatmul.mubr.f32.gmra.mrb[0].mxu0 %v2869
    %v3017 = vpop.f32.mrb[0].mxu0
    %v3018 = vadd.f32 %v2799, %v3017
    %v3019 = vpop.f32.mrb[0].mxu0
    %v3020 = vadd.f32 %v2803, %v3019
    %3021 = vmatprep.mubr.f32.mxu0 0.0
    %3022 = vmatmul.mubr.f32.gmra.mrb[0].mxu0 %v2872
    %v3023 = vpop.f32.mrb[0].mxu0
    %v3024 = vadd.f32 %v2799, %v3023
    %v3025 = vpop.f32.mrb[0].mxu0
    %v3026 = vadd.f32 %v2803, %v3025
    %3027 = vdwg.mxu0
    %3028 = vmatprep.subr.mxu0 %v2724
    %3029 = vmatpush1.msra.mxu0 %v2723
    %3030 = vmatprep.subr.mxu0 %v2740
    %3031 = vmatpush1.msra.mxu0 %v2739
    %3032 = vmatprep.subr.mxu0 %v2756
    %3033 = vmatpush1.msra.mxu0 %v2755
    %3034 = vmatprep.subr.mxu0 %v2772
    %3035 = vmatpush1.msra.mxu0 %v2771
    %3036 = vmatprep.subr.mxu0 0.0
    %3037 = vmatpush1.msra.mxu0 0.0
    %3038 = vmatprep.subr.mxu0 0.0
    %3039 = vmatpush1.msra.mxu0 0.0
    %3040 = vmatprep.subr.mxu0 0.0
    %3041 = vmatpush1.msra.mxu0 0.0
    %3042 = vmatprep.subr.mxu0 0.0
    %3043 = vmatpush1.msra.mxu0 0.0
    %3044 = vmatprep.subr.mxu0 0.0
    %3045 = vmatpush1.msra.mxu0 0.0
    %3046 = vmatprep.subr.mxu0 0.0
    %3047 = vmatpush1.msra.mxu0 0.0
    %3048 = vmatprep.subr.mxu0 0.0
    %3049 = vmatpush1.msra.mxu0 0.0
    %3050 = vmatprep.subr.mxu0 0.0
    %3051 = vmatpush1.msra.mxu0 0.0
    %3052 = vmatprep.subr.mxu0 0.0
    %3053 = vmatpush1.msra.mxu0 0.0
    %3054 = vmatprep.subr.mxu0 0.0
    %3055 = vmatpush1.msra.mxu0 0.0
    %3056 = vmatprep.subr.mxu0 0.0
    %3057 = vmatpush1.msra.mxu0 0.0
    %3058 = vmatprep.subr.mxu0 0.0
    %3059 = vmatpush1.msra.mxu0 0.0
    %3060 = vmatprep.subr.mxu0 0.0
    %3061 = vmatpush1.msra.mxu0 0.0
    %3062 = vmatprep.subr.mxu0 0.0
    %3063 = vmatpush1.msra.mxu0 0.0
    %3064 = vmatprep.subr.mxu0 0.0
    %3065 = vmatpush1.msra.mxu0 0.0
    %3066 = vmatprep.subr.mxu0 0.0
    %3067 = vmatpush1.msra.mxu0 0.0
    %3068 = vmatprep.subr.mxu0 0.0
    %3069 = vmatpush1.msra.mxu0 0.0
    %3070 = vmatprep.subr.mxu0 0.0
    %3071 = vmatpush1.msra.mxu0 0.0
    %3072 = vmatprep.subr.mxu0 0.0
    %3073 = vmatpush1.msra.mxu0 0.0
    %3074 = vmatprep.subr.mxu0 0.0
    %3075 = vmatpush1.msra.mxu0 0.0
    %3076 = vmatprep.subr.mxu0 0.0
    %3077 = vmatpush1.msra.mxu0 0.0
    %3078 = vmatprep.subr.mxu0 0.0
    %3079 = vmatpush1.msra.mxu0 0.0
    %3080 = vmatprep.subr.mxu0 0.0
    %3081 = vmatpush1.msra.mxu0 0.0
    %3082 = vmatprep.subr.mxu0 0.0
    %3083 = vmatpush1.msra.mxu0 0.0
    %3084 = vmatprep.subr.mxu0 0.0
    %3085 = vmatpush1.msra.mxu0 0.0
    %3086 = vmatprep.subr.mxu0 0.0
    %3087 = vmatpush1.msra.mxu0 0.0
    %3088 = vmatprep.subr.mxu0 0.0
    %3089 = vmatpush1.msra.mxu0 0.0
    %3090 = vmatprep.subr.mxu0 0.0
    %3091 = vmatpush1.msra.mxu0 0.0
    %3092 = vmatprep.mubr.f32.mxu0 0.0
    %3093 = vmatmul.mubr.f32.gmra.mrb[0].mxu0 %v2869
    %v3094 = vpop.f32.mrb[0].mxu0
    %v3095 = vadd.f32 %v2807, %v3094
    %v3096 = vpop.f32.mrb[0].mxu0
    %v3097 = vadd.f32 %v2811, %v3096
    %3098 = vmatprep.mubr.f32.mxu0 0.0
    %3099 = vmatmul.mubr.f32.gmra.mrb[0].mxu0 %v2872
    %v3100 = vpop.f32.mrb[0].mxu0
    %v3101 = vadd.f32 %v2807, %v3100
    %v3102 = vpop.f32.mrb[0].mxu0
    %v3103 = vadd.f32 %v2811, %v3102
    %3104 = vdwg.mxu0
    %3105 = vmatprep.subr.mxu0 %v2726
    %3106 = vmatpush1.msra.mxu0 %v2725
    %3107 = vmatprep.subr.mxu0 %v2742
    %3108 = vmatpush1.msra.mxu0 %v2741
    %3109 = vmatprep.subr.mxu0 %v2758
    %3110 = vmatpush1.msra.mxu0 %v2757
    %3111 = vmatprep.subr.mxu0 %v2774
    %3112 = vmatpush1.msra.mxu0 %v2773
    %3113 = vmatprep.subr.mxu0 0.0
    %3114 = vmatpush1.msra.mxu0 0.0
    %3115 = vmatprep.subr.mxu0 0.0
    %3116 = vmatpush1.msra.mxu0 0.0
    %3117 = vmatprep.subr.mxu0 0.0
    %3118 = vmatpush1.msra.mxu0 0.0
    %3119 = vmatprep.subr.mxu0 0.0
    %3120 = vmatpush1.msra.mxu0 0.0
    %3121 = vmatprep.subr.mxu0 0.0
    %3122 = vmatpush1.msra.mxu0 0.0
    %3123 = vmatprep.subr.mxu0 0.0
    %3124 = vmatpush1.msra.mxu0 0.0
    %3125 = vmatprep.subr.mxu0 0.0
    %3126 = vmatpush1.msra.mxu0 0.0
    %3127 = vmatprep.subr.mxu0 0.0
    %3128 = vmatpush1.msra.mxu0 0.0
    %3129 = vmatprep.subr.mxu0 0.0
    %3130 = vmatpush1.msra.mxu0 0.0
    %3131 = vmatprep.subr.mxu0 0.0
    %3132 = vmatpush1.msra.mxu0 0.0
    %3133 = vmatprep.subr.mxu0 0.0
    %3134 = vmatpush1.msra.mxu0 0.0
    %3135 = vmatprep.subr.mxu0 0.0
    %3136 = vmatpush1.msra.mxu0 0.0
    %3137 = vmatprep.subr.mxu0 0.0
    %3138 = vmatpush1.msra.mxu0 0.0
    %3139 = vmatprep.subr.mxu0 0.0
    %3140 = vmatpush1.msra.mxu0 0.0
    %3141 = vmatprep.subr.mxu0 0.0
    %3142 = vmatpush1.msra.mxu0 0.0
    %3143 = vmatprep.subr.mxu0 0.0
    %3144 = vmatpush1.msra.mxu0 0.0
    %3145 = vmatprep.subr.mxu0 0.0
    %3146 = vmatpush1.msra.mxu0 0.0
    %3147 = vmatprep.subr.mxu0 0.0
    %3148 = vmatpush1.msra.mxu0 0.0
    %3149 = vmatprep.subr.mxu0 0.0
    %3150 = vmatpush1.msra.mxu0 0.0
    %3151 = vmatprep.subr.mxu0 0.0
    %3152 = vmatpush1.msra.mxu0 0.0
    %3153 = vmatprep.subr.mxu0 0.0
    %3154 = vmatpush1.msra.mxu0 0.0
    %3155 = vmatprep.subr.mxu0 0.0
    %3156 = vmatpush1.msra.mxu0 0.0
    %3157 = vmatprep.subr.mxu0 0.0
    %3158 = vmatpush1.msra.mxu0 0.0
    %3159 = vmatprep.subr.mxu0 0.0
    %3160 = vmatpush1.msra.mxu0 0.0
    %3161 = vmatprep.subr.mxu0 0.0
    %3162 = vmatpush1.msra.mxu0 0.0
    %3163 = vmatprep.subr.mxu0 0.0
    %3164 = vmatpush1.msra.mxu0 0.0
    %3165 = vmatprep.subr.mxu0 0.0
    %3166 = vmatpush1.msra.mxu0 0.0
    %3167 = vmatprep.subr.mxu0 0.0
    %3168 = vmatpush1.msra.mxu0 0.0
    %3169 = vmatprep.mubr.f32.mxu0 0.0
    %3170 = vmatmul.mubr.f32.gmra.mrb[0].mxu0 %v2869
    %v3171 = vpop.f32.mrb[0].mxu0
    %v3172 = vadd.f32 %v2815, %v3171
    %v3173 = vpop.f32.mrb[0].mxu0
    %v3174 = vadd.f32 %v2819, %v3173
    %3175 = vmatprep.mubr.f32.mxu0 0.0
    %3176 = vmatmul.mubr.f32.gmra.mrb[0].mxu0 %v2872
    %v3177 = vpop.f32.mrb[0].mxu0
    %v3178 = vadd.f32 %v2815, %v3177
    %v3179 = vpop.f32.mrb[0].mxu0
    %v3180 = vadd.f32 %v2819, %v3179
    %3181 = vdwg.mxu0
    %3182 = vmatprep.subr.mxu0 %v2728
    %3183 = vmatpush1.msra.mxu0 %v2727
    %3184 = vmatprep.subr.mxu0 %v2744
    %3185 = vmatpush1.msra.mxu0 %v2743
    %3186 = vmatprep.subr.mxu0 %v2760
    %3187 = vmatpush1.msra.mxu0 %v2759
    %3188 = vmatprep.subr.mxu0 %v2776
    %3189 = vmatpush1.msra.mxu0 %v2775
    %3190 = vmatprep.subr.mxu0 0.0
    %3191 = vmatpush1.msra.mxu0 0.0
    %3192 = vmatprep.subr.mxu0 0.0
    %3193 = vmatpush1.msra.mxu0 0.0
    %3194 = vmatprep.subr.mxu0 0.0
    %3195 = vmatpush1.msra.mxu0 0.0
    %3196 = vmatprep.subr.mxu0 0.0
    %3197 = vmatpush1.msra.mxu0 0.0
    %3198 = vmatprep.subr.mxu0 0.0
    %3199 = vmatpush1.msra.mxu0 0.0
    %3200 = vmatprep.subr.mxu0 0.0
    %3201 = vmatpush1.msra.mxu0 0.0
    %3202 = vmatprep.subr.mxu0 0.0
    %3203 = vmatpush1.msra.mxu0 0.0
    %3204 = vmatprep.subr.mxu0 0.0
    %3205 = vmatpush1.msra.mxu0 0.0
    %3206 = vmatprep.subr.mxu0 0.0
    %3207 = vmatpush1.msra.mxu0 0.0
    %3208 = vmatprep.subr.mxu0 0.0
    %3209 = vmatpush1.msra.mxu0 0.0
    %3210 = vmatprep.subr.mxu0 0.0
    %3211 = vmatpush1.msra.mxu0 0.0
    %3212 = vmatprep.subr.mxu0 0.0
    %3213 = vmatpush1.msra.mxu0 0.0
    %3214 = vmatprep.subr.mxu0 0.0
    %3215 = vmatpush1.msra.mxu0 0.0
    %3216 = vmatprep.subr.mxu0 0.0
    %3217 = vmatpush1.msra.mxu0 0.0
    %3218 = vmatprep.subr.mxu0 0.0
    %3219 = vmatpush1.msra.mxu0 0.0
    %3220 = vmatprep.subr.mxu0 0.0
    %3221 = vmatpush1.msra.mxu0 0.0
    %3222 = vmatprep.subr.mxu0 0.0
    %3223 = vmatpush1.msra.mxu0 0.0
    %3224 = vmatprep.subr.mxu0 0.0
    %3225 = vmatpush1.msra.mxu0 0.0
    %3226 = vmatprep.subr.mxu0 0.0
    %3227 = vmatpush1.msra.mxu0 0.0
    %3228 = vmatprep.subr.mxu0 0.0
    %3229 = vmatpush1.msra.mxu0 0.0
    %3230 = vmatprep.subr.mxu0 0.0
    %3231 = vmatpush1.msra.mxu0 0.0
    %3232 = vmatprep.subr.mxu0 0.0
    %3233 = vmatpush1.msra.mxu0 0.0
    %3234 = vmatprep.subr.mxu0 0.0
    %3235 = vmatpush1.msra.mxu0 0.0
    %3236 = vmatprep.subr.mxu0 0.0
    %3237 = vmatpush1.msra.mxu0 0.0
    %3238 = vmatprep.subr.mxu0 0.0
    %3239 = vmatpush1.msra.mxu0 0.0
    %3240 = vmatprep.subr.mxu0 0.0
    %3241 = vmatpush1.msra.mxu0 0.0
    %3242 = vmatprep.subr.mxu0 0.0
    %3243 = vmatpush1.msra.mxu0 0.0
    %3244 = vmatprep.subr.mxu0 0.0
    %3245 = vmatpush1.msra.mxu0 0.0
    %3246 = vmatprep.mubr.f32.mxu0 0.0
    %3247 = vmatmul.mubr.f32.gmra.mrb[0].mxu0 %v2869
    %v3248 = vpop.f32.mrb[0].mxu0
    %v3249 = vadd.f32 %v2823, %v3248
    %v3250 = vpop.f32.mrb[0].mxu0
    %v3251 = vadd.f32 %v2827, %v3250
    %3252 = vmatprep.mubr.f32.mxu0 0.0
    %3253 = vmatmul.mubr.f32.gmra.mrb[0].mxu0 %v2872
    %v3254 = vpop.f32.mrb[0].mxu0
    %v3255 = vadd.f32 %v2823, %v3254
    %v3256 = vpop.f32.mrb[0].mxu0
    %v3257 = vadd.f32 %v2827, %v3256
    %3258 = vdwg.mxu0
    %3259 = vmatprep.subr.mxu0 %v2730
    %3260 = vmatpush1.msra.mxu0 %v2729
    %3261 = vmatprep.subr.mxu0 %v2746
    %3262 = vmatpush1.msra.mxu0 %v2745
    %3263 = vmatprep.subr.mxu0 %v2762
    %3264 = vmatpush1.msra.mxu0 %v2761
    %3265 = vmatprep.subr.mxu0 %v2778
    %3266 = vmatpush1.msra.mxu0 %v2777
    %3267 = vmatprep.subr.mxu0 0.0
    %3268 = vmatpush1.msra.mxu0 0.0
    %3269 = vmatprep.subr.mxu0 0.0
    %3270 = vmatpush1.msra.mxu0 0.0
    %3271 = vmatprep.subr.mxu0 0.0
    %3272 = vmatpush1.msra.mxu0 0.0
    %3273 = vmatprep.subr.mxu0 0.0
    %3274 = vmatpush1.msra.mxu0 0.0
    %3275 = vmatprep.subr.mxu0 0.0
    %3276 = vmatpush1.msra.mxu0 0.0
    %3277 = vmatprep.subr.mxu0 0.0
    %3278 = vmatpush1.msra.mxu0 0.0
    %3279 = vmatprep.subr.mxu0 0.0
    %3280 = vmatpush1.msra.mxu0 0.0
    %3281 = vmatprep.subr.mxu0 0.0
    %3282 = vmatpush1.msra.mxu0 0.0
    %3283 = vmatprep.subr.mxu0 0.0
    %3284 = vmatpush1.msra.mxu0 0.0
    %3285 = vmatprep.subr.mxu0 0.0
    %3286 = vmatpush1.msra.mxu0 0.0
    %3287 = vmatprep.subr.mxu0 0.0
    %3288 = vmatpush1.msra.mxu0 0.0
    %3289 = vmatprep.subr.mxu0 0.0
    %3290 = vmatpush1.msra.mxu0 0.0
    %3291 = vmatprep.subr.mxu0 0.0
    %3292 = vmatpush1.msra.mxu0 0.0
    %3293 = vmatprep.subr.mxu0 0.0
    %3294 = vmatpush1.msra.mxu0 0.0
    %3295 = vmatprep.subr.mxu0 0.0
    %3296 = vmatpush1.msra.mxu0 0.0
    %3297 = vmatprep.subr.mxu0 0.0
    %3298 = vmatpush1.msra.mxu0 0.0
    %3299 = vmatprep.subr.mxu0 0.0
    %3300 = vmatpush1.msra.mxu0 0.0
    %3301 = vmatprep.subr.mxu0 0.0
    %3302 = vmatpush1.msra.mxu0 0.0
    %3303 = vmatprep.subr.mxu0 0.0
    %3304 = vmatpush1.msra.mxu0 0.0
    %3305 = vmatprep.subr.mxu0 0.0
    %3306 = vmatpush1.msra.mxu0 0.0
    %3307 = vmatprep.subr.mxu0 0.0
    %3308 = vmatpush1.msra.mxu0 0.0
    %3309 = vmatprep.subr.mxu0 0.0
    %3310 = vmatpush1.msra.mxu0 0.0
    %3311 = vmatprep.subr.mxu0 0.0
    %3312 = vmatpush1.msra.mxu0 0.0
    %3313 = vmatprep.subr.mxu0 0.0
    %3314 = vmatpush1.msra.mxu0 0.0
    %3315 = vmatprep.subr.mxu0 0.0
    %3316 = vmatpush1.msra.mxu0 0.0
    %3317 = vmatprep.subr.mxu0 0.0
    %3318 = vmatpush1.msra.mxu0 0.0
    %3319 = vmatprep.subr.mxu0 0.0
    %3320 = vmatpush1.msra.mxu0 0.0
    %3321 = vmatprep.subr.mxu0 0.0
    %3322 = vmatpush1.msra.mxu0 0.0
    %3323 = vmatprep.mubr.f32.mxu0 0.0
    %3324 = vmatmul.mubr.f32.gmra.mrb[0].mxu0 %v2869
    %v3325 = vpop.f32.mrb[0].mxu0
    %v3326 = vadd.f32 %v2831, %v3325
    %v3327 = vpop.f32.mrb[0].mxu0
    %v3328 = vadd.f32 %v2835, %v3327
    %3329 = vmatprep.mubr.f32.mxu0 0.0
    %3330 = vmatmul.mubr.f32.gmra.mrb[0].mxu0 %v2872
    %v3331 = vpop.f32.mrb[0].mxu0
    %v3332 = vadd.f32 %v2831, %v3331
    %v3333 = vpop.f32.mrb[0].mxu0
    %v3334 = vadd.f32 %v2835, %v3333
    %3335 = vdwg.mxu0
    %3336 = vmatprep.subr.mxu0 %v2732
    %3337 = vmatpush1.msra.mxu0 %v2731
    %3338 = vmatprep.subr.mxu0 %v2748
    %3339 = vmatpush1.msra.mxu0 %v2747
    %3340 = vmatprep.subr.mxu0 %v2764
    %3341 = vmatpush1.msra.mxu0 %v2763
    %3342 = vmatprep.subr.mxu0 %v2780
    %3343 = vmatpush1.msra.mxu0 %v2779
    %3344 = vmatprep.subr.mxu0 0.0
    %3345 = vmatpush1.msra.mxu0 0.0
    %3346 = vmatprep.subr.mxu0 0.0
    %3347 = vmatpush1.msra.mxu0 0.0
    %3348 = vmatprep.subr.mxu0 0.0
    %3349 = vmatpush1.msra.mxu0 0.0
    %3350 = vmatprep.subr.mxu0 0.0
    %3351 = vmatpush1.msra.mxu0 0.0
    %3352 = vmatprep.subr.mxu0 0.0
    %3353 = vmatpush1.msra.mxu0 0.0
    %3354 = vmatprep.subr.mxu0 0.0
    %3355 = vmatpush1.msra.mxu0 0.0
    %3356 = vmatprep.subr.mxu0 0.0
    %3357 = vmatpush1.msra.mxu0 0.0
    %3358 = vmatprep.subr.mxu0 0.0
    %3359 = vmatpush1.msra.mxu0 0.0
    %3360 = vmatprep.subr.mxu0 0.0
    %3361 = vmatpush1.msra.mxu0 0.0
    %3362 = vmatprep.subr.mxu0 0.0
    %3363 = vmatpush1.msra.mxu0 0.0
    %3364 = vmatprep.subr.mxu0 0.0
    %3365 = vmatpush1.msra.mxu0 0.0
    %3366 = vmatprep.subr.mxu0 0.0
    %3367 = vmatpush1.msra.mxu0 0.0
    %3368 = vmatprep.subr.mxu0 0.0
    %3369 = vmatpush1.msra.mxu0 0.0
    %3370 = vmatprep.subr.mxu0 0.0
    %3371 = vmatpush1.msra.mxu0 0.0
    %3372 = vmatprep.subr.mxu0 0.0
    %3373 = vmatpush1.msra.mxu0 0.0
    %3374 = vmatprep.subr.mxu0 0.0
    %3375 = vmatpush1.msra.mxu0 0.0
    %3376 = vmatprep.subr.mxu0 0.0
    %3377 = vmatpush1.msra.mxu0 0.0
    %3378 = vmatprep.subr.mxu0 0.0
    %3379 = vmatpush1.msra.mxu0 0.0
    %3380 = vmatprep.subr.mxu0 0.0
    %3381 = vmatpush1.msra.mxu0 0.0
    %3382 = vmatprep.subr.mxu0 0.0
    %3383 = vmatpush1.msra.mxu0 0.0
    %3384 = vmatprep.subr.mxu0 0.0
    %3385 = vmatpush1.msra.mxu0 0.0
    %3386 = vmatprep.subr.mxu0 0.0
    %3387 = vmatpush1.msra.mxu0 0.0
    %3388 = vmatprep.subr.mxu0 0.0
    %3389 = vmatpush1.msra.mxu0 0.0
    %3390 = vmatprep.subr.mxu0 0.0
    %3391 = vmatpush1.msra.mxu0 0.0
    %3392 = vmatprep.subr.mxu0 0.0
    %3393 = vmatpush1.msra.mxu0 0.0
    %3394 = vmatprep.subr.mxu0 0.0
    %3395 = vmatpush1.msra.mxu0 0.0
    %3396 = vmatprep.subr.mxu0 0.0
    %3397 = vmatpush1.msra.mxu0 0.0
    %3398 = vmatprep.subr.mxu0 0.0
    %3399 = vmatpush1.msra.mxu0 0.0
    %3400 = vmatprep.mubr.f32.mxu0 0.0
    %3401 = vmatmul.mubr.f32.gmra.mrb[0].mxu0 %v2869
    %v3402 = vpop.f32.mrb[0].mxu0
    %v3403 = vadd.f32 %v2839, %v3402
    %v3404 = vpop.f32.mrb[0].mxu0
    %v3405 = vadd.f32 %v2843, %v3404
    %3406 = vmatprep.mubr.f32.mxu0 0.0
    %3407 = vmatmul.mubr.f32.gmra.mrb[0].mxu0 %v2872
    %v3408 = vpop.f32.mrb[0].mxu0
    %v3409 = vadd.f32 %v2839, %v3408
    %v3410 = vpop.f32.mrb[0].mxu0
    %v3411 = vadd.f32 %v2843, %v3410
    %3412 = vdwg.mxu0
    %3413 = vmatprep.subr.mxu0 %v2734
    %3414 = vmatpush1.msra.mxu0 %v2733
    %3415 = vmatprep.subr.mxu0 %v2750
    %3416 = vmatpush1.msra.mxu0 %v2749
    %3417 = vmatprep.subr.mxu0 %v2766
    %3418 = vmatpush1.msra.mxu0 %v2765
    %3419 = vmatprep.subr.mxu0 %v2782
    %3420 = vmatpush1.msra.mxu0 %v2781
    %3421 = vmatprep.subr.mxu0 0.0
    %3422 = vmatpush1.msra.mxu0 0.0
    %3423 = vmatprep.subr.mxu0 0.0
    %3424 = vmatpush1.msra.mxu0 0.0
    %3425 = vmatprep.subr.mxu0 0.0
    %3426 = vmatpush1.msra.mxu0 0.0
    %3427 = vmatprep.subr.mxu0 0.0
    %3428 = vmatpush1.msra.mxu0 0.0
    %3429 = vmatprep.subr.mxu0 0.0
    %3430 = vmatpush1.msra.mxu0 0.0
    %3431 = vmatprep.subr.mxu0 0.0
    %3432 = vmatpush1.msra.mxu0 0.0
    %3433 = vmatprep.subr.mxu0 0.0
    %3434 = vmatpush1.msra.mxu0 0.0
    %3435 = vmatprep.subr.mxu0 0.0
    %3436 = vmatpush1.msra.mxu0 0.0
    %3437 = vmatprep.subr.mxu0 0.0
    %3438 = vmatpush1.msra.mxu0 0.0
    %3439 = vmatprep.subr.mxu0 0.0
    %3440 = vmatpush1.msra.mxu0 0.0
    %3441 = vmatprep.subr.mxu0 0.0
    %3442 = vmatpush1.msra.mxu0 0.0
    %3443 = vmatprep.subr.mxu0 0.0
    %3444 = vmatpush1.msra.mxu0 0.0
    %3445 = vmatprep.subr.mxu0 0.0
    %3446 = vmatpush1.msra.mxu0 0.0
    %3447 = vmatprep.subr.mxu0 0.0
    %3448 = vmatpush1.msra.mxu0 0.0
    %3449 = vmatprep.subr.mxu0 0.0
    %3450 = vmatpush1.msra.mxu0 0.0
    %3451 = vmatprep.subr.mxu0 0.0
    %3452 = vmatpush1.msra.mxu0 0.0
    %3453 = vmatprep.subr.mxu0 0.0
    %3454 = vmatpush1.msra.mxu0 0.0
    %3455 = vmatprep.subr.mxu0 0.0
    %3456 = vmatpush1.msra.mxu0 0.0
    %3457 = vmatprep.subr.mxu0 0.0
    %3458 = vmatpush1.msra.mxu0 0.0
    %3459 = vmatprep.subr.mxu0 0.0
    %3460 = vmatpush1.msra.mxu0 0.0
    %3461 = vmatprep.subr.mxu0 0.0
    %3462 = vmatpush1.msra.mxu0 0.0
    %3463 = vmatprep.subr.mxu0 0.0
    %3464 = vmatpush1.msra.mxu0 0.0
    %3465 = vmatprep.subr.mxu0 0.0
    %3466 = vmatpush1.msra.mxu0 0.0
    %3467 = vmatprep.subr.mxu0 0.0
    %3468 = vmatpush1.msra.mxu0 0.0
    %3469 = vmatprep.subr.mxu0 0.0
    %3470 = vmatpush1.msra.mxu0 0.0
    %3471 = vmatprep.subr.mxu0 0.0
    %3472 = vmatpush1.msra.mxu0 0.0
    %3473 = vmatprep.subr.mxu0 0.0
    %3474 = vmatpush1.msra.mxu0 0.0
    %3475 = vmatprep.subr.mxu0 0.0
    %3476 = vmatpush1.msra.mxu0 0.0
    %3477 = vmatprep.mubr.f32.mxu0 0.0
    %3478 = vmatmul.mubr.f32.gmra.mrb[0].mxu0 %v2869
    %v3479 = vpop.f32.mrb[0].mxu0
    %v3480 = vadd.f32 %v2847, %v3479
    %v3481 = vpop.f32.mrb[0].mxu0
    %v3482 = vadd.f32 %v2851, %v3481
    %3483 = vmatprep.mubr.f32.mxu0 0.0
    %3484 = vmatmul.mubr.f32.gmra.mrb[0].mxu0 %v2872
    %v3485 = vpop.f32.mrb[0].mxu0
    %v3486 = vadd.f32 %v2847, %v3485
    %v3487 = vpop.f32.mrb[0].mxu0
    %v3488 = vadd.f32 %v2851, %v3487
    %3489 = vdwg.mxu0
    %v3490 = vmax.f32 %v2941, 0.0
    %v3491 = vmax.f32 %v2943, 0.0
    %v3492 = vmax.f32 %v3018, 0.0
    %v3493 = vmax.f32 %v3020, 0.0
    %v3494 = vmax.f32 %v3095, 0.0
    %v3495 = vmax.f32 %v3097, 0.0
    %v3496 = vmax.f32 %v3172, 0.0
    %v3497 = vmax.f32 %v3174, 0.0
    %v3498 = vmax.f32 %v3249, 0.0
    %v3499 = vmax.f32 %v3251, 0.0
    %v3500 = vmax.f32 %v3326, 0.0
    %v3501 = vmax.f32 %v3328, 0.0
    %v3502 = vmax.f32 %v3403, 0.0
    %v3503 = vmax.f32 %v3405, 0.0
    %v3504 = vmax.f32 %v3480, 0.0
    %v3505 = vmax.f32 %v3482, 0.0
    %v3506 = vmax.f32 %v2947, 0.0
    %v3507 = vmax.f32 %v2949, 0.0
    %v3508 = vmax.f32 %v3024, 0.0
    %v3509 = vmax.f32 %v3026, 0.0
    %v3510 = vmax.f32 %v3101, 0.0
    %v3511 = vmax.f32 %v3103, 0.0
    %v3512 = vmax.f32 %v3178, 0.0
    %v3513 = vmax.f32 %v3180, 0.0
    %v3514 = vmax.f32 %v3255, 0.0
    %v3515 = vmax.f32 %v3257, 0.0
    %v3516 = vmax.f32 %v3332, 0.0
    %v3517 = vmax.f32 %v3334, 0.0
    %v3518 = vmax.f32 %v3409, 0.0
    %v3519 = vmax.f32 %v3411, 0.0
    %v3520 = vmax.f32 %v3486, 0.0
    %v3521 = vmax.f32 %v3488, 0.0
    %s3522 = scalar_lea.vmem %s9, 2048
    %v3523 = vld [vmem:[%s3522] sm:$0xff]
    %v3524 = vld [vmem:[%s3522 + $0x8] sm:$0xff]
    %v3525 = vld [vmem:[%s3522 + $0x10] sm:$0xff]
    %v3526 = vld [vmem:[%s3522 + $0x18] sm:$0xff]
    %v3527 = vld [vmem:[%s3522 + $0x20] sm:$0xff]
    %v3528 = vld [vmem:[%s3522 + $0x28] sm:$0xff]
    %v3529 = vld [vmem:[%s3522 + $0x30] sm:$0xff]
    %v3530 = vld [vmem:[%s3522 + $0x38] sm:$0xff]
    %v3531 = vld [vmem:[%s3522 + $0x40] sm:$0xff]
    %v3532 = vld [vmem:[%s3522 + $0x48] sm:$0xff]
    %v3533 = vld [vmem:[%s3522 + $0x50] sm:$0xff]
    %v3534 = vld [vmem:[%s3522 + $0x58] sm:$0xff]
    %v3535 = vld [vmem:[%s3522 + $0x60] sm:$0xff]
    %v3536 = vld [vmem:[%s3522 + $0x68] sm:$0xff]
    %v3537 = vld [vmem:[%s3522 + $0x70] sm:$0xff]
    %v3538 = vld [vmem:[%s3522 + $0x78] sm:$0xff]
    %v3539 = vld [vmem:[%s3522 + $0x80] sm:$0xff]
    %v3540 = vld [vmem:[%s3522 + $0x88] sm:$0xff]
    %v3541 = vld [vmem:[%s3522 + $0x90] sm:$0xff]
    %v3542 = vld [vmem:[%s3522 + $0x98] sm:$0xff]
    %v3543 = vld [vmem:[%s3522 + $0xa0] sm:$0xff]
    %v3544 = vld [vmem:[%s3522 + $0xa8] sm:$0xff]
    %v3545 = vld [vmem:[%s3522 + $0xb0] sm:$0xff]
    %v3546 = vld [vmem:[%s3522 + $0xb8] sm:$0xff]
    %v3547 = vld [vmem:[%s3522 + $0xc0] sm:$0xff]
    %v3548 = vld [vmem:[%s3522 + $0xc8] sm:$0xff]
    %v3549 = vld [vmem:[%s3522 + $0xd0] sm:$0xff]
    %v3550 = vld [vmem:[%s3522 + $0xd8] sm:$0xff]
    %v3551 = vld [vmem:[%s3522 + $0xe0] sm:$0xff]
    %v3552 = vld [vmem:[%s3522 + $0xe8] sm:$0xff]
    %v3553 = vld [vmem:[%s3522 + $0xf0] sm:$0xff]
    %v3554 = vld [vmem:[%s3522 + $0xf8] sm:$0xff]
    %v3555 = vld [vmem:[%s3522 + $0x100] sm:$0xff]
    %v3556 = vld [vmem:[%s3522 + $0x108] sm:$0xff]
    %v3557 = vld [vmem:[%s3522 + $0x110] sm:$0xff]
    %v3558 = vld [vmem:[%s3522 + $0x118] sm:$0xff]
    %v3559 = vld [vmem:[%s3522 + $0x120] sm:$0xff]
    %v3560 = vld [vmem:[%s3522 + $0x128] sm:$0xff]
    %v3561 = vld [vmem:[%s3522 + $0x130] sm:$0xff]
    %v3562 = vld [vmem:[%s3522 + $0x138] sm:$0xff]
    %v3563 = vld [vmem:[%s3522 + $0x140] sm:$0xff]
    %v3564 = vld [vmem:[%s3522 + $0x148] sm:$0xff]
    %v3565 = vld [vmem:[%s3522 + $0x150] sm:$0xff]
    %v3566 = vld [vmem:[%s3522 + $0x158] sm:$0xff]
    %v3567 = vld [vmem:[%s3522 + $0x160] sm:$0xff]
    %v3568 = vld [vmem:[%s3522 + $0x168] sm:$0xff]
    %v3569 = vld [vmem:[%s3522 + $0x170] sm:$0xff]
    %v3570 = vld [vmem:[%s3522 + $0x178] sm:$0xff]
    %v3571 = vld [vmem:[%s3522 + $0x180] sm:$0xff]
    %v3572 = vld [vmem:[%s3522 + $0x188] sm:$0xff]
    %v3573 = vld [vmem:[%s3522 + $0x190] sm:$0xff]
    %v3574 = vld [vmem:[%s3522 + $0x198] sm:$0xff]
    %v3575 = vld [vmem:[%s3522 + $0x1a0] sm:$0xff]
    %v3576 = vld [vmem:[%s3522 + $0x1a8] sm:$0xff]
    %v3577 = vld [vmem:[%s3522 + $0x1b0] sm:$0xff]
    %v3578 = vld [vmem:[%s3522 + $0x1b8] sm:$0xff]
    %v3579 = vld [vmem:[%s3522 + $0x1c0] sm:$0xff]
    %v3580 = vld [vmem:[%s3522 + $0x1c8] sm:$0xff]
    %v3581 = vld [vmem:[%s3522 + $0x1d0] sm:$0xff]
    %v3582 = vld [vmem:[%s3522 + $0x1d8] sm:$0xff]
    %v3583 = vld [vmem:[%s3522 + $0x1e0] sm:$0xff]
    %v3584 = vld [vmem:[%s3522 + $0x1e8] sm:$0xff]
    %v3585 = vld [vmem:[%s3522 + $0x1f0] sm:$0xff]
    %v3586 = vld [vmem:[%s3522 + $0x1f8] sm:$0xff]
    %v3587 = vld [vmem:[%s3522 + $0x200] sm:$0xff]
    %v3588 = vld [vmem:[%s3522 + $0x208] sm:$0xff]
    %v3589 = vld [vmem:[%s3522 + $0x210] sm:$0xff]
    %v3590 = vld [vmem:[%s3522 + $0x218] sm:$0xff]
    %v3591 = vld [vmem:[%s3522 + $0x220] sm:$0xff]
    %v3592 = vld [vmem:[%s3522 + $0x228] sm:$0xff]
    %v3593 = vld [vmem:[%s3522 + $0x230] sm:$0xff]
    %v3594 = vld [vmem:[%s3522 + $0x238] sm:$0xff]
    %v3595 = vld [vmem:[%s3522 + $0x240] sm:$0xff]
    %v3596 = vld [vmem:[%s3522 + $0x248] sm:$0xff]
    %v3597 = vld [vmem:[%s3522 + $0x250] sm:$0xff]
    %v3598 = vld [vmem:[%s3522 + $0x258] sm:$0xff]
    %v3599 = vld [vmem:[%s3522 + $0x260] sm:$0xff]
    %v3600 = vld [vmem:[%s3522 + $0x268] sm:$0xff]
    %v3601 = vld [vmem:[%s3522 + $0x270] sm:$0xff]
    %v3602 = vld [vmem:[%s3522 + $0x278] sm:$0xff]
    %v3603 = vld [vmem:[%s3522 + $0x280] sm:$0xff]
    %v3604 = vld [vmem:[%s3522 + $0x288] sm:$0xff]
    %v3605 = vld [vmem:[%s3522 + $0x290] sm:$0xff]
    %v3606 = vld [vmem:[%s3522 + $0x298] sm:$0xff]
    %v3607 = vld [vmem:[%s3522 + $0x2a0] sm:$0xff]
    %v3608 = vld [vmem:[%s3522 + $0x2a8] sm:$0xff]
    %v3609 = vld [vmem:[%s3522 + $0x2b0] sm:$0xff]
    %v3610 = vld [vmem:[%s3522 + $0x2b8] sm:$0xff]
    %v3611 = vld [vmem:[%s3522 + $0x2c0] sm:$0xff]
    %v3612 = vld [vmem:[%s3522 + $0x2c8] sm:$0xff]
    %v3613 = vld [vmem:[%s3522 + $0x2d0] sm:$0xff]
    %v3614 = vld [vmem:[%s3522 + $0x2d8] sm:$0xff]
    %v3615 = vld [vmem:[%s3522 + $0x2e0] sm:$0xff]
    %v3616 = vld [vmem:[%s3522 + $0x2e8] sm:$0xff]
    %v3617 = vld [vmem:[%s3522 + $0x2f0] sm:$0xff]
    %v3618 = vld [vmem:[%s3522 + $0x2f8] sm:$0xff]
    %v3619 = vld [vmem:[%s3522 + $0x300] sm:$0xff]
    %v3620 = vld [vmem:[%s3522 + $0x308] sm:$0xff]
    %v3621 = vld [vmem:[%s3522 + $0x310] sm:$0xff]
    %v3622 = vld [vmem:[%s3522 + $0x318] sm:$0xff]
    %v3623 = vld [vmem:[%s3522 + $0x320] sm:$0xff]
    %v3624 = vld [vmem:[%s3522 + $0x328] sm:$0xff]
    %v3625 = vld [vmem:[%s3522 + $0x330] sm:$0xff]
    %v3626 = vld [vmem:[%s3522 + $0x338] sm:$0xff]
    %v3627 = vld [vmem:[%s3522 + $0x340] sm:$0xff]
    %v3628 = vld [vmem:[%s3522 + $0x348] sm:$0xff]
    %v3629 = vld [vmem:[%s3522 + $0x350] sm:$0xff]
    %v3630 = vld [vmem:[%s3522 + $0x358] sm:$0xff]
    %v3631 = vld [vmem:[%s3522 + $0x360] sm:$0xff]
    %v3632 = vld [vmem:[%s3522 + $0x368] sm:$0xff]
    %v3633 = vld [vmem:[%s3522 + $0x370] sm:$0xff]
    %v3634 = vld [vmem:[%s3522 + $0x378] sm:$0xff]
    %v3635 = vld [vmem:[%s3522 + $0x380] sm:$0xff]
    %v3636 = vld [vmem:[%s3522 + $0x388] sm:$0xff]
    %v3637 = vld [vmem:[%s3522 + $0x390] sm:$0xff]
    %v3638 = vld [vmem:[%s3522 + $0x398] sm:$0xff]
    %v3639 = vld [vmem:[%s3522 + $0x3a0] sm:$0xff]
    %v3640 = vld [vmem:[%s3522 + $0x3a8] sm:$0xff]
    %v3641 = vld [vmem:[%s3522 + $0x3b0] sm:$0xff]
    %v3642 = vld [vmem:[%s3522 + $0x3b8] sm:$0xff]
    %v3643 = vld [vmem:[%s3522 + $0x3c0] sm:$0xff]
    %v3644 = vld [vmem:[%s3522 + $0x3c8] sm:$0xff]
    %v3645 = vld [vmem:[%s3522 + $0x3d0] sm:$0xff]
    %v3646 = vld [vmem:[%s3522 + $0x3d8] sm:$0xff]
    %v3647 = vld [vmem:[%s3522 + $0x3e0] sm:$0xff]
    %v3648 = vld [vmem:[%s3522 + $0x3e8] sm:$0xff]
    %v3649 = vld [vmem:[%s3522 + $0x3f0] sm:$0xff]
    %v3650 = vld [vmem:[%s3522 + $0x3f8] sm:$0xff]
    %v3651 = vld [vmem:[%s3522 + $0x400] sm:$0xff]
    %v3652 = vld [vmem:[%s3522 + $0x408] sm:$0xff]
    %v3653 = vld [vmem:[%s3522 + $0x410] sm:$0xff]
    %v3654 = vld [vmem:[%s3522 + $0x418] sm:$0xff]
    %v3655 = vld [vmem:[%s3522 + $0x420] sm:$0xff]
    %v3656 = vld [vmem:[%s3522 + $0x428] sm:$0xff]
    %v3657 = vld [vmem:[%s3522 + $0x430] sm:$0xff]
    %v3658 = vld [vmem:[%s3522 + $0x438] sm:$0xff]
    %v3659 = vld [vmem:[%s3522 + $0x440] sm:$0xff]
    %v3660 = vld [vmem:[%s3522 + $0x448] sm:$0xff]
    %v3661 = vld [vmem:[%s3522 + $0x450] sm:$0xff]
    %v3662 = vld [vmem:[%s3522 + $0x458] sm:$0xff]
    %v3663 = vld [vmem:[%s3522 + $0x460] sm:$0xff]
    %v3664 = vld [vmem:[%s3522 + $0x468] sm:$0xff]
    %v3665 = vld [vmem:[%s3522 + $0x470] sm:$0xff]
    %v3666 = vld [vmem:[%s3522 + $0x478] sm:$0xff]
    %v3667 = vld [vmem:[%s3522 + $0x480] sm:$0xff]
    %v3668 = vld [vmem:[%s3522 + $0x488] sm:$0xff]
    %v3669 = vld [vmem:[%s3522 + $0x490] sm:$0xff]
    %v3670 = vld [vmem:[%s3522 + $0x498] sm:$0xff]
    %v3671 = vld [vmem:[%s3522 + $0x4a0] sm:$0xff]
    %v3672 = vld [vmem:[%s3522 + $0x4a8] sm:$0xff]
    %v3673 = vld [vmem:[%s3522 + $0x4b0] sm:$0xff]
    %v3674 = vld [vmem:[%s3522 + $0x4b8] sm:$0xff]
    %v3675 = vld [vmem:[%s3522 + $0x4c0] sm:$0xff]
    %v3676 = vld [vmem:[%s3522 + $0x4c8] sm:$0xff]
    %v3677 = vld [vmem:[%s3522 + $0x4d0] sm:$0xff]
    %v3678 = vld [vmem:[%s3522 + $0x4d8] sm:$0xff]
    %v3679 = vld [vmem:[%s3522 + $0x4e0] sm:$0xff]
    %v3680 = vld [vmem:[%s3522 + $0x4e8] sm:$0xff]
    %v3681 = vld [vmem:[%s3522 + $0x4f0] sm:$0xff]
    %v3682 = vld [vmem:[%s3522 + $0x4f8] sm:$0xff]
    %v3683 = vld [vmem:[%s3522 + $0x500] sm:$0xff]
    %v3684 = vld [vmem:[%s3522 + $0x508] sm:$0xff]
    %v3685 = vld [vmem:[%s3522 + $0x510] sm:$0xff]
    %v3686 = vld [vmem:[%s3522 + $0x518] sm:$0xff]
    %v3687 = vld [vmem:[%s3522 + $0x520] sm:$0xff]
    %v3688 = vld [vmem:[%s3522 + $0x528] sm:$0xff]
    %v3689 = vld [vmem:[%s3522 + $0x530] sm:$0xff]
    %v3690 = vld [vmem:[%s3522 + $0x538] sm:$0xff]
    %v3691 = vld [vmem:[%s3522 + $0x540] sm:$0xff]
    %v3692 = vld [vmem:[%s3522 + $0x548] sm:$0xff]
    %v3693 = vld [vmem:[%s3522 + $0x550] sm:$0xff]
    %v3694 = vld [vmem:[%s3522 + $0x558] sm:$0xff]
    %v3695 = vld [vmem:[%s3522 + $0x560] sm:$0xff]
    %v3696 = vld [vmem:[%s3522 + $0x568] sm:$0xff]
    %v3697 = vld [vmem:[%s3522 + $0x570] sm:$0xff]
    %v3698 = vld [vmem:[%s3522 + $0x578] sm:$0xff]
    %v3699 = vld [vmem:[%s3522 + $0x580] sm:$0xff]
    %v3700 = vld [vmem:[%s3522 + $0x588] sm:$0xff]
    %v3701 = vld [vmem:[%s3522 + $0x590] sm:$0xff]
    %v3702 = vld [vmem:[%s3522 + $0x598] sm:$0xff]
    %v3703 = vld [vmem:[%s3522 + $0x5a0] sm:$0xff]
    %v3704 = vld [vmem:[%s3522 + $0x5a8] sm:$0xff]
    %v3705 = vld [vmem:[%s3522 + $0x5b0] sm:$0xff]
    %v3706 = vld [vmem:[%s3522 + $0x5b8] sm:$0xff]
    %v3707 = vld [vmem:[%s3522 + $0x5c0] sm:$0xff]
    %v3708 = vld [vmem:[%s3522 + $0x5c8] sm:$0xff]
    %v3709 = vld [vmem:[%s3522 + $0x5d0] sm:$0xff]
    %v3710 = vld [vmem:[%s3522 + $0x5d8] sm:$0xff]
    %v3711 = vld [vmem:[%s3522 + $0x5e0] sm:$0xff]
    %v3712 = vld [vmem:[%s3522 + $0x5e8] sm:$0xff]
    %v3713 = vld [vmem:[%s3522 + $0x5f0] sm:$0xff]
    %v3714 = vld [vmem:[%s3522 + $0x5f8] sm:$0xff]
    %v3715 = vld [vmem:[%s3522 + $0x600] sm:$0xff]
    %v3716 = vld [vmem:[%s3522 + $0x608] sm:$0xff]
    %v3717 = vld [vmem:[%s3522 + $0x610] sm:$0xff]
    %v3718 = vld [vmem:[%s3522 + $0x618] sm:$0xff]
    %v3719 = vld [vmem:[%s3522 + $0x620] sm:$0xff]
    %v3720 = vld [vmem:[%s3522 + $0x628] sm:$0xff]
    %v3721 = vld [vmem:[%s3522 + $0x630] sm:$0xff]
    %v3722 = vld [vmem:[%s3522 + $0x638] sm:$0xff]
    %v3723 = vld [vmem:[%s3522 + $0x640] sm:$0xff]
    %v3724 = vld [vmem:[%s3522 + $0x648] sm:$0xff]
    %v3725 = vld [vmem:[%s3522 + $0x650] sm:$0xff]
    %v3726 = vld [vmem:[%s3522 + $0x658] sm:$0xff]
    %v3727 = vld [vmem:[%s3522 + $0x660] sm:$0xff]
    %v3728 = vld [vmem:[%s3522 + $0x668] sm:$0xff]
    %v3729 = vld [vmem:[%s3522 + $0x670] sm:$0xff]
    %v3730 = vld [vmem:[%s3522 + $0x678] sm:$0xff]
    %v3731 = vld [vmem:[%s3522 + $0x680] sm:$0xff]
    %v3732 = vld [vmem:[%s3522 + $0x688] sm:$0xff]
    %v3733 = vld [vmem:[%s3522 + $0x690] sm:$0xff]
    %v3734 = vld [vmem:[%s3522 + $0x698] sm:$0xff]
    %v3735 = vld [vmem:[%s3522 + $0x6a0] sm:$0xff]
    %v3736 = vld [vmem:[%s3522 + $0x6a8] sm:$0xff]
    %v3737 = vld [vmem:[%s3522 + $0x6b0] sm:$0xff]
    %v3738 = vld [vmem:[%s3522 + $0x6b8] sm:$0xff]
    %v3739 = vld [vmem:[%s3522 + $0x6c0] sm:$0xff]
    %v3740 = vld [vmem:[%s3522 + $0x6c8] sm:$0xff]
    %v3741 = vld [vmem:[%s3522 + $0x6d0] sm:$0xff]
    %v3742 = vld [vmem:[%s3522 + $0x6d8] sm:$0xff]
    %v3743 = vld [vmem:[%s3522 + $0x6e0] sm:$0xff]
    %v3744 = vld [vmem:[%s3522 + $0x6e8] sm:$0xff]
    %v3745 = vld [vmem:[%s3522 + $0x6f0] sm:$0xff]
    %v3746 = vld [vmem:[%s3522 + $0x6f8] sm:$0xff]
    %v3747 = vld [vmem:[%s3522 + $0x700] sm:$0xff]
    %v3748 = vld [vmem:[%s3522 + $0x708] sm:$0xff]
    %v3749 = vld [vmem:[%s3522 + $0x710] sm:$0xff]
    %v3750 = vld [vmem:[%s3522 + $0x718] sm:$0xff]
    %v3751 = vld [vmem:[%s3522 + $0x720] sm:$0xff]
    %v3752 = vld [vmem:[%s3522 + $0x728] sm:$0xff]
    %v3753 = vld [vmem:[%s3522 + $0x730] sm:$0xff]
    %v3754 = vld [vmem:[%s3522 + $0x738] sm:$0xff]
    %v3755 = vld [vmem:[%s3522 + $0x740] sm:$0xff]
    %v3756 = vld [vmem:[%s3522 + $0x748] sm:$0xff]
    %v3757 = vld [vmem:[%s3522 + $0x750] sm:$0xff]
    %v3758 = vld [vmem:[%s3522 + $0x758] sm:$0xff]
    %v3759 = vld [vmem:[%s3522 + $0x760] sm:$0xff]
    %v3760 = vld [vmem:[%s3522 + $0x768] sm:$0xff]
    %v3761 = vld [vmem:[%s3522 + $0x770] sm:$0xff]
    %v3762 = vld [vmem:[%s3522 + $0x778] sm:$0xff]
    %v3763 = vld [vmem:[%s3522 + $0x780] sm:$0xff]
    %v3764 = vld [vmem:[%s3522 + $0x788] sm:$0xff]
    %v3765 = vld [vmem:[%s3522 + $0x790] sm:$0xff]
    %v3766 = vld [vmem:[%s3522 + $0x798] sm:$0xff]
    %v3767 = vld [vmem:[%s3522 + $0x7a0] sm:$0xff]
    %v3768 = vld [vmem:[%s3522 + $0x7a8] sm:$0xff]
    %v3769 = vld [vmem:[%s3522 + $0x7b0] sm:$0xff]
    %v3770 = vld [vmem:[%s3522 + $0x7b8] sm:$0xff]
    %v3771 = vld [vmem:[%s3522 + $0x7c0] sm:$0xff]
    %v3772 = vld [vmem:[%s3522 + $0x7c8] sm:$0xff]
    %v3773 = vld [vmem:[%s3522 + $0x7d0] sm:$0xff]
    %v3774 = vld [vmem:[%s3522 + $0x7d8] sm:$0xff]
    %v3775 = vld [vmem:[%s3522 + $0x7e0] sm:$0xff]
    %v3776 = vld [vmem:[%s3522 + $0x7e8] sm:$0xff]
    %v3777 = vld [vmem:[%s3522 + $0x7f0] sm:$0xff]
    %v3778 = vld [vmem:[%s3522 + $0x7f8] sm:$0xff]
    %s3779 = scalar_lea.vmem %s10, 1
    %v3780 = vld [vmem:[%s3779] sm:$0x1]
    %v3782 = vlaneseq
    %v3783 = vshrl.u32 %v3782, 7
    %v3784 = vsub.s32 0, %v3783
    %v3785 = vrot.slane %v3780, %v3784
    %3787 = vmatprep.subr.mxu0 0.0
    %3788 = vmatpush1.msra.mxu0 %v3523
    %3789 = vmatprep.subr.mxu0 0.0
    %3790 = vmatpush1.msra.mxu0 %v3524
    %3791 = vmatprep.subr.mxu0 0.0
    %3792 = vmatpush1.msra.mxu0 %v3525
    %3793 = vmatprep.subr.mxu0 0.0
    %3794 = vmatpush1.msra.mxu0 %v3526
    %3795 = vmatprep.subr.mxu0 0.0
    %3796 = vmatpush1.msra.mxu0 %v3527
    %3797 = vmatprep.subr.mxu0 0.0
    %3798 = vmatpush1.msra.mxu0 %v3528
    %3799 = vmatprep.subr.mxu0 0.0
    %3800 = vmatpush1.msra.mxu0 %v3529
    %3801 = vmatprep.subr.mxu0 0.0
    %3802 = vmatpush1.msra.mxu0 %v3530
    %3803 = vmatprep.subr.mxu0 0.0
    %3804 = vmatpush1.msra.mxu0 %v3531
    %3805 = vmatprep.subr.mxu0 0.0
    %3806 = vmatpush1.msra.mxu0 %v3532
    %3807 = vmatprep.subr.mxu0 0.0
    %3808 = vmatpush1.msra.mxu0 %v3533
    %3809 = vmatprep.subr.mxu0 0.0
    %3810 = vmatpush1.msra.mxu0 %v3534
    %3811 = vmatprep.subr.mxu0 0.0
    %3812 = vmatpush1.msra.mxu0 %v3535
    %3813 = vmatprep.subr.mxu0 0.0
    %3814 = vmatpush1.msra.mxu0 %v3536
    %3815 = vmatprep.subr.mxu0 0.0
    %3816 = vmatpush1.msra.mxu0 %v3537
    %3817 = vmatprep.subr.mxu0 0.0
    %3818 = vmatpush1.msra.mxu0 %v3538
    %3819 = vmatprep.subr.mxu0 0.0
    %3820 = vmatpush1.msra.mxu0 %v3539
    %3821 = vmatprep.subr.mxu0 0.0
    %3822 = vmatpush1.msra.mxu0 %v3540
    %3823 = vmatprep.subr.mxu0 0.0
    %3824 = vmatpush1.msra.mxu0 %v3541
    %3825 = vmatprep.subr.mxu0 0.0
    %3826 = vmatpush1.msra.mxu0 %v3542
    %3827 = vmatprep.subr.mxu0 0.0
    %3828 = vmatpush1.msra.mxu0 %v3543
    %3829 = vmatprep.subr.mxu0 0.0
    %3830 = vmatpush1.msra.mxu0 %v3544
    %3831 = vmatprep.subr.mxu0 0.0
    %3832 = vmatpush1.msra.mxu0 %v3545
    %3833 = vmatprep.subr.mxu0 0.0
    %3834 = vmatpush1.msra.mxu0 %v3546
    %3835 = vmatprep.subr.mxu0 0.0
    %3836 = vmatpush1.msra.mxu0 %v3547
    %3837 = vmatprep.subr.mxu0 0.0
    %3838 = vmatpush1.msra.mxu0 %v3548
    %3839 = vmatprep.subr.mxu0 0.0
    %3840 = vmatpush1.msra.mxu0 %v3549
    %3841 = vmatprep.subr.mxu0 0.0
    %3842 = vmatpush1.msra.mxu0 %v3550
    %3843 = vmatprep.subr.mxu0 0.0
    %3844 = vmatpush1.msra.mxu0 %v3551
    %3845 = vmatprep.subr.mxu0 0.0
    %3846 = vmatpush1.msra.mxu0 %v3552
    %3847 = vmatprep.subr.mxu0 0.0
    %3848 = vmatpush1.msra.mxu0 %v3553
    %3849 = vmatprep.subr.mxu0 0.0
    %3850 = vmatpush1.msra.mxu0 %v3554
    %3851 = vmatprep.mubr.f32.mxu0 %v3491
    %3852 = vmatmul.mubr.f32.gmra.mrb[0].mxu0 %v3490
    %v3853 = vpop.f32.mrb[0].mxu0
    %v3854 = vadd.f32 %v3785, %v3853
    %v3855 = vpop.f32.mrb[0].mxu0
    %3856 = vmatprep.mubr.f32.mxu0 %v3507
    %3857 = vmatmul.mubr.f32.gmra.mrb[0].mxu0 %v3506
    %v3858 = vpop.f32.mrb[0].mxu0
    %v3859 = vadd.f32 %v3785, %v3858
    %v3860 = vpop.f32.mrb[0].mxu0
    %3861 = vdwg.mxu0
    %3862 = vmatprep.subr.mxu0 0.0
    %3863 = vmatpush1.msra.mxu0 %v3555
    %3864 = vmatprep.subr.mxu0 0.0
    %3865 = vmatpush1.msra.mxu0 %v3556
    %3866 = vmatprep.subr.mxu0 0.0
    %3867 = vmatpush1.msra.mxu0 %v3557
    %3868 = vmatprep.subr.mxu0 0.0
    %3869 = vmatpush1.msra.mxu0 %v3558
    %3870 = vmatprep.subr.mxu0 0.0
    %3871 = vmatpush1.msra.mxu0 %v3559
    %3872 = vmatprep.subr.mxu0 0.0
    %3873 = vmatpush1.msra.mxu0 %v3560
    %3874 = vmatprep.subr.mxu0 0.0
    %3875 = vmatpush1.msra.mxu0 %v3561
    %3876 = vmatprep.subr.mxu0 0.0
    %3877 = vmatpush1.msra.mxu0 %v3562
    %3878 = vmatprep.subr.mxu0 0.0
    %3879 = vmatpush1.msra.mxu0 %v3563
    %3880 = vmatprep.subr.mxu0 0.0
    %3881 = vmatpush1.msra.mxu0 %v3564
    %3882 = vmatprep.subr.mxu0 0.0
    %3883 = vmatpush1.msra.mxu0 %v3565
    %3884 = vmatprep.subr.mxu0 0.0
    %3885 = vmatpush1.msra.mxu0 %v3566
    %3886 = vmatprep.subr.mxu0 0.0
    %3887 = vmatpush1.msra.mxu0 %v3567
    %3888 = vmatprep.subr.mxu0 0.0
    %3889 = vmatpush1.msra.mxu0 %v3568
    %3890 = vmatprep.subr.mxu0 0.0
    %3891 = vmatpush1.msra.mxu0 %v3569
    %3892 = vmatprep.subr.mxu0 0.0
    %3893 = vmatpush1.msra.mxu0 %v3570
    %3894 = vmatprep.subr.mxu0 0.0
    %3895 = vmatpush1.msra.mxu0 %v3571
    %3896 = vmatprep.subr.mxu0 0.0
    %3897 = vmatpush1.msra.mxu0 %v3572
    %3898 = vmatprep.subr.mxu0 0.0
    %3899 = vmatpush1.msra.mxu0 %v3573
    %3900 = vmatprep.subr.mxu0 0.0
    %3901 = vmatpush1.msra.mxu0 %v3574
    %3902 = vmatprep.subr.mxu0 0.0
    %3903 = vmatpush1.msra.mxu0 %v3575
    %3904 = vmatprep.subr.mxu0 0.0
    %3905 = vmatpush1.msra.mxu0 %v3576
    %3906 = vmatprep.subr.mxu0 0.0
    %3907 = vmatpush1.msra.mxu0 %v3577
    %3908 = vmatprep.subr.mxu0 0.0
    %3909 = vmatpush1.msra.mxu0 %v3578
    %3910 = vmatprep.subr.mxu0 0.0
    %3911 = vmatpush1.msra.mxu0 %v3579
    %3912 = vmatprep.subr.mxu0 0.0
    %3913 = vmatpush1.msra.mxu0 %v3580
    %3914 = vmatprep.subr.mxu0 0.0
    %3915 = vmatpush1.msra.mxu0 %v3581
    %3916 = vmatprep.subr.mxu0 0.0
    %3917 = vmatpush1.msra.mxu0 %v3582
    %3918 = vmatprep.subr.mxu0 0.0
    %3919 = vmatpush1.msra.mxu0 %v3583
    %3920 = vmatprep.subr.mxu0 0.0
    %3921 = vmatpush1.msra.mxu0 %v3584
    %3922 = vmatprep.subr.mxu0 0.0
    %3923 = vmatpush1.msra.mxu0 %v3585
    %3924 = vmatprep.subr.mxu0 0.0
    %3925 = vmatpush1.msra.mxu0 %v3586
    %3926 = vmatprep.mubr.f32.mxu0 %v3493
    %3927 = vmatmul.mubr.f32.gmra.mrb[0].mxu0 %v3492
    %v3928 = vpop.f32.mrb[0].mxu0
    %v3929 = vadd.f32 %v3854, %v3928
    %v3930 = vpop.f32.mrb[0].mxu0
    %3931 = vmatprep.mubr.f32.mxu0 %v3509
    %3932 = vmatmul.mubr.f32.gmra.mrb[0].mxu0 %v3508
    %v3933 = vpop.f32.mrb[0].mxu0
    %v3934 = vadd.f32 %v3859, %v3933
    %v3935 = vpop.f32.mrb[0].mxu0
    %3936 = vdwg.mxu0
    %3937 = vmatprep.subr.mxu0 0.0
    %3938 = vmatpush1.msra.mxu0 %v3587
    %3939 = vmatprep.subr.mxu0 0.0
    %3940 = vmatpush1.msra.mxu0 %v3588
    %3941 = vmatprep.subr.mxu0 0.0
    %3942 = vmatpush1.msra.mxu0 %v3589
    %3943 = vmatprep.subr.mxu0 0.0
    %3944 = vmatpush1.msra.mxu0 %v3590
    %3945 = vmatprep.subr.mxu0 0.0
    %3946 = vmatpush1.msra.mxu0 %v3591
    %3947 = vmatprep.subr.mxu0 0.0
    %3948 = vmatpush1.msra.mxu0 %v3592
    %3949 = vmatprep.subr.mxu0 0.0
    %3950 = vmatpush1.msra.mxu0 %v3593
    %3951 = vmatprep.subr.mxu0 0.0
    %3952 = vmatpush1.msra.mxu0 %v3594
    %3953 = vmatprep.subr.mxu0 0.0
    %3954 = vmatpush1.msra.mxu0 %v3595
    %3955 = vmatprep.subr.mxu0 0.0
    %3956 = vmatpush1.msra.mxu0 %v3596
    %3957 = vmatprep.subr.mxu0 0.0
    %3958 = vmatpush1.msra.mxu0 %v3597
    %3959 = vmatprep.subr.mxu0 0.0
    %3960 = vmatpush1.msra.mxu0 %v3598
    %3961 = vmatprep.subr.mxu0 0.0
    %3962 = vmatpush1.msra.mxu0 %v3599
    %3963 = vmatprep.subr.mxu0 0.0
    %3964 = vmatpush1.msra.mxu0 %v3600
    %3965 = vmatprep.subr.mxu0 0.0
    %3966 = vmatpush1.msra.mxu0 %v3601
    %3967 = vmatprep.subr.mxu0 0.0
    %3968 = vmatpush1.msra.mxu0 %v3602
    %3969 = vmatprep.subr.mxu0 0.0
    %3970 = vmatpush1.msra.mxu0 %v3603
    %3971 = vmatprep.subr.mxu0 0.0
    %3972 = vmatpush1.msra.mxu0 %v3604
    %3973 = vmatprep.subr.mxu0 0.0
    %3974 = vmatpush1.msra.mxu0 %v3605
    %3975 = vmatprep.subr.mxu0 0.0
    %3976 = vmatpush1.msra.mxu0 %v3606
    %3977 = vmatprep.subr.mxu0 0.0
    %3978 = vmatpush1.msra.mxu0 %v3607
    %3979 = vmatprep.subr.mxu0 0.0
    %3980 = vmatpush1.msra.mxu0 %v3608
    %3981 = vmatprep.subr.mxu0 0.0
    %3982 = vmatpush1.msra.mxu0 %v3609
    %3983 = vmatprep.subr.mxu0 0.0
    %3984 = vmatpush1.msra.mxu0 %v3610
    %3985 = vmatprep.subr.mxu0 0.0
    %3986 = vmatpush1.msra.mxu0 %v3611
    %3987 = vmatprep.subr.mxu0 0.0
    %3988 = vmatpush1.msra.mxu0 %v3612
    %3989 = vmatprep.subr.mxu0 0.0
    %3990 = vmatpush1.msra.mxu0 %v3613
    %3991 = vmatprep.subr.mxu0 0.0
    %3992 = vmatpush1.msra.mxu0 %v3614
    %3993 = vmatprep.subr.mxu0 0.0
    %3994 = vmatpush1.msra.mxu0 %v3615
    %3995 = vmatprep.subr.mxu0 0.0
    %3996 = vmatpush1.msra.mxu0 %v3616
    %3997 = vmatprep.subr.mxu0 0.0
    %3998 = vmatpush1.msra.mxu0 %v3617
    %3999 = vmatprep.subr.mxu0 0.0
    %4000 = vmatpush1.msra.mxu0 %v3618
    %4001 = vmatprep.mubr.f32.mxu0 %v3495
    %4002 = vmatmul.mubr.f32.gmra.mrb[0].mxu0 %v3494
    %v4003 = vpop.f32.mrb[0].mxu0
    %v4004 = vadd.f32 %v3929, %v4003
    %v4005 = vpop.f32.mrb[0].mxu0
    %4006 = vmatprep.mubr.f32.mxu0 %v3511
    %4007 = vmatmul.mubr.f32.gmra.mrb[0].mxu0 %v3510
    %v4008 = vpop.f32.mrb[0].mxu0
    %v4009 = vadd.f32 %v3934, %v4008
    %v4010 = vpop.f32.mrb[0].mxu0
    %4011 = vdwg.mxu0
    %4012 = vmatprep.subr.mxu0 0.0
    %4013 = vmatpush1.msra.mxu0 %v3619
    %4014 = vmatprep.subr.mxu0 0.0
    %4015 = vmatpush1.msra.mxu0 %v3620
    %4016 = vmatprep.subr.mxu0 0.0
    %4017 = vmatpush1.msra.mxu0 %v3621
    %4018 = vmatprep.subr.mxu0 0.0
    %4019 = vmatpush1.msra.mxu0 %v3622
    %4020 = vmatprep.subr.mxu0 0.0
    %4021 = vmatpush1.msra.mxu0 %v3623
    %4022 = vmatprep.subr.mxu0 0.0
    %4023 = vmatpush1.msra.mxu0 %v3624
    %4024 = vmatprep.subr.mxu0 0.0
    %4025 = vmatpush1.msra.mxu0 %v3625
    %4026 = vmatprep.subr.mxu0 0.0
    %4027 = vmatpush1.msra.mxu0 %v3626
    %4028 = vmatprep.subr.mxu0 0.0
    %4029 = vmatpush1.msra.mxu0 %v3627
    %4030 = vmatprep.subr.mxu0 0.0
    %4031 = vmatpush1.msra.mxu0 %v3628
    %4032 = vmatprep.subr.mxu0 0.0
    %4033 = vmatpush1.msra.mxu0 %v3629
    %4034 = vmatprep.subr.mxu0 0.0
    %4035 = vmatpush1.msra.mxu0 %v3630
    %4036 = vmatprep.subr.mxu0 0.0
    %4037 = vmatpush1.msra.mxu0 %v3631
    %4038 = vmatprep.subr.mxu0 0.0
    %4039 = vmatpush1.msra.mxu0 %v3632
    %4040 = vmatprep.subr.mxu0 0.0
    %4041 = vmatpush1.msra.mxu0 %v3633
    %4042 = vmatprep.subr.mxu0 0.0
    %4043 = vmatpush1.msra.mxu0 %v3634
    %4044 = vmatprep.subr.mxu0 0.0
    %4045 = vmatpush1.msra.mxu0 %v3635
    %4046 = vmatprep.subr.mxu0 0.0
    %4047 = vmatpush1.msra.mxu0 %v3636
    %4048 = vmatprep.subr.mxu0 0.0
    %4049 = vmatpush1.msra.mxu0 %v3637
    %4050 = vmatprep.subr.mxu0 0.0
    %4051 = vmatpush1.msra.mxu0 %v3638
    %4052 = vmatprep.subr.mxu0 0.0
    %4053 = vmatpush1.msra.mxu0 %v3639
    %4054 = vmatprep.subr.mxu0 0.0
    %4055 = vmatpush1.msra.mxu0 %v3640
    %4056 = vmatprep.subr.mxu0 0.0
    %4057 = vmatpush1.msra.mxu0 %v3641
    %4058 = vmatprep.subr.mxu0 0.0
    %4059 = vmatpush1.msra.mxu0 %v3642
    %4060 = vmatprep.subr.mxu0 0.0
    %4061 = vmatpush1.msra.mxu0 %v3643
    %4062 = vmatprep.subr.mxu0 0.0
    %4063 = vmatpush1.msra.mxu0 %v3644
    %4064 = vmatprep.subr.mxu0 0.0
    %4065 = vmatpush1.msra.mxu0 %v3645
    %4066 = vmatprep.subr.mxu0 0.0
    %4067 = vmatpush1.msra.mxu0 %v3646
    %4068 = vmatprep.subr.mxu0 0.0
    %4069 = vmatpush1.msra.mxu0 %v3647
    %4070 = vmatprep.subr.mxu0 0.0
    %4071 = vmatpush1.msra.mxu0 %v3648
    %4072 = vmatprep.subr.mxu0 0.0
    %4073 = vmatpush1.msra.mxu0 %v3649
    %4074 = vmatprep.subr.mxu0 0.0
    %4075 = vmatpush1.msra.mxu0 %v3650
    %4076 = vmatprep.mubr.f32.mxu0 %v3497
    %4077 = vmatmul.mubr.f32.gmra.mrb[0].mxu0 %v3496
    %v4078 = vpop.f32.mrb[0].mxu0
    %v4079 = vadd.f32 %v4004, %v4078
    %v4080 = vpop.f32.mrb[0].mxu0
    %4081 = vmatprep.mubr.f32.mxu0 %v3513
    %4082 = vmatmul.mubr.f32.gmra.mrb[0].mxu0 %v3512
    %v4083 = vpop.f32.mrb[0].mxu0
    %v4084 = vadd.f32 %v4009, %v4083
    %v4085 = vpop.f32.mrb[0].mxu0
    %4086 = vdwg.mxu0
    %4087 = vmatprep.subr.mxu0 0.0
    %4088 = vmatpush1.msra.mxu0 %v3651
    %4089 = vmatprep.subr.mxu0 0.0
    %4090 = vmatpush1.msra.mxu0 %v3652
    %4091 = vmatprep.subr.mxu0 0.0
    %4092 = vmatpush1.msra.mxu0 %v3653
    %4093 = vmatprep.subr.mxu0 0.0
    %4094 = vmatpush1.msra.mxu0 %v3654
    %4095 = vmatprep.subr.mxu0 0.0
    %4096 = vmatpush1.msra.mxu0 %v3655
    %4097 = vmatprep.subr.mxu0 0.0
    %4098 = vmatpush1.msra.mxu0 %v3656
    %4099 = vmatprep.subr.mxu0 0.0
    %4100 = vmatpush1.msra.mxu0 %v3657
    %4101 = vmatprep.subr.mxu0 0.0
    %4102 = vmatpush1.msra.mxu0 %v3658
    %4103 = vmatprep.subr.mxu0 0.0
    %4104 = vmatpush1.msra.mxu0 %v3659
    %4105 = vmatprep.subr.mxu0 0.0
    %4106 = vmatpush1.msra.mxu0 %v3660
    %4107 = vmatprep.subr.mxu0 0.0
    %4108 = vmatpush1.msra.mxu0 %v3661
    %4109 = vmatprep.subr.mxu0 0.0
    %4110 = vmatpush1.msra.mxu0 %v3662
    %4111 = vmatprep.subr.mxu0 0.0
    %4112 = vmatpush1.msra.mxu0 %v3663
    %4113 = vmatprep.subr.mxu0 0.0
    %4114 = vmatpush1.msra.mxu0 %v3664
    %4115 = vmatprep.subr.mxu0 0.0
    %4116 = vmatpush1.msra.mxu0 %v3665
    %4117 = vmatprep.subr.mxu0 0.0
    %4118 = vmatpush1.msra.mxu0 %v3666
    %4119 = vmatprep.subr.mxu0 0.0
    %4120 = vmatpush1.msra.mxu0 %v3667
    %4121 = vmatprep.subr.mxu0 0.0
    %4122 = vmatpush1.msra.mxu0 %v3668
    %4123 = vmatprep.subr.mxu0 0.0
    %4124 = vmatpush1.msra.mxu0 %v3669
    %4125 = vmatprep.subr.mxu0 0.0
    %4126 = vmatpush1.msra.mxu0 %v3670
    %4127 = vmatprep.subr.mxu0 0.0
    %4128 = vmatpush1.msra.mxu0 %v3671
    %4129 = vmatprep.subr.mxu0 0.0
    %4130 = vmatpush1.msra.mxu0 %v3672
    %4131 = vmatprep.subr.mxu0 0.0
    %4132 = vmatpush1.msra.mxu0 %v3673
    %4133 = vmatprep.subr.mxu0 0.0
    %4134 = vmatpush1.msra.mxu0 %v3674
    %4135 = vmatprep.subr.mxu0 0.0
    %4136 = vmatpush1.msra.mxu0 %v3675
    %4137 = vmatprep.subr.mxu0 0.0
    %4138 = vmatpush1.msra.mxu0 %v3676
    %4139 = vmatprep.subr.mxu0 0.0
    %4140 = vmatpush1.msra.mxu0 %v3677
    %4141 = vmatprep.subr.mxu0 0.0
    %4142 = vmatpush1.msra.mxu0 %v3678
    %4143 = vmatprep.subr.mxu0 0.0
    %4144 = vmatpush1.msra.mxu0 %v3679
    %4145 = vmatprep.subr.mxu0 0.0
    %4146 = vmatpush1.msra.mxu0 %v3680
    %4147 = vmatprep.subr.mxu0 0.0
    %4148 = vmatpush1.msra.mxu0 %v3681
    %4149 = vmatprep.subr.mxu0 0.0
    %4150 = vmatpush1.msra.mxu0 %v3682
    %4151 = vmatprep.mubr.f32.mxu0 %v3499
    %4152 = vmatmul.mubr.f32.gmra.mrb[0].mxu0 %v3498
    %v4153 = vpop.f32.mrb[0].mxu0
    %v4154 = vadd.f32 %v4079, %v4153
    %v4155 = vpop.f32.mrb[0].mxu0
    %4156 = vmatprep.mubr.f32.mxu0 %v3515
    %4157 = vmatmul.mubr.f32.gmra.mrb[0].mxu0 %v3514
    %v4158 = vpop.f32.mrb[0].mxu0
    %v4159 = vadd.f32 %v4084, %v4158
    %v4160 = vpop.f32.mrb[0].mxu0
    %4161 = vdwg.mxu0
    %4162 = vmatprep.subr.mxu0 0.0
    %4163 = vmatpush1.msra.mxu0 %v3683
    %4164 = vmatprep.subr.mxu0 0.0
    %4165 = vmatpush1.msra.mxu0 %v3684
    %4166 = vmatprep.subr.mxu0 0.0
    %4167 = vmatpush1.msra.mxu0 %v3685
    %4168 = vmatprep.subr.mxu0 0.0
    %4169 = vmatpush1.msra.mxu0 %v3686
    %4170 = vmatprep.subr.mxu0 0.0
    %4171 = vmatpush1.msra.mxu0 %v3687
    %4172 = vmatprep.subr.mxu0 0.0
    %4173 = vmatpush1.msra.mxu0 %v3688
    %4174 = vmatprep.subr.mxu0 0.0
    %4175 = vmatpush1.msra.mxu0 %v3689
    %4176 = vmatprep.subr.mxu0 0.0
    %4177 = vmatpush1.msra.mxu0 %v3690
    %4178 = vmatprep.subr.mxu0 0.0
    %4179 = vmatpush1.msra.mxu0 %v3691
    %4180 = vmatprep.subr.mxu0 0.0
    %4181 = vmatpush1.msra.mxu0 %v3692
    %4182 = vmatprep.subr.mxu0 0.0
    %4183 = vmatpush1.msra.mxu0 %v3693
    %4184 = vmatprep.subr.mxu0 0.0
    %4185 = vmatpush1.msra.mxu0 %v3694
    %4186 = vmatprep.subr.mxu0 0.0
    %4187 = vmatpush1.msra.mxu0 %v3695
    %4188 = vmatprep.subr.mxu0 0.0
    %4189 = vmatpush1.msra.mxu0 %v3696
    %4190 = vmatprep.subr.mxu0 0.0
    %4191 = vmatpush1.msra.mxu0 %v3697
    %4192 = vmatprep.subr.mxu0 0.0
    %4193 = vmatpush1.msra.mxu0 %v3698
    %4194 = vmatprep.subr.mxu0 0.0
    %4195 = vmatpush1.msra.mxu0 %v3699
    %4196 = vmatprep.subr.mxu0 0.0
    %4197 = vmatpush1.msra.mxu0 %v3700
    %4198 = vmatprep.subr.mxu0 0.0
    %4199 = vmatpush1.msra.mxu0 %v3701
    %4200 = vmatprep.subr.mxu0 0.0
    %4201 = vmatpush1.msra.mxu0 %v3702
    %4202 = vmatprep.subr.mxu0 0.0
    %4203 = vmatpush1.msra.mxu0 %v3703
    %4204 = vmatprep.subr.mxu0 0.0
    %4205 = vmatpush1.msra.mxu0 %v3704
    %4206 = vmatprep.subr.mxu0 0.0
    %4207 = vmatpush1.msra.mxu0 %v3705
    %4208 = vmatprep.subr.mxu0 0.0
    %4209 = vmatpush1.msra.mxu0 %v3706
    %4210 = vmatprep.subr.mxu0 0.0
    %4211 = vmatpush1.msra.mxu0 %v3707
    %4212 = vmatprep.subr.mxu0 0.0
    %4213 = vmatpush1.msra.mxu0 %v3708
    %4214 = vmatprep.subr.mxu0 0.0
    %4215 = vmatpush1.msra.mxu0 %v3709
    %4216 = vmatprep.subr.mxu0 0.0
    %4217 = vmatpush1.msra.mxu0 %v3710
    %4218 = vmatprep.subr.mxu0 0.0
    %4219 = vmatpush1.msra.mxu0 %v3711
    %4220 = vmatprep.subr.mxu0 0.0
    %4221 = vmatpush1.msra.mxu0 %v3712
    %4222 = vmatprep.subr.mxu0 0.0
    %4223 = vmatpush1.msra.mxu0 %v3713
    %4224 = vmatprep.subr.mxu0 0.0
    %4225 = vmatpush1.msra.mxu0 %v3714
    %4226 = vmatprep.mubr.f32.mxu0 %v3501
    %4227 = vmatmul.mubr.f32.gmra.mrb[0].mxu0 %v3500
    %v4228 = vpop.f32.mrb[0].mxu0
    %v4229 = vadd.f32 %v4154, %v4228
    %v4230 = vpop.f32.mrb[0].mxu0
    %4231 = vmatprep.mubr.f32.mxu0 %v3517
    %4232 = vmatmul.mubr.f32.gmra.mrb[0].mxu0 %v3516
    %v4233 = vpop.f32.mrb[0].mxu0
    %v4234 = vadd.f32 %v4159, %v4233
    %v4235 = vpop.f32.mrb[0].mxu0
    %4236 = vdwg.mxu0
    %4237 = vmatprep.subr.mxu0 0.0
    %4238 = vmatpush1.msra.mxu0 %v3715
    %4239 = vmatprep.subr.mxu0 0.0
    %4240 = vmatpush1.msra.mxu0 %v3716
    %4241 = vmatprep.subr.mxu0 0.0
    %4242 = vmatpush1.msra.mxu0 %v3717
    %4243 = vmatprep.subr.mxu0 0.0
    %4244 = vmatpush1.msra.mxu0 %v3718
    %4245 = vmatprep.subr.mxu0 0.0
    %4246 = vmatpush1.msra.mxu0 %v3719
    %4247 = vmatprep.subr.mxu0 0.0
    %4248 = vmatpush1.msra.mxu0 %v3720
    %4249 = vmatprep.subr.mxu0 0.0
    %4250 = vmatpush1.msra.mxu0 %v3721
    %4251 = vmatprep.subr.mxu0 0.0
    %4252 = vmatpush1.msra.mxu0 %v3722
    %4253 = vmatprep.subr.mxu0 0.0
    %4254 = vmatpush1.msra.mxu0 %v3723
    %4255 = vmatprep.subr.mxu0 0.0
    %4256 = vmatpush1.msra.mxu0 %v3724
    %4257 = vmatprep.subr.mxu0 0.0
    %4258 = vmatpush1.msra.mxu0 %v3725
    %4259 = vmatprep.subr.mxu0 0.0
    %4260 = vmatpush1.msra.mxu0 %v3726
    %4261 = vmatprep.subr.mxu0 0.0
    %4262 = vmatpush1.msra.mxu0 %v3727
    %4263 = vmatprep.subr.mxu0 0.0
    %4264 = vmatpush1.msra.mxu0 %v3728
    %4265 = vmatprep.subr.mxu0 0.0
    %4266 = vmatpush1.msra.mxu0 %v3729
    %4267 = vmatprep.subr.mxu0 0.0
    %4268 = vmatpush1.msra.mxu0 %v3730
    %4269 = vmatprep.subr.mxu0 0.0
    %4270 = vmatpush1.msra.mxu0 %v3731
    %4271 = vmatprep.subr.mxu0 0.0
    %4272 = vmatpush1.msra.mxu0 %v3732
    %4273 = vmatprep.subr.mxu0 0.0
    %4274 = vmatpush1.msra.mxu0 %v3733
    %4275 = vmatprep.subr.mxu0 0.0
    %4276 = vmatpush1.msra.mxu0 %v3734
    %4277 = vmatprep.subr.mxu0 0.0
    %4278 = vmatpush1.msra.mxu0 %v3735
    %4279 = vmatprep.subr.mxu0 0.0
    %4280 = vmatpush1.msra.mxu0 %v3736
    %4281 = vmatprep.subr.mxu0 0.0
    %4282 = vmatpush1.msra.mxu0 %v3737
    %4283 = vmatprep.subr.mxu0 0.0
    %4284 = vmatpush1.msra.mxu0 %v3738
    %4285 = vmatprep.subr.mxu0 0.0
    %4286 = vmatpush1.msra.mxu0 %v3739
    %4287 = vmatprep.subr.mxu0 0.0
    %4288 = vmatpush1.msra.mxu0 %v3740
    %4289 = vmatprep.subr.mxu0 0.0
    %4290 = vmatpush1.msra.mxu0 %v3741
    %4291 = vmatprep.subr.mxu0 0.0
    %4292 = vmatpush1.msra.mxu0 %v3742
    %4293 = vmatprep.subr.mxu0 0.0
    %4294 = vmatpush1.msra.mxu0 %v3743
    %4295 = vmatprep.subr.mxu0 0.0
    %4296 = vmatpush1.msra.mxu0 %v3744
    %4297 = vmatprep.subr.mxu0 0.0
    %4298 = vmatpush1.msra.mxu0 %v3745
    %4299 = vmatprep.subr.mxu0 0.0
    %4300 = vmatpush1.msra.mxu0 %v3746
    %4301 = vmatprep.mubr.f32.mxu0 %v3503
    %4302 = vmatmul.mubr.f32.gmra.mrb[0].mxu0 %v3502
    %v4303 = vpop.f32.mrb[0].mxu0
    %v4304 = vadd.f32 %v4229, %v4303
    %v4305 = vpop.f32.mrb[0].mxu0
    %4306 = vmatprep.mubr.f32.mxu0 %v3519
    %4307 = vmatmul.mubr.f32.gmra.mrb[0].mxu0 %v3518
    %v4308 = vpop.f32.mrb[0].mxu0
    %v4309 = vadd.f32 %v4234, %v4308
    %v4310 = vpop.f32.mrb[0].mxu0
    %4311 = vdwg.mxu0
    %4312 = vmatprep.subr.mxu0 0.0
    %4313 = vmatpush1.msra.mxu0 %v3747
    %4314 = vmatprep.subr.mxu0 0.0
    %4315 = vmatpush1.msra.mxu0 %v3748
    %4316 = vmatprep.subr.mxu0 0.0
    %4317 = vmatpush1.msra.mxu0 %v3749
    %4318 = vmatprep.subr.mxu0 0.0
    %4319 = vmatpush1.msra.mxu0 %v3750
    %4320 = vmatprep.subr.mxu0 0.0
    %4321 = vmatpush1.msra.mxu0 %v3751
    %4322 = vmatprep.subr.mxu0 0.0
    %4323 = vmatpush1.msra.mxu0 %v3752
    %4324 = vmatprep.subr.mxu0 0.0
    %4325 = vmatpush1.msra.mxu0 %v3753
    %4326 = vmatprep.subr.mxu0 0.0
    %4327 = vmatpush1.msra.mxu0 %v3754
    %4328 = vmatprep.subr.mxu0 0.0
    %4329 = vmatpush1.msra.mxu0 %v3755
    %4330 = vmatprep.subr.mxu0 0.0
    %4331 = vmatpush1.msra.mxu0 %v3756
    %4332 = vmatprep.subr.mxu0 0.0
    %4333 = vmatpush1.msra.mxu0 %v3757
    %4334 = vmatprep.subr.mxu0 0.0
    %4335 = vmatpush1.msra.mxu0 %v3758
    %4336 = vmatprep.subr.mxu0 0.0
    %4337 = vmatpush1.msra.mxu0 %v3759
    %4338 = vmatprep.subr.mxu0 0.0
    %4339 = vmatpush1.msra.mxu0 %v3760
    %4340 = vmatprep.subr.mxu0 0.0
    %4341 = vmatpush1.msra.mxu0 %v3761
    %4342 = vmatprep.subr.mxu0 0.0
    %4343 = vmatpush1.msra.mxu0 %v3762
    %4344 = vmatprep.subr.mxu0 0.0
    %4345 = vmatpush1.msra.mxu0 %v3763
    %4346 = vmatprep.subr.mxu0 0.0
    %4347 = vmatpush1.msra.mxu0 %v3764
    %4348 = vmatprep.subr.mxu0 0.0
    %4349 = vmatpush1.msra.mxu0 %v3765
    %4350 = vmatprep.subr.mxu0 0.0
    %4351 = vmatpush1.msra.mxu0 %v3766
    %4352 = vmatprep.subr.mxu0 0.0
    %4353 = vmatpush1.msra.mxu0 %v3767
    %4354 = vmatprep.subr.mxu0 0.0
    %4355 = vmatpush1.msra.mxu0 %v3768
    %4356 = vmatprep.subr.mxu0 0.0
    %4357 = vmatpush1.msra.mxu0 %v3769
    %4358 = vmatprep.subr.mxu0 0.0
    %4359 = vmatpush1.msra.mxu0 %v3770
    %4360 = vmatprep.subr.mxu0 0.0
    %4361 = vmatpush1.msra.mxu0 %v3771
    %4362 = vmatprep.subr.mxu0 0.0
    %4363 = vmatpush1.msra.mxu0 %v3772
    %4364 = vmatprep.subr.mxu0 0.0
    %4365 = vmatpush1.msra.mxu0 %v3773
    %4366 = vmatprep.subr.mxu0 0.0
    %4367 = vmatpush1.msra.mxu0 %v3774
    %4368 = vmatprep.subr.mxu0 0.0
    %4369 = vmatpush1.msra.mxu0 %v3775
    %4370 = vmatprep.subr.mxu0 0.0
    %4371 = vmatpush1.msra.mxu0 %v3776
    %4372 = vmatprep.subr.mxu0 0.0
    %4373 = vmatpush1.msra.mxu0 %v3777
    %4374 = vmatprep.subr.mxu0 0.0
    %4375 = vmatpush1.msra.mxu0 %v3778
    %4376 = vmatprep.mubr.f32.mxu0 %v3505
    %4377 = vmatmul.mubr.f32.gmra.mrb[0].mxu0 %v3504
    %v4378 = vpop.f32.mrb[0].mxu0
    %v4379 = vadd.f32 %v4304, %v4378
    %v4380 = vpop.f32.mrb[0].mxu0
    %4381 = vmatprep.mubr.f32.mxu0 %v3521
    %4382 = vmatmul.mubr.f32.gmra.mrb[0].mxu0 %v3520
    %v4383 = vpop.f32.mrb[0].mxu0
    %v4384 = vadd.f32 %v4309, %v4383
    %v4385 = vpop.f32.mrb[0].mxu0
    %4386 = vdwg.mxu0
    %v4387 = vadd.f32 %v2716, %v4379
    %v4388 = vadd.f32 %v2717, %v4384
    %s4389 = scalar_lea.vmem %s13, 1
    %v4390 = vld [vmem:[%s4389] sm:$0x1]
    %s4391 = scalar_lea.vmem %s14, 1
    %v4392 = vld [vmem:[%s4391] sm:$0x1]
    %v4393 = vsel %vm141, %v4387, 0.0
    %4394 = vadd.xlane.f32.xlu0 %v4393
    %v4395 = vpop.xlane.xlu0 %4394
    %v4396 = vsel %vm141, %v4388, 0.0
    %4397 = vadd.xlane.f32.xlu0 %v4396
    %v4398 = vpop.xlane.xlu0 %4397
    %v4399 = vmul.f32 %v4395, %v530
    %v4400 = vmul.f32 %v4398, %v530
    %v4401 = vsub.f32 %v4387, %v4399
    %v4402 = vsub.f32 %v4388, %v4400
    %v4403 = vmul.f32 %v4401, %v4401
    %v4404 = vmul.f32 %v4402, %v4402
    %v4405 = vsel %vm141, %v4403, 0.0
    %4406 = vadd.xlane.f32.xlu0 %v4405
    %v4407 = vpop.xlane.xlu0 %4406
    %v4408 = vsel %vm141, %v4404, 0.0
    %4409 = vadd.xlane.f32.xlu0 %v4408
    %v4410 = vpop.xlane.xlu0 %4409
    %v4411 = vmul.f32 %v4407, %v530
    %v4412 = vmul.f32 %v4410, %v530
    %v4413 = vadd.f32 %v4411, 1e-05
    %v4414 = vadd.f32 %v4412, 1e-05
    %v4415 = vrsqrt.pop %v4413
    %v4416 = vrsqrt.pop %v4414
    %v4417 = vmul.f32 %v4401, %v4415
    %v4418 = vmul.f32 %v4402, %v4416
    %v4420 = vlaneseq
    %v4421 = vshrl.u32 %v4420, 7
    %v4422 = vsub.s32 0, %v4421
    %v4423 = vrot.slane %v4390, %v4422
    %v4425 = vmul.f32 %v4417, %v4423
    %v4426 = vmul.f32 %v4418, %v4423
    %v4428 = vlaneseq
    %v4429 = vshrl.u32 %v4428, 7
    %v4430 = vsub.s32 0, %v4429
    %v4431 = vrot.slane %v4392, %v4430
    %v4433 = vadd.f32 %v4425, %v4431
    %v4434 = vadd.f32 %v4426, %v4431
    %v4435 = vmul.u32 %v88, 8
    %v4436 = vadd.s32 %v4435, 7
    %vm4437 = vcmp.eq.s32.totalorder %v91, %v4436
    %v4438 = vsel %vm4437, 1, 0
    %v4439 = vcvt.s32.f32 %v4438
    %v4441 = vsel %vm318, %v4439, 0
    %4443 = vmatprep.subr.mxu0 0.0
    %4444 = vmatpush1.msra.mxu0 %v4433
    %4445 = vmatprep.subr.mxu0 0.0
    %4446 = vmatpush1.msra.mxu0 %v4434
    %4447 = vmatprep.subr.mxu0 0.0
    %4448 = vmatpush1.msra.mxu0 0.0
    %4449 = vmatprep.subr.mxu0 0.0
    %4450 = vmatpush1.msra.mxu0 0.0
    %4451 = vmatprep.subr.mxu0 0.0
    %4452 = vmatpush1.msra.mxu0 0.0
    %4453 = vmatprep.subr.mxu0 0.0
    %4454 = vmatpush1.msra.mxu0 0.0
    %4455 = vmatprep.subr.mxu0 0.0
    %4456 = vmatpush1.msra.mxu0 0.0
    %4457 = vmatprep.subr.mxu0 0.0
    %4458 = vmatpush1.msra.mxu0 0.0
    %4459 = vmatprep.subr.mxu0 0.0
    %4460 = vmatpush1.msra.mxu0 0.0
    %4461 = vmatprep.subr.mxu0 0.0
    %4462 = vmatpush1.msra.mxu0 0.0
    %4463 = vmatprep.subr.mxu0 0.0
    %4464 = vmatpush1.msra.mxu0 0.0
    %4465 = vmatprep.subr.mxu0 0.0
    %4466 = vmatpush1.msra.mxu0 0.0
    %4467 = vmatprep.subr.mxu0 0.0
    %4468 = vmatpush1.msra.mxu0 0.0
    %4469 = vmatprep.subr.mxu0 0.0
    %4470 = vmatpush1.msra.mxu0 0.0
    %4471 = vmatprep.subr.mxu0 0.0
    %4472 = vmatpush1.msra.mxu0 0.0
    %4473 = vmatprep.subr.mxu0 0.0
    %4474 = vmatpush1.msra.mxu0 0.0
    %4475 = vmatprep.subr.mxu0 0.0
    %4476 = vmatpush1.msra.mxu0 0.0
    %4477 = vmatprep.subr.mxu0 0.0
    %4478 = vmatpush1.msra.mxu0 0.0
    %4479 = vmatprep.subr.mxu0 0.0
    %4480 = vmatpush1.msra.mxu0 0.0
    %4481 = vmatprep.subr.mxu0 0.0
    %4482 = vmatpush1.msra.mxu0 0.0
    %4483 = vmatprep.subr.mxu0 0.0
    %4484 = vmatpush1.msra.mxu0 0.0
    %4485 = vmatprep.subr.mxu0 0.0
    %4486 = vmatpush1.msra.mxu0 0.0
    %4487 = vmatprep.subr.mxu0 0.0
    %4488 = vmatpush1.msra.mxu0 0.0
    %4489 = vmatprep.subr.mxu0 0.0
    %4490 = vmatpush1.msra.mxu0 0.0
    %4491 = vmatprep.subr.mxu0 0.0
    %4492 = vmatpush1.msra.mxu0 0.0
    %4493 = vmatprep.subr.mxu0 0.0
    %4494 = vmatpush1.msra.mxu0 0.0
    %4495 = vmatprep.subr.mxu0 0.0
    %4496 = vmatpush1.msra.mxu0 0.0
    %4497 = vmatprep.subr.mxu0 0.0
    %4498 = vmatpush1.msra.mxu0 0.0
    %4499 = vmatprep.subr.mxu0 0.0
    %4500 = vmatpush1.msra.mxu0 0.0
    %4501 = vmatprep.subr.mxu0 0.0
    %4502 = vmatpush1.msra.mxu0 0.0
    %4503 = vmatprep.subr.mxu0 0.0
    %4504 = vmatpush1.msra.mxu0 0.0
    %4505 = vmatprep.subr.mxu0 0.0
    %4506 = vmatpush1.msra.mxu0 0.0
    %4507 = vmatprep.mubr.f32.mxu0 0.0
    %4508 = vmatmul.mubr.f32.gmra.mrb[0].mxu0 %v4441
    %v4509 = vpop.f32.mrb[0].mxu0
    %v4510 = vadd.f32 0.0, %v4509
    %v4511 = vpop.f32.mrb[0].mxu0
    %4512 = vdwg.mxu0
    %v4513 = vld [vmem:[%s15] sm:$0xff]
    %v4514 = vld [vmem:[%s15 + $0x8] sm:$0xff]
    %v4515 = vld [vmem:[%s15 + $0x10] sm:$0xff]
    %v4516 = vld [vmem:[%s15 + $0x18] sm:$0xff]
    %v4517 = vld [vmem:[%s16] sm:$0x1]
    %v4519 = vlaneseq
    %v4520 = vshrl.u32 %v4519, 7
    %v4521 = vsub.s32 0, %v4520
    %v4522 = vrot.slane %v4517, %v4521
    %v4525 = vsel %vm141, %v4510, 0
    %4527 = vmatprep.subr.mxu0 0.0
    %4528 = vmatpush1.msra.mxu0 %v4513
    %4529 = vmatprep.subr.mxu0 0.0
    %4530 = vmatpush1.msra.mxu0 %v4514
    %4531 = vmatprep.subr.mxu0 0.0
    %4532 = vmatpush1.msra.mxu0 %v4515
    %4533 = vmatprep.subr.mxu0 0.0
    %4534 = vmatpush1.msra.mxu0 %v4516
    %4535 = vmatprep.subr.mxu0 0.0
    %4536 = vmatpush1.msra.mxu0 0.0
    %4537 = vmatprep.subr.mxu0 0.0
    %4538 = vmatpush1.msra.mxu0 0.0
    %4539 = vmatprep.subr.mxu0 0.0
    %4540 = vmatpush1.msra.mxu0 0.0
    %4541 = vmatprep.subr.mxu0 0.0
    %4542 = vmatpush1.msra.mxu0 0.0
    %4543 = vmatprep.subr.mxu0 0.0
    %4544 = vmatpush1.msra.mxu0 0.0
    %4545 = vmatprep.subr.mxu0 0.0
    %4546 = vmatpush1.msra.mxu0 0.0
    %4547 = vmatprep.subr.mxu0 0.0
    %4548 = vmatpush1.msra.mxu0 0.0
    %4549 = vmatprep.subr.mxu0 0.0
    %4550 = vmatpush1.msra.mxu0 0.0
    %4551 = vmatprep.subr.mxu0 0.0
    %4552 = vmatpush1.msra.mxu0 0.0
    %4553 = vmatprep.subr.mxu0 0.0
    %4554 = vmatpush1.msra.mxu0 0.0
    %4555 = vmatprep.subr.mxu0 0.0
    %4556 = vmatpush1.msra.mxu0 0.0
    %4557 = vmatprep.subr.mxu0 0.0
    %4558 = vmatpush1.msra.mxu0 0.0
    %4559 = vmatprep.subr.mxu0 0.0
    %4560 = vmatpush1.msra.mxu0 0.0
    %4561 = vmatprep.subr.mxu0 0.0
    %4562 = vmatpush1.msra.mxu0 0.0
    %4563 = vmatprep.subr.mxu0 0.0
    %4564 = vmatpush1.msra.mxu0 0.0
    %4565 = vmatprep.subr.mxu0 0.0
    %4566 = vmatpush1.msra.mxu0 0.0
    %4567 = vmatprep.subr.mxu0 0.0
    %4568 = vmatpush1.msra.mxu0 0.0
    %4569 = vmatprep.subr.mxu0 0.0
    %4570 = vmatpush1.msra.mxu0 0.0
    %4571 = vmatprep.subr.mxu0 0.0
    %4572 = vmatpush1.msra.mxu0 0.0
    %4573 = vmatprep.subr.mxu0 0.0
    %4574 = vmatpush1.msra.mxu0 0.0
    %4575 = vmatprep.subr.mxu0 0.0
    %4576 = vmatpush1.msra.mxu0 0.0
    %4577 = vmatprep.subr.mxu0 0.0
    %4578 = vmatpush1.msra.mxu0 0.0
    %4579 = vmatprep.subr.mxu0 0.0
    %4580 = vmatpush1.msra.mxu0 0.0
    %4581 = vmatprep.subr.mxu0 0.0
    %4582 = vmatpush1.msra.mxu0 0.0
    %4583 = vmatprep.subr.mxu0 0.0
    %4584 = vmatpush1.msra.mxu0 0.0
    %4585 = vmatprep.subr.mxu0 0.0
    %4586 = vmatpush1.msra.mxu0 0.0
    %4587 = vmatprep.subr.mxu0 0.0
    %4588 = vmatpush1.msra.mxu0 0.0
    %4589 = vmatprep.subr.mxu0 0.0
    %4590 = vmatpush1.msra.mxu0 0.0
    %4591 = vmatprep.mubr.f32.mxu0 0.0
    %4592 = vmatmul.mubr.f32.gmra.mrb[0].mxu0 %v4525
    %v4593 = vpop.f32.mrb[0].mxu0
    %v4594 = vadd.f32 %v4522, %v4593
    %v4595 = vpop.f32.mrb[0].mxu0
    %4596 = vdwg.mxu0
    %vm4597 = vcmask 50176
    %4598 = vst.msk [vmem:[#allocation2] sm:$0x3] %vm4597, %v4594
    // Predicated region
    $region70: #{model_forward.1} parent=1 // pred_check
      _
    $region71: #{model_forward.1} parent=1 // pred_check_branch
      %4600 = sbr.rel (0) target = $region73
    $region72: #{model_forward.1} parent=1 // pred_region
      %s4602 = ssub.s32 32, 32
      %4603 = vsyncadd [#allocation3], %s4602
      %s4605 = sshll.u32 [#allocation2], 4
      %s4606 = int_to_ptr.vmem [resolvable:$true] %s4605
      %4608 = dma.vmem_to_hbm [thread:$0]  %s4606, 32, %s17, [#allocation3]
    $region73: #{model_forward.1} parent=1 // pred_fallthru
      _
    // Predicated region
    $region74: #{model_forward.1} parent=1 // pred_check
      _
    $region75: #{model_forward.1} parent=1 // pred_check_branch
      %4610 = sbr.rel (0) target = $region77
    $region76: #{model_forward.1} parent=1 // pred_region
      %4611 = dma.done [#allocation3], 32
    $region77: #{model_forward.1} parent=1 // pred_fallthru
      _
    %4612 = vsyncpa [#allocation3], 1

</llo_original>
